<compile_context>
chip_gen: v5e
topology: v5e:2x2
jax: 0.10.0
libtpu: 0.0.40
codegen_flags: <defaults>
</compile_context>

<pallas_src>
import jax
import jax.numpy as jnp
from jax import lax
from jax.experimental import pallas as pl
from jax.experimental.pallas import tpu as pltpu  # noqa: F401  (TPU backend)

# ------------------------- configuration -------------------------
PAD_ID = 0
B = 2                       # batch
S = 8                       # sequence length
EMB_DIM = 16
POS_DIM = 8
NER_DIM = 8
IN_DIM = EMB_DIM + POS_DIM + NER_DIM     # 32  (no rnn => in_dim stays)
D = 32                      # hidden_dim / mem_dim
HEADS = 2
DK = D // HEADS             # 16
NUM_LAYERS = 1
SUBLAYERS = 2               # sublayer_first == sublayer_second
N_BLOCKS = 2 * NUM_LAYERS   # len(self.layers)
L_TOTAL = N_BLOCKS * HEADS * SUBLAYERS   # 8
K_DOM = 4                   # domain feature width
VOCAB, POS_VOCAB, NER_VOCAB, REL_VOCAB = 50, 12, 9, 11
BS = B * S                  # 16
SLAB = HEADS * B * S        # 32  (packed attention slab rows, order = (h, b, s))


# ------------------------- pallas kernel -------------------------
def aggcn_kernel(embs_ref, rel_ref, dom_ref, src_ref,
                 wg_ref, wqo_ref, wqr_ref, wk_ref,
                 wgcn_ref, wlin_ref,
                 bg_ref, bq_ref, bk_ref, bgcn_ref, blin_ref,
                 out_ref, gcnin_ref):
    f32 = jnp.float32
    embs = embs_ref[...]        # (B*S, IN_DIM)
    rel = rel_ref[...]          # (B*S, D)
    dom = dom_ref[...]          # (B*S, K_DOM)
    src = src_ref[...]          # (B, S)   1.0 = valid token, 0.0 = PAD

    # input_W_G projection — all batch rows at once
    gcn_in = jnp.dot(embs, wg_ref[...], preferred_element_type=f32) + bg_ref[...]
    gcnin_ref[...] = gcn_in

    # loop-invariant rel half of W_Q per head (incl. b_Q) — hoisted
    q_rel_heads = [jnp.dot(rel, wqr_ref[h], preferred_element_type=f32)
                   + bq_ref[h:h + 1, :] for h in range(HEADS)]        # (BS, DK)

    # ---- hoisted masks, pre-broadcast to the packed (HEADS*B*S, S) layout ----
    row_i = lax.broadcasted_iota(jnp.int32, (S, S), 0)
    col_i = lax.broadcasted_iota(jnp.int32, (S, S), 1)
    offdiag = row_i != col_i

    valid_b_list, vdm_b_list, invn_b_list = [], [], []
    for b in range(B):
        srcb = src[b:b + 1, :]                                  # (1, S)
        valid_b = jnp.broadcast_to(srcb, (S, S))                # column (key) mask
        domb = dom[b * S:(b + 1) * S, :]
        dd = lax.dot_general(domb, domb, (((1,), (1,)), ((), ())),
                             preferred_element_type=f32)        # dom @ dom.T
        dm = jnp.where((dd != 0.0) & offdiag, 1.0, 0.0)         # domain_mask
        valid_b_list.append(valid_b)
        vdm_b_list.append(valid_b * dm)                         # valid & adj
        n_valid = jnp.sum(srcb, axis=-1, keepdims=True) + 0.01  # (1, 1)
        invn_b_list.append(jnp.broadcast_to(1.0 / n_valid, (S, 1)))  # exact divide

    valid_bs = jnp.concatenate(valid_b_list, axis=0)            # (B*S, S)
    vdm_bs = jnp.concatenate(vdm_b_list, axis=0)
    invn_bs = jnp.concatenate(invn_b_list, axis=0)              # (B*S, 1)

    valid_slab = jnp.concatenate([valid_bs] * HEADS, axis=0) > 0.5   # (SLAB, S)
    vdm_slab = jnp.concatenate([vdm_bs] * HEADS, axis=0) > 0.5
    notv_slab = jnp.logical_not(valid_slab)
    invn_slab = jnp.concatenate([invn_bs] * HEADS, axis=0)           # (SLAB, 1)

    outputs = gcn_in                                            # (B*S, D)
    for blk in range(N_BLOCKS):
        # ---------------- MultiHeadAttention (packed score slab) ----------------
        sc_pieces = []
        for h in range(HEADS):
            Qh = (jnp.dot(outputs, wqo_ref[h], preferred_element_type=f32)
                  + q_rel_heads[h])                                   # (BS, DK)
            Kh = (jnp.dot(outputs, wk_ref[h], preferred_element_type=f32)
                  + bk_ref[h:h + 1, :])                               # (BS, DK)
            for b in range(B):
                # Q_bh @ K_bh.T without materializing a transpose
                sc_pieces.append(
                    lax.dot_general(Qh[b * S:(b + 1) * S, :],
                                    Kh[b * S:(b + 1) * S, :],
                                    (((1,), (1,)), ((), ())),
                                    preferred_element_type=f32))      # (S, S)
        sc = jnp.concatenate(sc_pieces, axis=0)          # (SLAB, S), rows = (h, b, s)

        # stdzscore on the packed slab (one chain for all batches/heads)
        mean = jnp.sum(jnp.where(valid_slab, sc, 0.0), axis=-1,
                       keepdims=True) * invn_slab
        dev = sc - mean
        var = jnp.sum(jnp.where(valid_slab, dev * dev, 0.0), axis=-1,
                      keepdims=True) * invn_slab
        z = dev * lax.rsqrt(var)
        # NaN fallback is global over the full (B, H, S, S) tensor, as in PyTorch
        has_nan = jnp.any(jnp.isnan(z))
        zr = jnp.where(has_nan, sc, z)

        # threshold + weightsoftmax (adj multiply & pad mask folded into vdm)
        thresh = zr < 0.0
        s2 = jnp.where(thresh | notv_slab, -1e9, zr)
        m = jnp.max(s2, axis=-1, keepdims=True)
        e = jnp.where(vdm_slab, jnp.exp(s2 - m), 0.0) + 1e-10
        p = e * pl.reciprocal(jnp.sum(e, axis=-1, keepdims=True), approx=True)
        attn_slab = jnp.where(vdm_slab & jnp.logical_not(thresh), p, 0.0)

        inv_denom = pl.reciprocal(
            jnp.sum(attn_slab, axis=-1, keepdims=True) + 1.0, approx=True)  # (SLAB,1)

        # ---------------- MultiGraphConvLayer (batch-stacked per head) ----------------
        lin_acc = None
        for h in range(HEADS):
            adj_h = attn_slab[h * BS:(h + 1) * BS, :]         # (B*S, S), contiguous
            invd_h = inv_denom[h * BS:(h + 1) * BS, :]        # (B*S, 1)
            oh = outputs
            for l in range(SUBLAYERS):
                idx = blk * HEADS * SUBLAYERS + h * SUBLAYERS + l
                # block-diagonal adj @ x, batch-stacked
                Ax = jnp.concatenate(
                    [jnp.dot(adj_h[b * S:(b + 1) * S, :],
                             oh[b * S:(b + 1) * S, :],
                             preferred_element_type=f32) for b in range(B)],
                    axis=0)                                   # (B*S, D)
                # factored: W(Ax) + W(x) == (Ax + x) @ W + 2*b
                AxW = (jnp.dot(Ax + oh, wgcn_ref[idx], preferred_element_type=f32)
                       + 2.0 * bgcn_ref[idx:idx + 1, :]) * invd_h
                oh = jnp.maximum(AxW, 0.0)                    # ReLU (dropout = id)
                # sum-of-slices replaces the lane concat + big W_lin matmul
                term = jnp.dot(oh, wlin_ref[idx], preferred_element_type=f32)
                lin_acc = term if lin_acc is None else lin_acc + term
        outputs = outputs + lin_acc + blin_ref[blk:blk + 1, :]   # residual

    out_ref[...] = outputs


# ------------------------- wrapper -------------------------
def aggcn_forward(words, pos, ner, deprel, domain, mask, params):
    f32 = jnp.float32
    # glue: embedding lookups + src mask (plain JAX)
    embs = jnp.concatenate([params["emb"][words],
                            params["pos_emb"][pos],
                            params["ner_emb"][ner]], axis=-1).astype(f32)
    rel_embs = params["rel_emb"][deprel].astype(f32)
    src_mask = (words != PAD_ID).astype(f32)                   # (B, S)

    embs_flat = embs.reshape(BS, IN_DIM)
    rel_flat = rel_embs.reshape(BS, D)
    dom_flat = domain.astype(f32).reshape(BS, K_DOM)

    # per-head weight splits (avoid in-kernel 16-lane head extraction)
    W_Q = params["W_Q"].astype(f32)
    wqo_heads = jnp.transpose(W_Q[:D, :].reshape(D, HEADS, DK), (1, 0, 2))   # (H, D, DK)
    wqr_heads = jnp.transpose(W_Q[D:, :].reshape(D, HEADS, DK), (1, 0, 2))
    wk_heads = jnp.transpose(params["W_K"].reshape(D, HEADS, DK), (1, 0, 2))
    bq_heads = params["b_Q"].reshape(HEADS, DK)
    bk_heads = params["b_K"].reshape(HEADS, DK)
    # per-(head, sublayer) W_lin slices for sum-of-slices accumulation
    wlin_split = params["W_lin"].reshape(L_TOTAL, D, D)

    rep2 = lambda i: (0, 0)
    rep3 = lambda i: (0, 0, 0)

    out_flat, gcnin_flat = pl.pallas_call(
        aggcn_kernel,
        out_shape=(jax.ShapeDtypeStruct((BS, D), f32),
                   jax.ShapeDtypeStruct((BS, D), f32)),
        grid=(1,),
        in_specs=[
            pl.BlockSpec((BS, IN_DIM), rep2),                  # embs
            pl.BlockSpec((BS, D), rep2),                       # rel_embs
            pl.BlockSpec((BS, K_DOM), rep2),                   # domain
            pl.BlockSpec((B, S), rep2),                        # src mask
            pl.BlockSpec((IN_DIM, D), rep2),                   # W_G
            pl.BlockSpec((HEADS, D, DK), rep3),                # W_Q out half, per head
            pl.BlockSpec((HEADS, D, DK), rep3),                # W_Q rel half, per head
            pl.BlockSpec((HEADS, D, DK), rep3),                # W_K, per head
            pl.BlockSpec((L_TOTAL, D, D), rep3),               # gcn weights
            pl.BlockSpec((L_TOTAL, D, D), rep3),               # W_lin slices
            pl.BlockSpec((1, D), rep2),                        # b_G
            pl.BlockSpec((HEADS, DK), rep2),                   # b_Q per head
            pl.BlockSpec((HEADS, DK), rep2),                   # b_K per head
            pl.BlockSpec((L_TOTAL, D), rep2),                  # gcn biases
            pl.BlockSpec((N_BLOCKS, D), rep2),                 # lin biases
        ],
        out_specs=[pl.BlockSpec((BS, D), rep2),
                   pl.BlockSpec((BS, D), rep2)],
    )(embs_flat, rel_flat, dom_flat, src_mask,
      params["W_G"], wqo_heads, wqr_heads, wk_heads,
      params["W_gcn"], wlin_split,
      params["b_G"], bq_heads, bk_heads, params["b_gcn"], params["b_lin"])

    out = out_flat.reshape(B, S, D)
    gcn_inputs = gcnin_flat.reshape(B, S, D)
    return out, mask, gcn_inputs


# ------------------------- deterministic params -------------------------
def make_params(key):
    ks = jax.random.split(key, 16)
    n = lambda k, shape, s=0.1: (s * jax.random.normal(k, shape)).astype(jnp.float32)
    return {
        "emb": n(ks[0], (VOCAB, EMB_DIM)),
        "pos_emb": n(ks[1], (POS_VOCAB, POS_DIM)),
        "ner_emb": n(ks[2], (NER_VOCAB, NER_DIM)),
        "rel_emb": n(ks[3], (REL_VOCAB, D)),
        "W_G": n(ks[4], (IN_DIM, D)),
        "b_G": n(ks[5], (1, D), 0.01),
        "W_Q": n(ks[6], (2 * D, D)),
        "b_Q": n(ks[7], (1, D), 0.01),
        "W_K": n(ks[8], (D, D)),
        "b_K": n(ks[9], (1, D), 0.01),
        "W_gcn": n(ks[10], (L_TOTAL, D, D)),
        "b_gcn": n(ks[11], (L_TOTAL, D), 0.01),
        "W_lin": n(ks[12], (N_BLOCKS, HEADS * SUBLAYERS * D, D)),
        "b_lin": n(ks[13], (N_BLOCKS, D), 0.01),
    }


# ------------------------- main -------------------------
if __name__ == "__main__":
    root = jax.random.PRNGKey(0)
    kp, kw, kpos, kner, krel, kdom = jax.random.split(root, 6)

    params = make_params(kp)

    words = jax.random.randint(kw, (B, S), 1, VOCAB, dtype=jnp.int32)
    words = words.at[1, 6:].set(PAD_ID)          # some PAD tokens to exercise masks
    pos = jax.random.randint(kpos, (B, S), 0, POS_VOCAB, dtype=jnp.int32)
    ner = jax.random.randint(kner, (B, S), 0, NER_VOCAB, dtype=jnp.int32)
    deprel = jax.random.randint(krel, (B, S), 0, REL_VOCAB, dtype=jnp.int32)
    domain = jax.random.bernoulli(kdom, 0.5, (B, S, K_DOM)).astype(jnp.float32)
    mask = (words == PAD_ID)                      # passthrough, as in the module

    out, mask_out, gcn_inputs = aggcn_forward(words, pos, ner, deprel,
                                              domain, mask, params)
    jax.block_until_ready((out, mask_out, gcn_inputs))

    assert out.shape == (B, S, D) and gcn_inputs.shape == (B, S, D)
    assert bool(jnp.all(jnp.isfinite(out))) and bool(jnp.all(jnp.isfinite(gcn_inputs)))
    print("KERNEL_OK")
</pallas_src>

<mosaic_0001>
module attributes {stable_mosaic.version = 11 : i64} {
  func.func @aggcn_kernel(%arg0: i32, %arg1: memref<16x32xf32, #tpu.memory_space<vmem>>, %arg2: memref<16x32xf32, #tpu.memory_space<vmem>>, %arg3: memref<16x4xf32, #tpu.memory_space<vmem>>, %arg4: memref<2x8xf32, #tpu.memory_space<vmem>>, %arg5: memref<32x32xf32, #tpu.memory_space<vmem>>, %arg6: memref<2x32x16xf32, #tpu.memory_space<vmem>>, %arg7: memref<2x32x16xf32, #tpu.memory_space<vmem>>, %arg8: memref<2x32x16xf32, #tpu.memory_space<vmem>>, %arg9: memref<8x32x32xf32, #tpu.memory_space<vmem>>, %arg10: memref<8x32x32xf32, #tpu.memory_space<vmem>>, %arg11: memref<1x32xf32, #tpu.memory_space<vmem>>, %arg12: memref<2x16xf32, #tpu.memory_space<vmem>>, %arg13: memref<2x16xf32, #tpu.memory_space<vmem>>, %arg14: memref<8x32xf32, #tpu.memory_space<vmem>>, %arg15: memref<2x32xf32, #tpu.memory_space<vmem>>, %arg16: memref<16x32xf32, #tpu.memory_space<vmem>>, %arg17: memref<16x32xf32, #tpu.memory_space<vmem>>) attributes {dimension_semantics = [#tpu.dimension_semantics<arbitrary>], iteration_bounds = array<i64: 1>, scalar_prefetch = 0 : i64, scratch_operands = 0 : i64, tpu.core_type = #tpu.core_type<tc>, window_params = [{pipeline_mode = #tpu.pipeline_mode<synchronous>, transform_indices = @transform_0, window_bounds = array<i64: 16, 32>}, {pipeline_mode = #tpu.pipeline_mode<synchronous>, transform_indices = @transform_1, window_bounds = array<i64: 16, 32>}, {pipeline_mode = #tpu.pipeline_mode<synchronous>, transform_indices = @transform_2, window_bounds = array<i64: 16, 4>}, {pipeline_mode = #tpu.pipeline_mode<synchronous>, transform_indices = @transform_3, window_bounds = array<i64: 2, 8>}, {pipeline_mode = #tpu.pipeline_mode<synchronous>, transform_indices = @transform_4, window_bounds = array<i64: 32, 32>}, {pipeline_mode = #tpu.pipeline_mode<synchronous>, transform_indices = @transform_5, window_bounds = array<i64: 2, 32, 16>}, {pipeline_mode = #tpu.pipeline_mode<synchronous>, transform_indices = @transform_6, window_bounds = array<i64: 2, 32, 16>}, {pipeline_mode = #tpu.pipeline_mode<synchronous>, transform_indices = @transform_7, window_bounds = array<i64: 2, 32, 16>}, {pipeline_mode = #tpu.pipeline_mode<synchronous>, transform_indices = @transform_8, window_bounds = array<i64: 8, 32, 32>}, {pipeline_mode = #tpu.pipeline_mode<synchronous>, transform_indices = @transform_9, window_bounds = array<i64: 8, 32, 32>}, {pipeline_mode = #tpu.pipeline_mode<synchronous>, transform_indices = @transform_10, window_bounds = array<i64: 1, 32>}, {pipeline_mode = #tpu.pipeline_mode<synchronous>, transform_indices = @transform_11, window_bounds = array<i64: 2, 16>}, {pipeline_mode = #tpu.pipeline_mode<synchronous>, transform_indices = @transform_12, window_bounds = array<i64: 2, 16>}, {pipeline_mode = #tpu.pipeline_mode<synchronous>, transform_indices = @transform_13, window_bounds = array<i64: 8, 32>}, {pipeline_mode = #tpu.pipeline_mode<synchronous>, transform_indices = @transform_14, window_bounds = array<i64: 2, 32>}, {pipeline_mode = #tpu.pipeline_mode<synchronous>, transform_indices = @transform_15, window_bounds = array<i64: 16, 32>}, {pipeline_mode = #tpu.pipeline_mode<synchronous>, transform_indices = @transform_16, window_bounds = array<i64: 16, 32>}]} {
    %c0 = arith.constant 0 : index
    %c0_0 = arith.constant 0 : index
    %0 = vector.load %arg1[%c0, %c0_0] : memref<16x32xf32, #tpu.memory_space<vmem>>, vector<16x32xf32>
    %c0_1 = arith.constant 0 : index
    %c0_2 = arith.constant 0 : index
    %1 = vector.load %arg2[%c0_1, %c0_2] : memref<16x32xf32, #tpu.memory_space<vmem>>, vector<16x32xf32>
    %c0_3 = arith.constant 0 : index
    %c0_4 = arith.constant 0 : index
    %2 = vector.load %arg3[%c0_3, %c0_4] : memref<16x4xf32, #tpu.memory_space<vmem>>, vector<16x4xf32>
    %c0_5 = arith.constant 0 : index
    %c0_6 = arith.constant 0 : index
    %3 = vector.load %arg4[%c0_5, %c0_6] : memref<2x8xf32, #tpu.memory_space<vmem>>, vector<2x8xf32>
    %c0_7 = arith.constant 0 : index
    %c0_8 = arith.constant 0 : index
    %4 = vector.load %arg5[%c0_7, %c0_8] : memref<32x32xf32, #tpu.memory_space<vmem>>, vector<32x32xf32>
    %cst = arith.constant dense<0.000000e+00> : vector<16x32xf32>
    %5 = tpu.matmul %0, %4, %cst {dimension_numbers = #tpu.dot_dimension_numbers<[1], [0], [0], [1], [0, 0, 1, 1], [], []>} : vector<16x32xf32>, vector<32x32xf32>, vector<16x32xf32> -> vector<16x32xf32>
    %c0_9 = arith.constant 0 : index
    %c0_10 = arith.constant 0 : index
    %6 = vector.load %arg11[%c0_9, %c0_10] : memref<1x32xf32, #tpu.memory_space<vmem>>, vector<1x32xf32>
    %7 = vector.broadcast %6 : vector<1x32xf32> to vector<16x32xf32>
    %8 = arith.addf %5, %7 : vector<16x32xf32>
    %c0_11 = arith.constant 0 : index
    %c0_12 = arith.constant 0 : index
    %9 = vector.load %arg17[%c0_11, %c0_12] : memref<16x32xf32, #tpu.memory_space<vmem>>, vector<16x32xf32>
    tpu.vector_store %arg17[%c0_11, %c0_12], %8 {strides = array<i32>} : memref<16x32xf32, #tpu.memory_space<vmem>>, vector<16x32xf32>,
    %c0_13 = arith.constant 0 : index
    %c0_14 = arith.constant 0 : index
    %c0_15 = arith.constant 0 : index
    %10 = vector.load %arg7[%c0_13, %c0_14, %c0_15] : memref<2x32x16xf32, #tpu.memory_space<vmem>>, vector<1x32x16xf32>
    %11 = vector.shape_cast %10 : vector<1x32x16xf32> to vector<32x16xf32>
    %cst_16 = arith.constant dense<0.000000e+00> : vector<16x16xf32>
    %12 = tpu.matmul %1, %11, %cst_16 {dimension_numbers = #tpu.dot_dimension_numbers<[1], [0], [0], [1], [0, 0, 1, 1], [], []>} : vector<16x32xf32>, vector<32x16xf32>, vector<16x16xf32> -> vector<16x16xf32>
    %c0_17 = arith.constant 0 : index
    %c0_18 = arith.constant 0 : index
    %13 = vector.load %arg12[%c0_17, %c0_18] : memref<2x16xf32, #tpu.memory_space<vmem>>, vector<1x16xf32>
    %14 = vector.broadcast %13 : vector<1x16xf32> to vector<16x16xf32>
    %15 = arith.addf %12, %14 : vector<16x16xf32>
    %c1 = arith.constant 1 : index
    %c0_19 = arith.constant 0 : index
    %c0_20 = arith.constant 0 : index
    %16 = vector.load %arg7[%c1, %c0_19, %c0_20] : memref<2x32x16xf32, #tpu.memory_space<vmem>>, vector<1x32x16xf32>
    %17 = vector.shape_cast %16 : vector<1x32x16xf32> to vector<32x16xf32>
    %cst_21 = arith.constant dense<0.000000e+00> : vector<16x16xf32>
    %18 = tpu.matmul %1, %17, %cst_21 {dimension_numbers = #tpu.dot_dimension_numbers<[1], [0], [0], [1], [0, 0, 1, 1], [], []>} : vector<16x32xf32>, vector<32x16xf32>, vector<16x16xf32> -> vector<16x16xf32>
    %c1_22 = arith.constant 1 : index
    %c0_23 = arith.constant 0 : index
    %19 = vector.load %arg12[%c1_22, %c0_23] : memref<2x16xf32, #tpu.memory_space<vmem>>, vector<1x16xf32>
    %20 = vector.broadcast %19 : vector<1x16xf32> to vector<16x16xf32>
    %21 = arith.addf %18, %20 : vector<16x16xf32>
    %22 = tpu.iota {dimensions = array<i32: 0>} : vector<8x8xi32>
    %23 = tpu.iota {dimensions = array<i32: 1>} : vector<8x8xi32>
    %24 = arith.cmpi ne, %22, %23 : vector<8x8xi32>
    %25 = vector.extract_strided_slice %3 {offsets = [0, 0], sizes = [1, 8], strides = [1, 1]} : vector<2x8xf32> to vector<1x8xf32>
    %26 = vector.shape_cast %25 : vector<1x8xf32> to vector<1x8xf32>
    %27 = vector.broadcast %26 : vector<1x8xf32> to vector<8x8xf32>
    %28 = vector.extract_strided_slice %2 {offsets = [0, 0], sizes = [8, 4], strides = [1, 1]} : vector<16x4xf32> to vector<8x4xf32>
    %cst_24 = arith.constant dense<0.000000e+00> : vector<8x8xf32>
    %29 = tpu.matmul %28, %28, %cst_24 {dimension_numbers = #tpu.dot_dimension_numbers<[1], [1], [0], [0], [0, 0, 1, 0], [], []>} : vector<8x4xf32>, vector<8x4xf32>, vector<8x8xf32> -> vector<8x8xf32>
    %cst_25 = arith.constant 0.000000e+00 : f32
    %30 = vector.broadcast %cst_25 : f32 to vector<8x8xf32>
    %31 = arith.cmpf one, %29, %30 : vector<8x8xf32>
    %32 = arith.andi %31, %24 : vector<8x8xi1>
    %cst_26 = arith.constant 1.000000e+00 : f32
    %cst_27 = arith.constant 0.000000e+00 : f32
    %33 = vector.broadcast %cst_26 : f32 to vector<8x8xf32>
    %34 = vector.broadcast %cst_27 : f32 to vector<8x8xf32>
    %35 = arith.select %32, %33, %34 : vector<8x8xi1>, vector<8x8xf32>
    %36 = arith.mulf %27, %35 : vector<8x8xf32>
    %cst_28 = arith.constant dense<0.000000e+00> : vector<1xf32>
    %37 = vector.multi_reduction <add>, %25, %cst_28 [1] : vector<1x8xf32> to vector<1xf32>
    %38 = vector.shape_cast %37 : vector<1xf32> to vector<1x1xf32>
    %cst_29 = arith.constant 0.00999999977 : f32
    %39 = vector.broadcast %cst_29 : f32 to vector<1x1xf32>
    %40 = arith.addf %38, %39 : vector<1x1xf32>
    %cst_30 = arith.constant 1.000000e+00 : f32
    %41 = vector.broadcast %cst_30 : f32 to vector<1x1xf32>
    %42 = arith.divf %41, %40 : vector<1x1xf32>
    %43 = vector.shape_cast %42 : vector<1x1xf32> to vector<1x1xf32>
    %44 = vector.broadcast %43 : vector<1x1xf32> to vector<8x1xf32>
    %45 = vector.extract_strided_slice %3 {offsets = [1, 0], sizes = [1, 8], strides = [1, 1]} : vector<2x8xf32> to vector<1x8xf32>
    %46 = vector.shape_cast %45 : vector<1x8xf32> to vector<1x8xf32>
    %47 = vector.broadcast %46 : vector<1x8xf32> to vector<8x8xf32>
    %48 = vector.extract_strided_slice %2 {offsets = [8, 0], sizes = [8, 4], strides = [1, 1]} : vector<16x4xf32> to vector<8x4xf32>
    %cst_31 = arith.constant dense<0.000000e+00> : vector<8x8xf32>
    %49 = tpu.matmul %48, %48, %cst_31 {dimension_numbers = #tpu.dot_dimension_numbers<[1], [1], [0], [0], [0, 0, 1, 0], [], []>} : vector<8x4xf32>, vector<8x4xf32>, vector<8x8xf32> -> vector<8x8xf32>
    %cst_32 = arith.constant 0.000000e+00 : f32
    %50 = vector.broadcast %cst_32 : f32 to vector<8x8xf32>
    %51 = arith.cmpf one, %49, %50 : vector<8x8xf32>
    %52 = arith.andi %51, %24 : vector<8x8xi1>
    %cst_33 = arith.constant 1.000000e+00 : f32
    %cst_34 = arith.constant 0.000000e+00 : f32
    %53 = vector.broadcast %cst_33 : f32 to vector<8x8xf32>
    %54 = vector.broadcast %cst_34 : f32 to vector<8x8xf32>
    %55 = arith.select %52, %53, %54 : vector<8x8xi1>, vector<8x8xf32>
    %56 = arith.mulf %47, %55 : vector<8x8xf32>
    %cst_35 = arith.constant dense<0.000000e+00> : vector<1xf32>
    %57 = vector.multi_reduction <add>, %45, %cst_35 [1] : vector<1x8xf32> to vector<1xf32>
    %58 = vector.shape_cast %57 : vector<1xf32> to vector<1x1xf32>
    %cst_36 = arith.constant 0.00999999977 : f32
    %59 = vector.broadcast %cst_36 : f32 to vector<1x1xf32>
    %60 = arith.addf %58, %59 : vector<1x1xf32>
    %cst_37 = arith.constant 1.000000e+00 : f32
    %61 = vector.broadcast %cst_37 : f32 to vector<1x1xf32>
    %62 = arith.divf %61, %60 : vector<1x1xf32>
    %63 = vector.shape_cast %62 : vector<1x1xf32> to vector<1x1xf32>
    %64 = vector.broadcast %63 : vector<1x1xf32> to vector<8x1xf32>
    %65 = tpu.concatenate %27, %47 in 0 : vector<8x8xf32>, vector<8x8xf32> -> vector<16x8xf32>
    %66 = tpu.concatenate %36, %56 in 0 : vector<8x8xf32>, vector<8x8xf32> -> vector<16x8xf32>
    %67 = tpu.concatenate %44, %64 in 0 : vector<8x1xf32>, vector<8x1xf32> -> vector<16x1xf32>
    %68 = tpu.concatenate %65, %65 in 0 : vector<16x8xf32>, vector<16x8xf32> -> vector<32x8xf32>
    %cst_38 = arith.constant 5.000000e-01 : f32
    %69 = vector.broadcast %cst_38 : f32 to vector<32x8xf32>
    %70 = arith.cmpf ogt, %68, %69 : vector<32x8xf32>
    %71 = tpu.concatenate %66, %66 in 0 : vector<16x8xf32>, vector<16x8xf32> -> vector<32x8xf32>
    %cst_39 = arith.constant 5.000000e-01 : f32
    %72 = vector.broadcast %cst_39 : f32 to vector<32x8xf32>
    %73 = arith.cmpf ogt, %71, %72 : vector<32x8xf32>
    %cst_40 = arith.constant dense<true> : vector<32x8xi1>
    %74 = arith.xori %70, %cst_40 : vector<32x8xi1>
    %75 = tpu.concatenate %67, %67 in 0 : vector<16x1xf32>, vector<16x1xf32> -> vector<32x1xf32>
    %c0_41 = arith.constant 0 : index
    %c0_42 = arith.constant 0 : index
    %c0_43 = arith.constant 0 : index
    %76 = vector.load %arg6[%c0_41, %c0_42, %c0_43] : memref<2x32x16xf32, #tpu.memory_space<vmem>>, vector<1x32x16xf32>
    %77 = vector.shape_cast %76 : vector<1x32x16xf32> to vector<32x16xf32>
    %cst_44 = arith.constant dense<0.000000e+00> : vector<16x16xf32>
    %78 = tpu.matmul %8, %77, %cst_44 {dimension_numbers = #tpu.dot_dimension_numbers<[1], [0], [0], [1], [0, 0, 1, 1], [], []>} : vector<16x32xf32>, vector<32x16xf32>, vector<16x16xf32> -> vector<16x16xf32>
    %79 = arith.addf %78, %15 : vector<16x16xf32>
    %c0_45 = arith.constant 0 : index
    %c0_46 = arith.constant 0 : index
    %c0_47 = arith.constant 0 : index
    %80 = vector.load %arg8[%c0_45, %c0_46, %c0_47] : memref<2x32x16xf32, #tpu.memory_space<vmem>>, vector<1x32x16xf32>
    %81 = vector.shape_cast %80 : vector<1x32x16xf32> to vector<32x16xf32>
    %cst_48 = arith.constant dense<0.000000e+00> : vector<16x16xf32>
    %82 = tpu.matmul %8, %81, %cst_48 {dimension_numbers = #tpu.dot_dimension_numbers<[1], [0], [0], [1], [0, 0, 1, 1], [], []>} : vector<16x32xf32>, vector<32x16xf32>, vector<16x16xf32> -> vector<16x16xf32>
    %c0_49 = arith.constant 0 : index
    %c0_50 = arith.constant 0 : index
    %83 = vector.load %arg13[%c0_49, %c0_50] : memref<2x16xf32, #tpu.memory_space<vmem>>, vector<1x16xf32>
    %84 = vector.broadcast %83 : vector<1x16xf32> to vector<16x16xf32>
    %85 = arith.addf %82, %84 : vector<16x16xf32>
    %86 = vector.extract_strided_slice %79 {offsets = [0, 0], sizes = [8, 16], strides = [1, 1]} : vector<16x16xf32> to vector<8x16xf32>
    %87 = vector.extract_strided_slice %85 {offsets = [0, 0], sizes = [8, 16], strides = [1, 1]} : vector<16x16xf32> to vector<8x16xf32>
    %cst_51 = arith.constant dense<0.000000e+00> : vector<8x8xf32>
    %88 = tpu.matmul %86, %87, %cst_51 {dimension_numbers = #tpu.dot_dimension_numbers<[1], [1], [0], [0], [0, 0, 1, 0], [], []>} : vector<8x16xf32>, vector<8x16xf32>, vector<8x8xf32> -> vector<8x8xf32>
    %89 = vector.extract_strided_slice %79 {offsets = [8, 0], sizes = [8, 16], strides = [1, 1]} : vector<16x16xf32> to vector<8x16xf32>
    %90 = vector.extract_strided_slice %85 {offsets = [8, 0], sizes = [8, 16], strides = [1, 1]} : vector<16x16xf32> to vector<8x16xf32>
    %cst_52 = arith.constant dense<0.000000e+00> : vector<8x8xf32>
    %91 = tpu.matmul %89, %90, %cst_52 {dimension_numbers = #tpu.dot_dimension_numbers<[1], [1], [0], [0], [0, 0, 1, 0], [], []>} : vector<8x16xf32>, vector<8x16xf32>, vector<8x8xf32> -> vector<8x8xf32>
    %c1_53 = arith.constant 1 : index
    %c0_54 = arith.constant 0 : index
    %c0_55 = arith.constant 0 : index
    %92 = vector.load %arg6[%c1_53, %c0_54, %c0_55] : memref<2x32x16xf32, #tpu.memory_space<vmem>>, vector<1x32x16xf32>
    %93 = vector.shape_cast %92 : vector<1x32x16xf32> to vector<32x16xf32>
    %cst_56 = arith.constant dense<0.000000e+00> : vector<16x16xf32>
    %94 = tpu.matmul %8, %93, %cst_56 {dimension_numbers = #tpu.dot_dimension_numbers<[1], [0], [0], [1], [0, 0, 1, 1], [], []>} : vector<16x32xf32>, vector<32x16xf32>, vector<16x16xf32> -> vector<16x16xf32>
    %95 = arith.addf %94, %21 : vector<16x16xf32>
    %c1_57 = arith.constant 1 : index
    %c0_58 = arith.constant 0 : index
    %c0_59 = arith.constant 0 : index
    %96 = vector.load %arg8[%c1_57, %c0_58, %c0_59] : memref<2x32x16xf32, #tpu.memory_space<vmem>>, vector<1x32x16xf32>
    %97 = vector.shape_cast %96 : vector<1x32x16xf32> to vector<32x16xf32>
    %cst_60 = arith.constant dense<0.000000e+00> : vector<16x16xf32>
    %98 = tpu.matmul %8, %97, %cst_60 {dimension_numbers = #tpu.dot_dimension_numbers<[1], [0], [0], [1], [0, 0, 1, 1], [], []>} : vector<16x32xf32>, vector<32x16xf32>, vector<16x16xf32> -> vector<16x16xf32>
    %c1_61 = arith.constant 1 : index
    %c0_62 = arith.constant 0 : index
    %99 = vector.load %arg13[%c1_61, %c0_62] : memref<2x16xf32, #tpu.memory_space<vmem>>, vector<1x16xf32>
    %100 = vector.broadcast %99 : vector<1x16xf32> to vector<16x16xf32>
    %101 = arith.addf %98, %100 : vector<16x16xf32>
    %102 = vector.extract_strided_slice %95 {offsets = [0, 0], sizes = [8, 16], strides = [1, 1]} : vector<16x16xf32> to vector<8x16xf32>
    %103 = vector.extract_strided_slice %101 {offsets = [0, 0], sizes = [8, 16], strides = [1, 1]} : vector<16x16xf32> to vector<8x16xf32>
    %cst_63 = arith.constant dense<0.000000e+00> : vector<8x8xf32>
    %104 = tpu.matmul %102, %103, %cst_63 {dimension_numbers = #tpu.dot_dimension_numbers<[1], [1], [0], [0], [0, 0, 1, 0], [], []>} : vector<8x16xf32>, vector<8x16xf32>, vector<8x8xf32> -> vector<8x8xf32>
    %105 = vector.extract_strided_slice %95 {offsets = [8, 0], sizes = [8, 16], strides = [1, 1]} : vector<16x16xf32> to vector<8x16xf32>
    %106 = vector.extract_strided_slice %101 {offsets = [8, 0], sizes = [8, 16], strides = [1, 1]} : vector<16x16xf32> to vector<8x16xf32>
    %cst_64 = arith.constant dense<0.000000e+00> : vector<8x8xf32>
    %107 = tpu.matmul %105, %106, %cst_64 {dimension_numbers = #tpu.dot_dimension_numbers<[1], [1], [0], [0], [0, 0, 1, 0], [], []>} : vector<8x16xf32>, vector<8x16xf32>, vector<8x8xf32> -> vector<8x8xf32>
    %108 = tpu.concatenate %88, %91, %104, %107 in 0 : vector<8x8xf32>, vector<8x8xf32>, vector<8x8xf32>, vector<8x8xf32> -> vector<32x8xf32>
    %cst_65 = arith.constant 0.000000e+00 : f32
    %109 = vector.broadcast %cst_65 : f32 to vector<32x8xf32>
    %110 = arith.select %70, %108, %109 : vector<32x8xi1>, vector<32x8xf32>
    %cst_66 = arith.constant dense<0.000000e+00> : vector<32xf32>
    %111 = vector.multi_reduction <add>, %110, %cst_66 [1] : vector<32x8xf32> to vector<32xf32>
    %112 = vector.shape_cast %111 : vector<32xf32> to vector<32x1xf32>
    %113 = arith.mulf %112, %75 : vector<32x1xf32>
    %114 = vector.broadcast %113 : vector<32x1xf32> to vector<32x8xf32>
    %115 = arith.subf %108, %114 : vector<32x8xf32>
    %116 = arith.mulf %115, %115 : vector<32x8xf32>
    %cst_67 = arith.constant 0.000000e+00 : f32
    %117 = vector.broadcast %cst_67 : f32 to vector<32x8xf32>
    %118 = arith.select %70, %116, %117 : vector<32x8xi1>, vector<32x8xf32>
    %cst_68 = arith.constant dense<0.000000e+00> : vector<32xf32>
    %119 = vector.multi_reduction <add>, %118, %cst_68 [1] : vector<32x8xf32> to vector<32xf32>
    %120 = vector.shape_cast %119 : vector<32xf32> to vector<32x1xf32>
    %121 = arith.mulf %120, %75 : vector<32x1xf32>
    %122 = math.rsqrt %121 : vector<32x1xf32>
    %123 = vector.broadcast %122 : vector<32x1xf32> to vector<32x8xf32>
    %124 = arith.mulf %115, %123 : vector<32x8xf32>
    %125 = arith.cmpf one, %124, %124 : vector<32x8xf32>
    %cst_69 = arith.constant 1.000000e+00 : f32
    %cst_70 = arith.constant 0.000000e+00 : f32
    %126 = vector.broadcast %cst_69 : f32 to vector<32x8xf32>
    %127 = vector.broadcast %cst_70 : f32 to vector<32x8xf32>
    %128 = arith.select %125, %126, %127 : vector<32x8xi1>, vector<32x8xf32>
    %129 = vector.shape_cast %128 : vector<32x8xf32> to vector<1x32x8xf32>
    %cst_71 = arith.constant dense<0xFF800000> : vector<1xf32>
    %130 = vector.multi_reduction <maximumf>, %129, %cst_71 [1, 2] : vector<1x32x8xf32> to vector<1xf32>
    %131 = vector.shape_cast %130 : vector<1xf32> to vector<1x1x1xf32>
    %132 = vector.extract %131[0, 0, 0] : f32 from vector<1x1x1xf32>
    %cst_72 = arith.constant 0.000000e+00 : f32
    %133 = arith.cmpf ogt, %132, %cst_72 : f32
    %134 = arith.select %133, %108, %124 : vector<32x8xf32>
    %cst_73 = arith.constant 0.000000e+00 : f32
    %135 = vector.broadcast %cst_73 : f32 to vector<32x8xf32>
    %136 = arith.cmpf olt, %134, %135 : vector<32x8xf32>
    %137 = arith.ori %136, %74 : vector<32x8xi1>
    %cst_74 = arith.constant -1.000000e+09 : f32
    %138 = vector.broadcast %cst_74 : f32 to vector<32x8xf32>
    %139 = arith.select %137, %138, %134 : vector<32x8xi1>, vector<32x8xf32>
    %cst_75 = arith.constant dense<0xFF800000> : vector<32xf32>
    %140 = vector.multi_reduction <maximumf>, %139, %cst_75 [1] : vector<32x8xf32> to vector<32xf32>
    %141 = vector.shape_cast %140 : vector<32xf32> to vector<32x1xf32>
    %142 = vector.broadcast %141 : vector<32x1xf32> to vector<32x8xf32>
    %143 = arith.subf %139, %142 : vector<32x8xf32>
    %144 = math.exp %143 : vector<32x8xf32>
    %cst_76 = arith.constant 0.000000e+00 : f32
    %145 = vector.broadcast %cst_76 : f32 to vector<32x8xf32>
    %146 = arith.select %73, %144, %145 : vector<32x8xi1>, vector<32x8xf32>
    %cst_77 = arith.constant 1.000000e-10 : f32
    %147 = vector.broadcast %cst_77 : f32 to vector<32x8xf32>
    %148 = arith.addf %146, %147 : vector<32x8xf32>
    %cst_78 = arith.constant dense<0.000000e+00> : vector<32xf32>
    %149 = vector.multi_reduction <add>, %148, %cst_78 [1] : vector<32x8xf32> to vector<32xf32>
    %150 = vector.shape_cast %149 : vector<32xf32> to vector<32x1xf32>
    %151 = tpu.reciprocal %150 {approx = true} : vector<32x1xf32> -> vector<32x1xf32>
    %152 = vector.broadcast %151 : vector<32x1xf32> to vector<32x8xf32>
    %153 = arith.mulf %148, %152 : vector<32x8xf32>
    %cst_79 = arith.constant dense<true> : vector<32x8xi1>
    %154 = arith.xori %136, %cst_79 : vector<32x8xi1>
    %155 = arith.andi %73, %154 : vector<32x8xi1>
    %cst_80 = arith.constant 0.000000e+00 : f32
    %156 = vector.broadcast %cst_80 : f32 to vector<32x8xf32>
    %157 = arith.select %155, %153, %156 : vector<32x8xi1>, vector<32x8xf32>
    %cst_81 = arith.constant dense<0.000000e+00> : vector<32xf32>
    %158 = vector.multi_reduction <add>, %157, %cst_81 [1] : vector<32x8xf32> to vector<32xf32>
    %159 = vector.shape_cast %158 : vector<32xf32> to vector<32x1xf32>
    %cst_82 = arith.constant 1.000000e+00 : f32
    %160 = vector.broadcast %cst_82 : f32 to vector<32x1xf32>
    %161 = arith.addf %159, %160 : vector<32x1xf32>
    %162 = tpu.reciprocal %161 {approx = true} : vector<32x1xf32> -> vector<32x1xf32>
    %163 = vector.extract_strided_slice %157 {offsets = [0, 0], sizes = [16, 8], strides = [1, 1]} : vector<32x8xf32> to vector<16x8xf32>
    %164 = vector.extract_strided_slice %162 {offsets = [0, 0], sizes = [16, 1], strides = [1, 1]} : vector<32x1xf32> to vector<16x1xf32>
    %165 = vector.extract_strided_slice %163 {offsets = [0, 0], sizes = [8, 8], strides = [1, 1]} : vector<16x8xf32> to vector<8x8xf32>
    %166 = vector.extract_strided_slice %8 {offsets = [0, 0], sizes = [8, 32], strides = [1, 1]} : vector<16x32xf32> to vector<8x32xf32>
    %cst_83 = arith.constant dense<0.000000e+00> : vector<8x32xf32>
    %167 = tpu.matmul %165, %166, %cst_83 {dimension_numbers = #tpu.dot_dimension_numbers<[1], [0], [0], [1], [0, 0, 1, 1], [], []>} : vector<8x8xf32>, vector<8x32xf32>, vector<8x32xf32> -> vector<8x32xf32>
    %168 = vector.extract_strided_slice %163 {offsets = [8, 0], sizes = [8, 8], strides = [1, 1]} : vector<16x8xf32> to vector<8x8xf32>
    %169 = vector.extract_strided_slice %8 {offsets = [8, 0], sizes = [8, 32], strides = [1, 1]} : vector<16x32xf32> to vector<8x32xf32>
    %cst_84 = arith.constant dense<0.000000e+00> : vector<8x32xf32>
    %170 = tpu.matmul %168, %169, %cst_84 {dimension_numbers = #tpu.dot_dimension_numbers<[1], [0], [0], [1], [0, 0, 1, 1], [], []>} : vector<8x8xf32>, vector<8x32xf32>, vector<8x32xf32> -> vector<8x32xf32>
    %171 = tpu.concatenate %167, %170 in 0 : vector<8x32xf32>, vector<8x32xf32> -> vector<16x32xf32>
    %172 = arith.addf %171, %8 : vector<16x32xf32>
    %c0_85 = arith.constant 0 : index
    %c0_86 = arith.constant 0 : index
    %c0_87 = arith.constant 0 : index
    %173 = vector.load %arg9[%c0_85, %c0_86, %c0_87] : memref<8x32x32xf32, #tpu.memory_space<vmem>>, vector<1x32x32xf32>
    %174 = vector.shape_cast %173 : vector<1x32x32xf32> to vector<32x32xf32>
    %cst_88 = arith.constant dense<0.000000e+00> : vector<16x32xf32>
    %175 = tpu.matmul %172, %174, %cst_88 {dimension_numbers = #tpu.dot_dimension_numbers<[1], [0], [0], [1], [0, 0, 1, 1], [], []>} : vector<16x32xf32>, vector<32x32xf32>, vector<16x32xf32> -> vector<16x32xf32>
    %c0_89 = arith.constant 0 : index
    %c0_90 = arith.constant 0 : index
    %176 = vector.load %arg14[%c0_89, %c0_90] : memref<8x32xf32, #tpu.memory_space<vmem>>, vector<1x32xf32>
    %cst_91 = arith.constant 2.000000e+00 : f32
    %177 = vector.broadcast %cst_91 : f32 to vector<1x32xf32>
    %178 = arith.mulf %177, %176 : vector<1x32xf32>
    %179 = vector.broadcast %178 : vector<1x32xf32> to vector<16x32xf32>
    %180 = arith.addf %175, %179 : vector<16x32xf32>
    %181 = vector.broadcast %164 : vector<16x1xf32> to vector<16x32xf32>
    %182 = arith.mulf %180, %181 : vector<16x32xf32>
    %cst_92 = arith.constant 0.000000e+00 : f32
    %183 = vector.broadcast %cst_92 : f32 to vector<16x32xf32>
    %184 = arith.maximumf %182, %183 : vector<16x32xf32>
    %c0_93 = arith.constant 0 : index
    %c0_94 = arith.constant 0 : index
    %c0_95 = arith.constant 0 : index
    %185 = vector.load %arg10[%c0_93, %c0_94, %c0_95] : memref<8x32x32xf32, #tpu.memory_space<vmem>>, vector<1x32x32xf32>
    %186 = vector.shape_cast %185 : vector<1x32x32xf32> to vector<32x32xf32>
    %cst_96 = arith.constant dense<0.000000e+00> : vector<16x32xf32>
    %187 = tpu.matmul %184, %186, %cst_96 {dimension_numbers = #tpu.dot_dimension_numbers<[1], [0], [0], [1], [0, 0, 1, 1], [], []>} : vector<16x32xf32>, vector<32x32xf32>, vector<16x32xf32> -> vector<16x32xf32>
    %188 = vector.extract_strided_slice %163 {offsets = [0, 0], sizes = [8, 8], strides = [1, 1]} : vector<16x8xf32> to vector<8x8xf32>
    %189 = vector.extract_strided_slice %184 {offsets = [0, 0], sizes = [8, 32], strides = [1, 1]} : vector<16x32xf32> to vector<8x32xf32>
    %cst_97 = arith.constant dense<0.000000e+00> : vector<8x32xf32>
    %190 = tpu.matmul %188, %189, %cst_97 {dimension_numbers = #tpu.dot_dimension_numbers<[1], [0], [0], [1], [0, 0, 1, 1], [], []>} : vector<8x8xf32>, vector<8x32xf32>, vector<8x32xf32> -> vector<8x32xf32>
    %191 = vector.extract_strided_slice %163 {offsets = [8, 0], sizes = [8, 8], strides = [1, 1]} : vector<16x8xf32> to vector<8x8xf32>
    %192 = vector.extract_strided_slice %184 {offsets = [8, 0], sizes = [8, 32], strides = [1, 1]} : vector<16x32xf32> to vector<8x32xf32>
    %cst_98 = arith.constant dense<0.000000e+00> : vector<8x32xf32>
    %193 = tpu.matmul %191, %192, %cst_98 {dimension_numbers = #tpu.dot_dimension_numbers<[1], [0], [0], [1], [0, 0, 1, 1], [], []>} : vector<8x8xf32>, vector<8x32xf32>, vector<8x32xf32> -> vector<8x32xf32>
    %194 = tpu.concatenate %190, %193 in 0 : vector<8x32xf32>, vector<8x32xf32> -> vector<16x32xf32>
    %195 = arith.addf %194, %184 : vector<16x32xf32>
    %c1_99 = arith.constant 1 : index
    %c0_100 = arith.constant 0 : index
    %c0_101 = arith.constant 0 : index
    %196 = vector.load %arg9[%c1_99, %c0_100, %c0_101] : memref<8x32x32xf32, #tpu.memory_space<vmem>>, vector<1x32x32xf32>
    %197 = vector.shape_cast %196 : vector<1x32x32xf32> to vector<32x32xf32>
    %cst_102 = arith.constant dense<0.000000e+00> : vector<16x32xf32>
    %198 = tpu.matmul %195, %197, %cst_102 {dimension_numbers = #tpu.dot_dimension_numbers<[1], [0], [0], [1], [0, 0, 1, 1], [], []>} : vector<16x32xf32>, vector<32x32xf32>, vector<16x32xf32> -> vector<16x32xf32>
    %c1_103 = arith.constant 1 : index
    %c0_104 = arith.constant 0 : index
    %199 = vector.load %arg14[%c1_103, %c0_104] : memref<8x32xf32, #tpu.memory_space<vmem>>, vector<1x32xf32>
    %cst_105 = arith.constant 2.000000e+00 : f32
    %200 = vector.broadcast %cst_105 : f32 to vector<1x32xf32>
    %201 = arith.mulf %200, %199 : vector<1x32xf32>
    %202 = vector.broadcast %201 : vector<1x32xf32> to vector<16x32xf32>
    %203 = arith.addf %198, %202 : vector<16x32xf32>
    %204 = vector.broadcast %164 : vector<16x1xf32> to vector<16x32xf32>
    %205 = arith.mulf %203, %204 : vector<16x32xf32>
    %cst_106 = arith.constant 0.000000e+00 : f32
    %206 = vector.broadcast %cst_106 : f32 to vector<16x32xf32>
    %207 = arith.maximumf %205, %206 : vector<16x32xf32>
    %c1_107 = arith.constant 1 : index
    %c0_108 = arith.constant 0 : index
    %c0_109 = arith.constant 0 : index
    %208 = vector.load %arg10[%c1_107, %c0_108, %c0_109] : memref<8x32x32xf32, #tpu.memory_space<vmem>>, vector<1x32x32xf32>
    %209 = vector.shape_cast %208 : vector<1x32x32xf32> to vector<32x32xf32>
    %cst_110 = arith.constant dense<0.000000e+00> : vector<16x32xf32>
    %210 = tpu.matmul %207, %209, %cst_110 {dimension_numbers = #tpu.dot_dimension_numbers<[1], [0], [0], [1], [0, 0, 1, 1], [], []>} : vector<16x32xf32>, vector<32x32xf32>, vector<16x32xf32> -> vector<16x32xf32>
    %211 = arith.addf %187, %210 : vector<16x32xf32>
    %212 = vector.extract_strided_slice %157 {offsets = [16, 0], sizes = [16, 8], strides = [1, 1]} : vector<32x8xf32> to vector<16x8xf32>
    %213 = vector.extract_strided_slice %162 {offsets = [16, 0], sizes = [16, 1], strides = [1, 1]} : vector<32x1xf32> to vector<16x1xf32>
    %214 = vector.extract_strided_slice %212 {offsets = [0, 0], sizes = [8, 8], strides = [1, 1]} : vector<16x8xf32> to vector<8x8xf32>
    %215 = vector.extract_strided_slice %8 {offsets = [0, 0], sizes = [8, 32], strides = [1, 1]} : vector<16x32xf32> to vector<8x32xf32>
    %cst_111 = arith.constant dense<0.000000e+00> : vector<8x32xf32>
    %216 = tpu.matmul %214, %215, %cst_111 {dimension_numbers = #tpu.dot_dimension_numbers<[1], [0], [0], [1], [0, 0, 1, 1], [], []>} : vector<8x8xf32>, vector<8x32xf32>, vector<8x32xf32> -> vector<8x32xf32>
    %217 = vector.extract_strided_slice %212 {offsets = [8, 0], sizes = [8, 8], strides = [1, 1]} : vector<16x8xf32> to vector<8x8xf32>
    %218 = vector.extract_strided_slice %8 {offsets = [8, 0], sizes = [8, 32], strides = [1, 1]} : vector<16x32xf32> to vector<8x32xf32>
    %cst_112 = arith.constant dense<0.000000e+00> : vector<8x32xf32>
    %219 = tpu.matmul %217, %218, %cst_112 {dimension_numbers = #tpu.dot_dimension_numbers<[1], [0], [0], [1], [0, 0, 1, 1], [], []>} : vector<8x8xf32>, vector<8x32xf32>, vector<8x32xf32> -> vector<8x32xf32>
    %220 = tpu.concatenate %216, %219 in 0 : vector<8x32xf32>, vector<8x32xf32> -> vector<16x32xf32>
    %221 = arith.addf %220, %8 : vector<16x32xf32>
    %c2 = arith.constant 2 : index
    %c0_113 = arith.constant 0 : index
    %c0_114 = arith.constant 0 : index
    %222 = vector.load %arg9[%c2, %c0_113, %c0_114] : memref<8x32x32xf32, #tpu.memory_space<vmem>>, vector<1x32x32xf32>
    %223 = vector.shape_cast %222 : vector<1x32x32xf32> to vector<32x32xf32>
    %cst_115 = arith.constant dense<0.000000e+00> : vector<16x32xf32>
    %224 = tpu.matmul %221, %223, %cst_115 {dimension_numbers = #tpu.dot_dimension_numbers<[1], [0], [0], [1], [0, 0, 1, 1], [], []>} : vector<16x32xf32>, vector<32x32xf32>, vector<16x32xf32> -> vector<16x32xf32>
    %c2_116 = arith.constant 2 : index
    %c0_117 = arith.constant 0 : index
    %225 = vector.load %arg14[%c2_116, %c0_117] : memref<8x32xf32, #tpu.memory_space<vmem>>, vector<1x32xf32>
    %cst_118 = arith.constant 2.000000e+00 : f32
    %226 = vector.broadcast %cst_118 : f32 to vector<1x32xf32>
    %227 = arith.mulf %226, %225 : vector<1x32xf32>
    %228 = vector.broadcast %227 : vector<1x32xf32> to vector<16x32xf32>
    %229 = arith.addf %224, %228 : vector<16x32xf32>
    %230 = vector.broadcast %213 : vector<16x1xf32> to vector<16x32xf32>
    %231 = arith.mulf %229, %230 : vector<16x32xf32>
    %cst_119 = arith.constant 0.000000e+00 : f32
    %232 = vector.broadcast %cst_119 : f32 to vector<16x32xf32>
    %233 = arith.maximumf %231, %232 : vector<16x32xf32>
    %c2_120 = arith.constant 2 : index
    %c0_121 = arith.constant 0 : index
    %c0_122 = arith.constant 0 : index
    %234 = vector.load %arg10[%c2_120, %c0_121, %c0_122] : memref<8x32x32xf32, #tpu.memory_space<vmem>>, vector<1x32x32xf32>
    %235 = vector.shape_cast %234 : vector<1x32x32xf32> to vector<32x32xf32>
    %cst_123 = arith.constant dense<0.000000e+00> : vector<16x32xf32>
    %236 = tpu.matmul %233, %235, %cst_123 {dimension_numbers = #tpu.dot_dimension_numbers<[1], [0], [0], [1], [0, 0, 1, 1], [], []>} : vector<16x32xf32>, vector<32x32xf32>, vector<16x32xf32> -> vector<16x32xf32>
    %237 = arith.addf %211, %236 : vector<16x32xf32>
    %238 = vector.extract_strided_slice %212 {offsets = [0, 0], sizes = [8, 8], strides = [1, 1]} : vector<16x8xf32> to vector<8x8xf32>
    %239 = vector.extract_strided_slice %233 {offsets = [0, 0], sizes = [8, 32], strides = [1, 1]} : vector<16x32xf32> to vector<8x32xf32>
    %cst_124 = arith.constant dense<0.000000e+00> : vector<8x32xf32>
    %240 = tpu.matmul %238, %239, %cst_124 {dimension_numbers = #tpu.dot_dimension_numbers<[1], [0], [0], [1], [0, 0, 1, 1], [], []>} : vector<8x8xf32>, vector<8x32xf32>, vector<8x32xf32> -> vector<8x32xf32>
    %241 = vector.extract_strided_slice %212 {offsets = [8, 0], sizes = [8, 8], strides = [1, 1]} : vector<16x8xf32> to vector<8x8xf32>
    %242 = vector.extract_strided_slice %233 {offsets = [8, 0], sizes = [8, 32], strides = [1, 1]} : vector<16x32xf32> to vector<8x32xf32>
    %cst_125 = arith.constant dense<0.000000e+00> : vector<8x32xf32>
    %243 = tpu.matmul %241, %242, %cst_125 {dimension_numbers = #tpu.dot_dimension_numbers<[1], [0], [0], [1], [0, 0, 1, 1], [], []>} : vector<8x8xf32>, vector<8x32xf32>, vector<8x32xf32> -> vector<8x32xf32>
    %244 = tpu.concatenate %240, %243 in 0 : vector<8x32xf32>, vector<8x32xf32> -> vector<16x32xf32>
    %245 = arith.addf %244, %233 : vector<16x32xf32>
    %c3 = arith.constant 3 : index
    %c0_126 = arith.constant 0 : index
    %c0_127 = arith.constant 0 : index
    %246 = vector.load %arg9[%c3, %c0_126, %c0_127] : memref<8x32x32xf32, #tpu.memory_space<vmem>>, vector<1x32x32xf32>
    %247 = vector.shape_cast %246 : vector<1x32x32xf32> to vector<32x32xf32>
    %cst_128 = arith.constant dense<0.000000e+00> : vector<16x32xf32>
    %248 = tpu.matmul %245, %247, %cst_128 {dimension_numbers = #tpu.dot_dimension_numbers<[1], [0], [0], [1], [0, 0, 1, 1], [], []>} : vector<16x32xf32>, vector<32x32xf32>, vector<16x32xf32> -> vector<16x32xf32>
    %c3_129 = arith.constant 3 : index
    %c0_130 = arith.constant 0 : index
    %249 = vector.load %arg14[%c3_129, %c0_130] : memref<8x32xf32, #tpu.memory_space<vmem>>, vector<1x32xf32>
    %cst_131 = arith.constant 2.000000e+00 : f32
    %250 = vector.broadcast %cst_131 : f32 to vector<1x32xf32>
    %251 = arith.mulf %250, %249 : vector<1x32xf32>
    %252 = vector.broadcast %251 : vector<1x32xf32> to vector<16x32xf32>
    %253 = arith.addf %248, %252 : vector<16x32xf32>
    %254 = vector.broadcast %213 : vector<16x1xf32> to vector<16x32xf32>
    %255 = arith.mulf %253, %254 : vector<16x32xf32>
    %cst_132 = arith.constant 0.000000e+00 : f32
    %256 = vector.broadcast %cst_132 : f32 to vector<16x32xf32>
    %257 = arith.maximumf %255, %256 : vector<16x32xf32>
    %c3_133 = arith.constant 3 : index
    %c0_134 = arith.constant 0 : index
    %c0_135 = arith.constant 0 : index
    %258 = vector.load %arg10[%c3_133, %c0_134, %c0_135] : memref<8x32x32xf32, #tpu.memory_space<vmem>>, vector<1x32x32xf32>
    %259 = vector.shape_cast %258 : vector<1x32x32xf32> to vector<32x32xf32>
    %cst_136 = arith.constant dense<0.000000e+00> : vector<16x32xf32>
    %260 = tpu.matmul %257, %259, %cst_136 {dimension_numbers = #tpu.dot_dimension_numbers<[1], [0], [0], [1], [0, 0, 1, 1], [], []>} : vector<16x32xf32>, vector<32x32xf32>, vector<16x32xf32> -> vector<16x32xf32>
    %261 = arith.addf %237, %260 : vector<16x32xf32>
    %262 = arith.addf %8, %261 : vector<16x32xf32>
    %c0_137 = arith.constant 0 : index
    %c0_138 = arith.constant 0 : index
    %263 = vector.load %arg15[%c0_137, %c0_138] : memref<2x32xf32, #tpu.memory_space<vmem>>, vector<1x32xf32>
    %264 = vector.broadcast %263 : vector<1x32xf32> to vector<16x32xf32>
    %265 = arith.addf %262, %264 : vector<16x32xf32>
    %c0_139 = arith.constant 0 : index
    %c0_140 = arith.constant 0 : index
    %c0_141 = arith.constant 0 : index
    %266 = vector.load %arg6[%c0_139, %c0_140, %c0_141] : memref<2x32x16xf32, #tpu.memory_space<vmem>>, vector<1x32x16xf32>
    %267 = vector.shape_cast %266 : vector<1x32x16xf32> to vector<32x16xf32>
    %cst_142 = arith.constant dense<0.000000e+00> : vector<16x16xf32>
    %268 = tpu.matmul %265, %267, %cst_142 {dimension_numbers = #tpu.dot_dimension_numbers<[1], [0], [0], [1], [0, 0, 1, 1], [], []>} : vector<16x32xf32>, vector<32x16xf32>, vector<16x16xf32> -> vector<16x16xf32>
    %269 = arith.addf %268, %15 : vector<16x16xf32>
    %c0_143 = arith.constant 0 : index
    %c0_144 = arith.constant 0 : index
    %c0_145 = arith.constant 0 : index
    %270 = vector.load %arg8[%c0_143, %c0_144, %c0_145] : memref<2x32x16xf32, #tpu.memory_space<vmem>>, vector<1x32x16xf32>
    %271 = vector.shape_cast %270 : vector<1x32x16xf32> to vector<32x16xf32>
    %cst_146 = arith.constant dense<0.000000e+00> : vector<16x16xf32>
    %272 = tpu.matmul %265, %271, %cst_146 {dimension_numbers = #tpu.dot_dimension_numbers<[1], [0], [0], [1], [0, 0, 1, 1], [], []>} : vector<16x32xf32>, vector<32x16xf32>, vector<16x16xf32> -> vector<16x16xf32>
    %c0_147 = arith.constant 0 : index
    %c0_148 = arith.constant 0 : index
    %273 = vector.load %arg13[%c0_147, %c0_148] : memref<2x16xf32, #tpu.memory_space<vmem>>, vector<1x16xf32>
    %274 = vector.broadcast %273 : vector<1x16xf32> to vector<16x16xf32>
    %275 = arith.addf %272, %274 : vector<16x16xf32>
    %276 = vector.extract_strided_slice %269 {offsets = [0, 0], sizes = [8, 16], strides = [1, 1]} : vector<16x16xf32> to vector<8x16xf32>
    %277 = vector.extract_strided_slice %275 {offsets = [0, 0], sizes = [8, 16], strides = [1, 1]} : vector<16x16xf32> to vector<8x16xf32>
    %cst_149 = arith.constant dense<0.000000e+00> : vector<8x8xf32>
    %278 = tpu.matmul %276, %277, %cst_149 {dimension_numbers = #tpu.dot_dimension_numbers<[1], [1], [0], [0], [0, 0, 1, 0], [], []>} : vector<8x16xf32>, vector<8x16xf32>, vector<8x8xf32> -> vector<8x8xf32>
    %279 = vector.extract_strided_slice %269 {offsets = [8, 0], sizes = [8, 16], strides = [1, 1]} : vector<16x16xf32> to vector<8x16xf32>
    %280 = vector.extract_strided_slice %275 {offsets = [8, 0], sizes = [8, 16], strides = [1, 1]} : vector<16x16xf32> to vector<8x16xf32>
    %cst_150 = arith.constant dense<0.000000e+00> : vector<8x8xf32>
    %281 = tpu.matmul %279, %280, %cst_150 {dimension_numbers = #tpu.dot_dimension_numbers<[1], [1], [0], [0], [0, 0, 1, 0], [], []>} : vector<8x16xf32>, vector<8x16xf32>, vector<8x8xf32> -> vector<8x8xf32>
    %c1_151 = arith.constant 1 : index
    %c0_152 = arith.constant 0 : index
    %c0_153 = arith.constant 0 : index
    %282 = vector.load %arg6[%c1_151, %c0_152, %c0_153] : memref<2x32x16xf32, #tpu.memory_space<vmem>>, vector<1x32x16xf32>
    %283 = vector.shape_cast %282 : vector<1x32x16xf32> to vector<32x16xf32>
    %cst_154 = arith.constant dense<0.000000e+00> : vector<16x16xf32>
    %284 = tpu.matmul %265, %283, %cst_154 {dimension_numbers = #tpu.dot_dimension_numbers<[1], [0], [0], [1], [0, 0, 1, 1], [], []>} : vector<16x32xf32>, vector<32x16xf32>, vector<16x16xf32> -> vector<16x16xf32>
    %285 = arith.addf %284, %21 : vector<16x16xf32>
    %c1_155 = arith.constant 1 : index
    %c0_156 = arith.constant 0 : index
    %c0_157 = arith.constant 0 : index
    %286 = vector.load %arg8[%c1_155, %c0_156, %c0_157] : memref<2x32x16xf32, #tpu.memory_space<vmem>>, vector<1x32x16xf32>
    %287 = vector.shape_cast %286 : vector<1x32x16xf32> to vector<32x16xf32>
    %cst_158 = arith.constant dense<0.000000e+00> : vector<16x16xf32>
    %288 = tpu.matmul %265, %287, %cst_158 {dimension_numbers = #tpu.dot_dimension_numbers<[1], [0], [0], [1], [0, 0, 1, 1], [], []>} : vector<16x32xf32>, vector<32x16xf32>, vector<16x16xf32> -> vector<16x16xf32>
    %c1_159 = arith.constant 1 : index
    %c0_160 = arith.constant 0 : index
    %289 = vector.load %arg13[%c1_159, %c0_160] : memref<2x16xf32, #tpu.memory_space<vmem>>, vector<1x16xf32>
    %290 = vector.broadcast %289 : vector<1x16xf32> to vector<16x16xf32>
    %291 = arith.addf %288, %290 : vector<16x16xf32>
    %292 = vector.extract_strided_slice %285 {offsets = [0, 0], sizes = [8, 16], strides = [1, 1]} : vector<16x16xf32> to vector<8x16xf32>
    %293 = vector.extract_strided_slice %291 {offsets = [0, 0], sizes = [8, 16], strides = [1, 1]} : vector<16x16xf32> to vector<8x16xf32>
    %cst_161 = arith.constant dense<0.000000e+00> : vector<8x8xf32>
    %294 = tpu.matmul %292, %293, %cst_161 {dimension_numbers = #tpu.dot_dimension_numbers<[1], [1], [0], [0], [0, 0, 1, 0], [], []>} : vector<8x16xf32>, vector<8x16xf32>, vector<8x8xf32> -> vector<8x8xf32>
    %295 = vector.extract_strided_slice %285 {offsets = [8, 0], sizes = [8, 16], strides = [1, 1]} : vector<16x16xf32> to vector<8x16xf32>
    %296 = vector.extract_strided_slice %291 {offsets = [8, 0], sizes = [8, 16], strides = [1, 1]} : vector<16x16xf32> to vector<8x16xf32>
    %cst_162 = arith.constant dense<0.000000e+00> : vector<8x8xf32>
    %297 = tpu.matmul %295, %296, %cst_162 {dimension_numbers = #tpu.dot_dimension_numbers<[1], [1], [0], [0], [0, 0, 1, 0], [], []>} : vector<8x16xf32>, vector<8x16xf32>, vector<8x8xf32> -> vector<8x8xf32>
    %298 = tpu.concatenate %278, %281, %294, %297 in 0 : vector<8x8xf32>, vector<8x8xf32>, vector<8x8xf32>, vector<8x8xf32> -> vector<32x8xf32>
    %cst_163 = arith.constant 0.000000e+00 : f32
    %299 = vector.broadcast %cst_163 : f32 to vector<32x8xf32>
    %300 = arith.select %70, %298, %299 : vector<32x8xi1>, vector<32x8xf32>
    %cst_164 = arith.constant dense<0.000000e+00> : vector<32xf32>
    %301 = vector.multi_reduction <add>, %300, %cst_164 [1] : vector<32x8xf32> to vector<32xf32>
    %302 = vector.shape_cast %301 : vector<32xf32> to vector<32x1xf32>
    %303 = arith.mulf %302, %75 : vector<32x1xf32>
    %304 = vector.broadcast %303 : vector<32x1xf32> to vector<32x8xf32>
    %305 = arith.subf %298, %304 : vector<32x8xf32>
    %306 = arith.mulf %305, %305 : vector<32x8xf32>
    %cst_165 = arith.constant 0.000000e+00 : f32
    %307 = vector.broadcast %cst_165 : f32 to vector<32x8xf32>
    %308 = arith.select %70, %306, %307 : vector<32x8xi1>, vector<32x8xf32>
    %cst_166 = arith.constant dense<0.000000e+00> : vector<32xf32>
    %309 = vector.multi_reduction <add>, %308, %cst_166 [1] : vector<32x8xf32> to vector<32xf32>
    %310 = vector.shape_cast %309 : vector<32xf32> to vector<32x1xf32>
    %311 = arith.mulf %310, %75 : vector<32x1xf32>
    %312 = math.rsqrt %311 : vector<32x1xf32>
    %313 = vector.broadcast %312 : vector<32x1xf32> to vector<32x8xf32>
    %314 = arith.mulf %305, %313 : vector<32x8xf32>
    %315 = arith.cmpf one, %314, %314 : vector<32x8xf32>
    %cst_167 = arith.constant 1.000000e+00 : f32
    %cst_168 = arith.constant 0.000000e+00 : f32
    %316 = vector.broadcast %cst_167 : f32 to vector<32x8xf32>
    %317 = vector.broadcast %cst_168 : f32 to vector<32x8xf32>
    %318 = arith.select %315, %316, %317 : vector<32x8xi1>, vector<32x8xf32>
    %319 = vector.shape_cast %318 : vector<32x8xf32> to vector<1x32x8xf32>
    %cst_169 = arith.constant dense<0xFF800000> : vector<1xf32>
    %320 = vector.multi_reduction <maximumf>, %319, %cst_169 [1, 2] : vector<1x32x8xf32> to vector<1xf32>
    %321 = vector.shape_cast %320 : vector<1xf32> to vector<1x1x1xf32>
    %322 = vector.extract %321[0, 0, 0] : f32 from vector<1x1x1xf32>
    %cst_170 = arith.constant 0.000000e+00 : f32
    %323 = arith.cmpf ogt, %322, %cst_170 : f32
    %324 = arith.select %323, %298, %314 : vector<32x8xf32>
    %cst_171 = arith.constant 0.000000e+00 : f32
    %325 = vector.broadcast %cst_171 : f32 to vector<32x8xf32>
    %326 = arith.cmpf olt, %324, %325 : vector<32x8xf32>
    %327 = arith.ori %326, %74 : vector<32x8xi1>
    %cst_172 = arith.constant -1.000000e+09 : f32
    %328 = vector.broadcast %cst_172 : f32 to vector<32x8xf32>
    %329 = arith.select %327, %328, %324 : vector<32x8xi1>, vector<32x8xf32>
    %cst_173 = arith.constant dense<0xFF800000> : vector<32xf32>
    %330 = vector.multi_reduction <maximumf>, %329, %cst_173 [1] : vector<32x8xf32> to vector<32xf32>
    %331 = vector.shape_cast %330 : vector<32xf32> to vector<32x1xf32>
    %332 = vector.broadcast %331 : vector<32x1xf32> to vector<32x8xf32>
    %333 = arith.subf %329, %332 : vector<32x8xf32>
    %334 = math.exp %333 : vector<32x8xf32>
    %cst_174 = arith.constant 0.000000e+00 : f32
    %335 = vector.broadcast %cst_174 : f32 to vector<32x8xf32>
    %336 = arith.select %73, %334, %335 : vector<32x8xi1>, vector<32x8xf32>
    %cst_175 = arith.constant 1.000000e-10 : f32
    %337 = vector.broadcast %cst_175 : f32 to vector<32x8xf32>
    %338 = arith.addf %336, %337 : vector<32x8xf32>
    %cst_176 = arith.constant dense<0.000000e+00> : vector<32xf32>
    %339 = vector.multi_reduction <add>, %338, %cst_176 [1] : vector<32x8xf32> to vector<32xf32>
    %340 = vector.shape_cast %339 : vector<32xf32> to vector<32x1xf32>
    %341 = tpu.reciprocal %340 {approx = true} : vector<32x1xf32> -> vector<32x1xf32>
    %342 = vector.broadcast %341 : vector<32x1xf32> to vector<32x8xf32>
    %343 = arith.mulf %338, %342 : vector<32x8xf32>
    %cst_177 = arith.constant dense<true> : vector<32x8xi1>
    %344 = arith.xori %326, %cst_177 : vector<32x8xi1>
    %345 = arith.andi %73, %344 : vector<32x8xi1>
    %cst_178 = arith.constant 0.000000e+00 : f32
    %346 = vector.broadcast %cst_178 : f32 to vector<32x8xf32>
    %347 = arith.select %345, %343, %346 : vector<32x8xi1>, vector<32x8xf32>
    %cst_179 = arith.constant dense<0.000000e+00> : vector<32xf32>
    %348 = vector.multi_reduction <add>, %347, %cst_179 [1] : vector<32x8xf32> to vector<32xf32>
    %349 = vector.shape_cast %348 : vector<32xf32> to vector<32x1xf32>
    %cst_180 = arith.constant 1.000000e+00 : f32
    %350 = vector.broadcast %cst_180 : f32 to vector<32x1xf32>
    %351 = arith.addf %349, %350 : vector<32x1xf32>
    %352 = tpu.reciprocal %351 {approx = true} : vector<32x1xf32> -> vector<32x1xf32>
    %353 = vector.extract_strided_slice %347 {offsets = [0, 0], sizes = [16, 8], strides = [1, 1]} : vector<32x8xf32> to vector<16x8xf32>
    %354 = vector.extract_strided_slice %352 {offsets = [0, 0], sizes = [16, 1], strides = [1, 1]} : vector<32x1xf32> to vector<16x1xf32>
    %355 = vector.extract_strided_slice %353 {offsets = [0, 0], sizes = [8, 8], strides = [1, 1]} : vector<16x8xf32> to vector<8x8xf32>
    %356 = vector.extract_strided_slice %265 {offsets = [0, 0], sizes = [8, 32], strides = [1, 1]} : vector<16x32xf32> to vector<8x32xf32>
    %cst_181 = arith.constant dense<0.000000e+00> : vector<8x32xf32>
    %357 = tpu.matmul %355, %356, %cst_181 {dimension_numbers = #tpu.dot_dimension_numbers<[1], [0], [0], [1], [0, 0, 1, 1], [], []>} : vector<8x8xf32>, vector<8x32xf32>, vector<8x32xf32> -> vector<8x32xf32>
    %358 = vector.extract_strided_slice %353 {offsets = [8, 0], sizes = [8, 8], strides = [1, 1]} : vector<16x8xf32> to vector<8x8xf32>
    %359 = vector.extract_strided_slice %265 {offsets = [8, 0], sizes = [8, 32], strides = [1, 1]} : vector<16x32xf32> to vector<8x32xf32>
    %cst_182 = arith.constant dense<0.000000e+00> : vector<8x32xf32>
    %360 = tpu.matmul %358, %359, %cst_182 {dimension_numbers = #tpu.dot_dimension_numbers<[1], [0], [0], [1], [0, 0, 1, 1], [], []>} : vector<8x8xf32>, vector<8x32xf32>, vector<8x32xf32> -> vector<8x32xf32>
    %361 = tpu.concatenate %357, %360 in 0 : vector<8x32xf32>, vector<8x32xf32> -> vector<16x32xf32>
    %362 = arith.addf %361, %265 : vector<16x32xf32>
    %c4 = arith.constant 4 : index
    %c0_183 = arith.constant 0 : index
    %c0_184 = arith.constant 0 : index
    %363 = vector.load %arg9[%c4, %c0_183, %c0_184] : memref<8x32x32xf32, #tpu.memory_space<vmem>>, vector<1x32x32xf32>
    %364 = vector.shape_cast %363 : vector<1x32x32xf32> to vector<32x32xf32>
    %cst_185 = arith.constant dense<0.000000e+00> : vector<16x32xf32>
    %365 = tpu.matmul %362, %364, %cst_185 {dimension_numbers = #tpu.dot_dimension_numbers<[1], [0], [0], [1], [0, 0, 1, 1], [], []>} : vector<16x32xf32>, vector<32x32xf32>, vector<16x32xf32> -> vector<16x32xf32>
    %c4_186 = arith.constant 4 : index
    %c0_187 = arith.constant 0 : index
    %366 = vector.load %arg14[%c4_186, %c0_187] : memref<8x32xf32, #tpu.memory_space<vmem>>, vector<1x32xf32>
    %cst_188 = arith.constant 2.000000e+00 : f32
    %367 = vector.broadcast %cst_188 : f32 to vector<1x32xf32>
    %368 = arith.mulf %367, %366 : vector<1x32xf32>
    %369 = vector.broadcast %368 : vector<1x32xf32> to vector<16x32xf32>
    %370 = arith.addf %365, %369 : vector<16x32xf32>
    %371 = vector.broadcast %354 : vector<16x1xf32> to vector<16x32xf32>
    %372 = arith.mulf %370, %371 : vector<16x32xf32>
    %cst_189 = arith.constant 0.000000e+00 : f32
    %373 = vector.broadcast %cst_189 : f32 to vector<16x32xf32>
    %374 = arith.maximumf %372, %373 : vector<16x32xf32>
    %c4_190 = arith.constant 4 : index
    %c0_191 = arith.constant 0 : index
    %c0_192 = arith.constant 0 : index
    %375 = vector.load %arg10[%c4_190, %c0_191, %c0_192] : memref<8x32x32xf32, #tpu.memory_space<vmem>>, vector<1x32x32xf32>
    %376 = vector.shape_cast %375 : vector<1x32x32xf32> to vector<32x32xf32>
    %cst_193 = arith.constant dense<0.000000e+00> : vector<16x32xf32>
    %377 = tpu.matmul %374, %376, %cst_193 {dimension_numbers = #tpu.dot_dimension_numbers<[1], [0], [0], [1], [0, 0, 1, 1], [], []>} : vector<16x32xf32>, vector<32x32xf32>, vector<16x32xf32> -> vector<16x32xf32>
    %378 = vector.extract_strided_slice %353 {offsets = [0, 0], sizes = [8, 8], strides = [1, 1]} : vector<16x8xf32> to vector<8x8xf32>
    %379 = vector.extract_strided_slice %374 {offsets = [0, 0], sizes = [8, 32], strides = [1, 1]} : vector<16x32xf32> to vector<8x32xf32>
    %cst_194 = arith.constant dense<0.000000e+00> : vector<8x32xf32>
    %380 = tpu.matmul %378, %379, %cst_194 {dimension_numbers = #tpu.dot_dimension_numbers<[1], [0], [0], [1], [0, 0, 1, 1], [], []>} : vector<8x8xf32>, vector<8x32xf32>, vector<8x32xf32> -> vector<8x32xf32>
    %381 = vector.extract_strided_slice %353 {offsets = [8, 0], sizes = [8, 8], strides = [1, 1]} : vector<16x8xf32> to vector<8x8xf32>
    %382 = vector.extract_strided_slice %374 {offsets = [8, 0], sizes = [8, 32], strides = [1, 1]} : vector<16x32xf32> to vector<8x32xf32>
    %cst_195 = arith.constant dense<0.000000e+00> : vector<8x32xf32>
    %383 = tpu.matmul %381, %382, %cst_195 {dimension_numbers = #tpu.dot_dimension_numbers<[1], [0], [0], [1], [0, 0, 1, 1], [], []>} : vector<8x8xf32>, vector<8x32xf32>, vector<8x32xf32> -> vector<8x32xf32>
    %384 = tpu.concatenate %380, %383 in 0 : vector<8x32xf32>, vector<8x32xf32> -> vector<16x32xf32>
    %385 = arith.addf %384, %374 : vector<16x32xf32>
    %c5 = arith.constant 5 : index
    %c0_196 = arith.constant 0 : index
    %c0_197 = arith.constant 0 : index
    %386 = vector.load %arg9[%c5, %c0_196, %c0_197] : memref<8x32x32xf32, #tpu.memory_space<vmem>>, vector<1x32x32xf32>
    %387 = vector.shape_cast %386 : vector<1x32x32xf32> to vector<32x32xf32>
    %cst_198 = arith.constant dense<0.000000e+00> : vector<16x32xf32>
    %388 = tpu.matmul %385, %387, %cst_198 {dimension_numbers = #tpu.dot_dimension_numbers<[1], [0], [0], [1], [0, 0, 1, 1], [], []>} : vector<16x32xf32>, vector<32x32xf32>, vector<16x32xf32> -> vector<16x32xf32>
    %c5_199 = arith.constant 5 : index
    %c0_200 = arith.constant 0 : index
    %389 = vector.load %arg14[%c5_199, %c0_200] : memref<8x32xf32, #tpu.memory_space<vmem>>, vector<1x32xf32>
    %cst_201 = arith.constant 2.000000e+00 : f32
    %390 = vector.broadcast %cst_201 : f32 to vector<1x32xf32>
    %391 = arith.mulf %390, %389 : vector<1x32xf32>
    %392 = vector.broadcast %391 : vector<1x32xf32> to vector<16x32xf32>
    %393 = arith.addf %388, %392 : vector<16x32xf32>
    %394 = vector.broadcast %354 : vector<16x1xf32> to vector<16x32xf32>
    %395 = arith.mulf %393, %394 : vector<16x32xf32>
    %cst_202 = arith.constant 0.000000e+00 : f32
    %396 = vector.broadcast %cst_202 : f32 to vector<16x32xf32>
    %397 = arith.maximumf %395, %396 : vector<16x32xf32>
    %c5_203 = arith.constant 5 : index
    %c0_204 = arith.constant 0 : index
    %c0_205 = arith.constant 0 : index
    %398 = vector.load %arg10[%c5_203, %c0_204, %c0_205] : memref<8x32x32xf32, #tpu.memory_space<vmem>>, vector<1x32x32xf32>
    %399 = vector.shape_cast %398 : vector<1x32x32xf32> to vector<32x32xf32>
    %cst_206 = arith.constant dense<0.000000e+00> : vector<16x32xf32>
    %400 = tpu.matmul %397, %399, %cst_206 {dimension_numbers = #tpu.dot_dimension_numbers<[1], [0], [0], [1], [0, 0, 1, 1], [], []>} : vector<16x32xf32>, vector<32x32xf32>, vector<16x32xf32> -> vector<16x32xf32>
    %401 = arith.addf %377, %400 : vector<16x32xf32>
    %402 = vector.extract_strided_slice %347 {offsets = [16, 0], sizes = [16, 8], strides = [1, 1]} : vector<32x8xf32> to vector<16x8xf32>
    %403 = vector.extract_strided_slice %352 {offsets = [16, 0], sizes = [16, 1], strides = [1, 1]} : vector<32x1xf32> to vector<16x1xf32>
    %404 = vector.extract_strided_slice %402 {offsets = [0, 0], sizes = [8, 8], strides = [1, 1]} : vector<16x8xf32> to vector<8x8xf32>
    %405 = vector.extract_strided_slice %265 {offsets = [0, 0], sizes = [8, 32], strides = [1, 1]} : vector<16x32xf32> to vector<8x32xf32>
    %cst_207 = arith.constant dense<0.000000e+00> : vector<8x32xf32>
    %406 = tpu.matmul %404, %405, %cst_207 {dimension_numbers = #tpu.dot_dimension_numbers<[1], [0], [0], [1], [0, 0, 1, 1], [], []>} : vector<8x8xf32>, vector<8x32xf32>, vector<8x32xf32> -> vector<8x32xf32>
    %407 = vector.extract_strided_slice %402 {offsets = [8, 0], sizes = [8, 8], strides = [1, 1]} : vector<16x8xf32> to vector<8x8xf32>
    %408 = vector.extract_strided_slice %265 {offsets = [8, 0], sizes = [8, 32], strides = [1, 1]} : vector<16x32xf32> to vector<8x32xf32>
    %cst_208 = arith.constant dense<0.000000e+00> : vector<8x32xf32>
    %409 = tpu.matmul %407, %408, %cst_208 {dimension_numbers = #tpu.dot_dimension_numbers<[1], [0], [0], [1], [0, 0, 1, 1], [], []>} : vector<8x8xf32>, vector<8x32xf32>, vector<8x32xf32> -> vector<8x32xf32>
    %410 = tpu.concatenate %406, %409 in 0 : vector<8x32xf32>, vector<8x32xf32> -> vector<16x32xf32>
    %411 = arith.addf %410, %265 : vector<16x32xf32>
    %c6 = arith.constant 6 : index
    %c0_209 = arith.constant 0 : index
    %c0_210 = arith.constant 0 : index
    %412 = vector.load %arg9[%c6, %c0_209, %c0_210] : memref<8x32x32xf32, #tpu.memory_space<vmem>>, vector<1x32x32xf32>
    %413 = vector.shape_cast %412 : vector<1x32x32xf32> to vector<32x32xf32>
    %cst_211 = arith.constant dense<0.000000e+00> : vector<16x32xf32>
    %414 = tpu.matmul %411, %413, %cst_211 {dimension_numbers = #tpu.dot_dimension_numbers<[1], [0], [0], [1], [0, 0, 1, 1], [], []>} : vector<16x32xf32>, vector<32x32xf32>, vector<16x32xf32> -> vector<16x32xf32>
    %c6_212 = arith.constant 6 : index
    %c0_213 = arith.constant 0 : index
    %415 = vector.load %arg14[%c6_212, %c0_213] : memref<8x32xf32, #tpu.memory_space<vmem>>, vector<1x32xf32>
    %cst_214 = arith.constant 2.000000e+00 : f32
    %416 = vector.broadcast %cst_214 : f32 to vector<1x32xf32>
    %417 = arith.mulf %416, %415 : vector<1x32xf32>
    %418 = vector.broadcast %417 : vector<1x32xf32> to vector<16x32xf32>
    %419 = arith.addf %414, %418 : vector<16x32xf32>
    %420 = vector.broadcast %403 : vector<16x1xf32> to vector<16x32xf32>
    %421 = arith.mulf %419, %420 : vector<16x32xf32>
    %cst_215 = arith.constant 0.000000e+00 : f32
    %422 = vector.broadcast %cst_215 : f32 to vector<16x32xf32>
    %423 = arith.maximumf %421, %422 : vector<16x32xf32>
    %c6_216 = arith.constant 6 : index
    %c0_217 = arith.constant 0 : index
    %c0_218 = arith.constant 0 : index
    %424 = vector.load %arg10[%c6_216, %c0_217, %c0_218] : memref<8x32x32xf32, #tpu.memory_space<vmem>>, vector<1x32x32xf32>
    %425 = vector.shape_cast %424 : vector<1x32x32xf32> to vector<32x32xf32>
    %cst_219 = arith.constant dense<0.000000e+00> : vector<16x32xf32>
    %426 = tpu.matmul %423, %425, %cst_219 {dimension_numbers = #tpu.dot_dimension_numbers<[1], [0], [0], [1], [0, 0, 1, 1], [], []>} : vector<16x32xf32>, vector<32x32xf32>, vector<16x32xf32> -> vector<16x32xf32>
    %427 = arith.addf %401, %426 : vector<16x32xf32>
    %428 = vector.extract_strided_slice %402 {offsets = [0, 0], sizes = [8, 8], strides = [1, 1]} : vector<16x8xf32> to vector<8x8xf32>
    %429 = vector.extract_strided_slice %423 {offsets = [0, 0], sizes = [8, 32], strides = [1, 1]} : vector<16x32xf32> to vector<8x32xf32>
    %cst_220 = arith.constant dense<0.000000e+00> : vector<8x32xf32>
    %430 = tpu.matmul %428, %429, %cst_220 {dimension_numbers = #tpu.dot_dimension_numbers<[1], [0], [0], [1], [0, 0, 1, 1], [], []>} : vector<8x8xf32>, vector<8x32xf32>, vector<8x32xf32> -> vector<8x32xf32>
    %431 = vector.extract_strided_slice %402 {offsets = [8, 0], sizes = [8, 8], strides = [1, 1]} : vector<16x8xf32> to vector<8x8xf32>
    %432 = vector.extract_strided_slice %423 {offsets = [8, 0], sizes = [8, 32], strides = [1, 1]} : vector<16x32xf32> to vector<8x32xf32>
    %cst_221 = arith.constant dense<0.000000e+00> : vector<8x32xf32>
    %433 = tpu.matmul %431, %432, %cst_221 {dimension_numbers = #tpu.dot_dimension_numbers<[1], [0], [0], [1], [0, 0, 1, 1], [], []>} : vector<8x8xf32>, vector<8x32xf32>, vector<8x32xf32> -> vector<8x32xf32>
    %434 = tpu.concatenate %430, %433 in 0 : vector<8x32xf32>, vector<8x32xf32> -> vector<16x32xf32>
    %435 = arith.addf %434, %423 : vector<16x32xf32>
    %c7 = arith.constant 7 : index
    %c0_222 = arith.constant 0 : index
    %c0_223 = arith.constant 0 : index
    %436 = vector.load %arg9[%c7, %c0_222, %c0_223] : memref<8x32x32xf32, #tpu.memory_space<vmem>>, vector<1x32x32xf32>
    %437 = vector.shape_cast %436 : vector<1x32x32xf32> to vector<32x32xf32>
    %cst_224 = arith.constant dense<0.000000e+00> : vector<16x32xf32>
    %438 = tpu.matmul %435, %437, %cst_224 {dimension_numbers = #tpu.dot_dimension_numbers<[1], [0], [0], [1], [0, 0, 1, 1], [], []>} : vector<16x32xf32>, vector<32x32xf32>, vector<16x32xf32> -> vector<16x32xf32>
    %c7_225 = arith.constant 7 : index
    %c0_226 = arith.constant 0 : index
    %439 = vector.load %arg14[%c7_225, %c0_226] : memref<8x32xf32, #tpu.memory_space<vmem>>, vector<1x32xf32>
    %cst_227 = arith.constant 2.000000e+00 : f32
    %440 = vector.broadcast %cst_227 : f32 to vector<1x32xf32>
    %441 = arith.mulf %440, %439 : vector<1x32xf32>
    %442 = vector.broadcast %441 : vector<1x32xf32> to vector<16x32xf32>
    %443 = arith.addf %438, %442 : vector<16x32xf32>
    %444 = vector.broadcast %403 : vector<16x1xf32> to vector<16x32xf32>
    %445 = arith.mulf %443, %444 : vector<16x32xf32>
    %cst_228 = arith.constant 0.000000e+00 : f32
    %446 = vector.broadcast %cst_228 : f32 to vector<16x32xf32>
    %447 = arith.maximumf %445, %446 : vector<16x32xf32>
    %c7_229 = arith.constant 7 : index
    %c0_230 = arith.constant 0 : index
    %c0_231 = arith.constant 0 : index
    %448 = vector.load %arg10[%c7_229, %c0_230, %c0_231] : memref<8x32x32xf32, #tpu.memory_space<vmem>>, vector<1x32x32xf32>
    %449 = vector.shape_cast %448 : vector<1x32x32xf32> to vector<32x32xf32>
    %cst_232 = arith.constant dense<0.000000e+00> : vector<16x32xf32>
    %450 = tpu.matmul %447, %449, %cst_232 {dimension_numbers = #tpu.dot_dimension_numbers<[1], [0], [0], [1], [0, 0, 1, 1], [], []>} : vector<16x32xf32>, vector<32x32xf32>, vector<16x32xf32> -> vector<16x32xf32>
    %451 = arith.addf %427, %450 : vector<16x32xf32>
    %452 = arith.addf %265, %451 : vector<16x32xf32>
    %c1_233 = arith.constant 1 : index
    %c0_234 = arith.constant 0 : index
    %453 = vector.load %arg15[%c1_233, %c0_234] : memref<2x32xf32, #tpu.memory_space<vmem>>, vector<1x32xf32>
    %454 = vector.broadcast %453 : vector<1x32xf32> to vector<16x32xf32>
    %455 = arith.addf %452, %454 : vector<16x32xf32>
    %c0_235 = arith.constant 0 : index
    %c0_236 = arith.constant 0 : index
    %456 = vector.load %arg16[%c0_235, %c0_236] : memref<16x32xf32, #tpu.memory_space<vmem>>, vector<16x32xf32>
    tpu.vector_store %arg16[%c0_235, %c0_236], %455 {strides = array<i32>} : memref<16x32xf32, #tpu.memory_space<vmem>>, vector<16x32xf32>,
    return
  }
  func.func @transform_0(%arg0: i32) -> (i32, i32) {
    %c0_i32 = arith.constant 0 : i32
    %c0_i32_0 = arith.constant 0 : i32
    %c0_i32_1 = arith.constant 0 : i32
    return %c0_i32, %c0_i32_0 : i32, i32
  }
  func.func @transform_1(%arg0: i32) -> (i32, i32) {
    %c0_i32 = arith.constant 0 : i32
    %c0_i32_0 = arith.constant 0 : i32
    %c0_i32_1 = arith.constant 0 : i32
    return %c0_i32, %c0_i32_0 : i32, i32
  }
  func.func @transform_2(%arg0: i32) -> (i32, i32) {
    %c0_i32 = arith.constant 0 : i32
    %c0_i32_0 = arith.constant 0 : i32
    %c0_i32_1 = arith.constant 0 : i32
    return %c0_i32, %c0_i32_0 : i32, i32
  }
  func.func @transform_3(%arg0: i32) -> (i32, i32) {
    %c0_i32 = arith.constant 0 : i32
    %c0_i32_0 = arith.constant 0 : i32
    %c0_i32_1 = arith.constant 0 : i32
    return %c0_i32, %c0_i32_0 : i32, i32
  }
  func.func @transform_4(%arg0: i32) -> (i32, i32) {
    %c0_i32 = arith.constant 0 : i32
    %c0_i32_0 = arith.constant 0 : i32
    %c0_i32_1 = arith.constant 0 : i32
    return %c0_i32, %c0_i32_0 : i32, i32
  }
  func.func @transform_5(%arg0: i32) -> (i32, i32, i32) {
    %c0_i32 = arith.constant 0 : i32
    %c0_i32_0 = arith.constant 0 : i32
    %c0_i32_1 = arith.constant 0 : i32
    %c0_i32_2 = arith.constant 0 : i32
    return %c0_i32, %c0_i32_0, %c0_i32_1 : i32, i32, i32
  }
  func.func @transform_6(%arg0: i32) -> (i32, i32, i32) {
    %c0_i32 = arith.constant 0 : i32
    %c0_i32_0 = arith.constant 0 : i32
    %c0_i32_1 = arith.constant 0 : i32
    %c0_i32_2 = arith.constant 0 : i32
    return %c0_i32, %c0_i32_0, %c0_i32_1 : i32, i32, i32
  }
  func.func @transform_7(%arg0: i32) -> (i32, i32, i32) {
    %c0_i32 = arith.constant 0 : i32
    %c0_i32_0 = arith.constant 0 : i32
    %c0_i32_1 = arith.constant 0 : i32
    %c0_i32_2 = arith.constant 0 : i32
    return %c0_i32, %c0_i32_0, %c0_i32_1 : i32, i32, i32
  }
  func.func @transform_8(%arg0: i32) -> (i32, i32, i32) {
    %c0_i32 = arith.constant 0 : i32
    %c0_i32_0 = arith.constant 0 : i32
    %c0_i32_1 = arith.constant 0 : i32
    %c0_i32_2 = arith.constant 0 : i32
    return %c0_i32, %c0_i32_0, %c0_i32_1 : i32, i32, i32
  }
  func.func @transform_9(%arg0: i32) -> (i32, i32, i32) {
    %c0_i32 = arith.constant 0 : i32
    %c0_i32_0 = arith.constant 0 : i32
    %c0_i32_1 = arith.constant 0 : i32
    %c0_i32_2 = arith.constant 0 : i32
    return %c0_i32, %c0_i32_0, %c0_i32_1 : i32, i32, i32
  }
  func.func @transform_10(%arg0: i32) -> (i32, i32) {
    %c0_i32 = arith.constant 0 : i32
    %c0_i32_0 = arith.constant 0 : i32
    %c0_i32_1 = arith.constant 0 : i32
    return %c0_i32, %c0_i32_0 : i32, i32
  }
  func.func @transform_11(%arg0: i32) -> (i32, i32) {
    %c0_i32 = arith.constant 0 : i32
    %c0_i32_0 = arith.constant 0 : i32
    %c0_i32_1 = arith.constant 0 : i32
    return %c0_i32, %c0_i32_0 : i32, i32
  }
  func.func @transform_12(%arg0: i32) -> (i32, i32) {
    %c0_i32 = arith.constant 0 : i32
    %c0_i32_0 = arith.constant 0 : i32
    %c0_i32_1 = arith.constant 0 : i32
    return %c0_i32, %c0_i32_0 : i32, i32
  }
  func.func @transform_13(%arg0: i32) -> (i32, i32) {
    %c0_i32 = arith.constant 0 : i32
    %c0_i32_0 = arith.constant 0 : i32
    %c0_i32_1 = arith.constant 0 : i32
    return %c0_i32, %c0_i32_0 : i32, i32
  }
  func.func @transform_14(%arg0: i32) -> (i32, i32) {
    %c0_i32 = arith.constant 0 : i32
    %c0_i32_0 = arith.constant 0 : i32
    %c0_i32_1 = arith.constant 0 : i32
    return %c0_i32, %c0_i32_0 : i32, i32
  }
  func.func @transform_15(%arg0: i32) -> (i32, i32) {
    %c0_i32 = arith.constant 0 : i32
    %c0_i32_0 = arith.constant 0 : i32
    %c0_i32_1 = arith.constant 0 : i32
    return %c0_i32, %c0_i32_0 : i32, i32
  }
  func.func @transform_16(%arg0: i32) -> (i32, i32) {
    %c0_i32 = arith.constant 0 : i32
    %c0_i32_0 = arith.constant 0 : i32
    %c0_i32_1 = arith.constant 0 : i32
    return %c0_i32, %c0_i32_0 : i32, i32
  }
}

</mosaic_0001>

<llo_original>
// kernel: tpu_custom_call.1
$region0: #{tpu_custom_call.1}
  #allocation0 [shape = 'u32[]', space=smem, size = 0x4, offset = 0x4, fixed_abs, tag = 'smem constant byte address 0x4 - core index']
  #allocation1 [shape = 'u32[72,128]{1,0:T(1,128)}', space=vmem, size = 0x9000, scoped, tag = 'internal scratch']
  %s0 = inlined_call_operand.vmem [shape: f32[16,32], index: 0, kind: input, shape index: {}]
  %s1 = inlined_call_operand.vmem [shape: f32[16,32], index: 1, kind: input, shape index: {}]
  %s2 = inlined_call_operand.vmem [shape: f32[16,4], index: 2, kind: input, shape index: {}]
  %s3 = inlined_call_operand.vmem [shape: f32[2,8], index: 3, kind: input, shape index: {}]
  %s4 = inlined_call_operand.vmem [shape: f32[32,32], index: 4, kind: input, shape index: {}]
  %s5 = inlined_call_operand.vmem [shape: f32[2,32,16], index: 5, kind: input, shape index: {}]
  %s6 = inlined_call_operand.vmem [shape: f32[2,32,16], index: 6, kind: input, shape index: {}]
  %s7 = inlined_call_operand.vmem [shape: f32[2,32,16], index: 7, kind: input, shape index: {}]
  %s8 = inlined_call_operand.hbm [shape: f32[8,32,32], index: 8, kind: input, shape index: {}]
  %s9 = inlined_call_operand.hbm [shape: f32[8,32,32], index: 9, kind: input, shape index: {}]
  %s10 = inlined_call_operand.vmem [shape: f32[1,32], index: 10, kind: input, shape index: {}]
  %s11 = inlined_call_operand.vmem [shape: f32[2,16], index: 11, kind: input, shape index: {}]
  %s12 = inlined_call_operand.vmem [shape: f32[2,16], index: 12, kind: input, shape index: {}]
  %s13 = inlined_call_operand.vmem [shape: f32[8,32], index: 13, kind: input, shape index: {}]
  %s14 = inlined_call_operand.vmem [shape: f32[2,32], index: 14, kind: input, shape index: {}]
  %s15 = inlined_call_operand.hbm [shape: f32[16,32], index: 15, kind: output, shape index: {0}]
  %s16 = inlined_call_operand.hbm [shape: f32[16,32], index: 16, kind: output, shape index: {1}]
  %17 = xla_tuple %s15, %s16
  %s18 = sld [smem:[#allocation0]]
  $region86: #{tpu_custom_call.1} parent=0
    _
  %s20 = ssub.s32 1, %s18
  %s21 = scalar_select 0, %s20, %s18
  $region1: #{tpu_custom_call.1} parent=0
    #allocation2 [shape = 'u8[131072]{0}', space=vmem, size = 0x20000, scoped, tag = 'input window, operand 8, single buffered']
    #allocation3 [shape = 's32[1]{0}', space=sflag, size = 0x4, scoped, tag = 'scoped memory for tpu_custom_call.1']
    #allocation4 [shape = 's32[1]{0}', space=sflag, size = 0x4, scoped, tag = 'scoped memory for tpu_custom_call.1']
    #allocation5 [shape = 'u8[131072]{0}', space=vmem, size = 0x20000, scoped, tag = 'input window, operand 9, single buffered']
    #allocation6 [shape = 's32[1]{0}', space=sflag, size = 0x4, scoped, tag = 'scoped memory for tpu_custom_call.1']
    #allocation7 [shape = 'u8[8192]{0}', space=vmem, size = 0x2000, scoped, tag = 'output window, operand 0, single buffered']
    #allocation8 [shape = 'u8[8192]{0}', space=vmem, size = 0x2000, scoped, tag = 'output window, operand 1, single buffered']
    #allocation9 [shape = 's32[1]{0}', space=sflag, size = 0x4, scoped, tag = 'scoped memory for tpu_custom_call.1']
    %22 = vsyncpa [#allocation3], 0
    %23 = vsyncpa [#allocation6], 0
    %24 = vsyncpa [#allocation4], 0
    %25 = vsyncpa [#allocation9], 0
    // Predicated region
    $region2: #{tpu_custom_call.1} parent=1 // pred_check
      _
    $region3: #{tpu_custom_call.1} parent=1 // pred_check_branch
      %27 = sbr.rel (0) target = $region5
    $region4: #{tpu_custom_call.1} parent=1 // pred_region
      _
    $region5: #{tpu_custom_call.1} parent=1 // pred_fallthru
      _
    // Predicated region
    $region6: #{tpu_custom_call.1} parent=1 // pred_check
      _
    $region7: #{tpu_custom_call.1} parent=1 // pred_check_branch
      %29 = sbr.rel (0) target = $region9
    $region8: #{tpu_custom_call.1} parent=1 // pred_region
      _
    $region9: #{tpu_custom_call.1} parent=1 // pred_fallthru
      _
    // Predicated region
    $region10: #{tpu_custom_call.1} parent=1 // pred_check
      _
    $region11: #{tpu_custom_call.1} parent=1 // pred_check_branch
      %31 = sbr.rel (0) target = $region13
    $region12: #{tpu_custom_call.1} parent=1 // pred_region
      _
    $region13: #{tpu_custom_call.1} parent=1 // pred_fallthru
      _
    // Predicated region
    $region14: #{tpu_custom_call.1} parent=1 // pred_check
      _
    $region15: #{tpu_custom_call.1} parent=1 // pred_check_branch
      %33 = sbr.rel (0) target = $region17
    $region16: #{tpu_custom_call.1} parent=1 // pred_region
      _
    $region17: #{tpu_custom_call.1} parent=1 // pred_fallthru
      _
    // Predicated region
    $region18: #{tpu_custom_call.1} parent=1 // pred_check
      _
    $region19: #{tpu_custom_call.1} parent=1 // pred_check_branch
      %35 = sbr.rel (0) target = $region21
    $region20: #{tpu_custom_call.1} parent=1 // pred_region
      _
    $region21: #{tpu_custom_call.1} parent=1 // pred_fallthru
      _
    // Predicated region
    $region22: #{tpu_custom_call.1} parent=1 // pred_check
      _
    $region23: #{tpu_custom_call.1} parent=1 // pred_check_branch
      %37 = sbr.rel (0) target = $region25
    $region24: #{tpu_custom_call.1} parent=1 // pred_region
      _
    $region25: #{tpu_custom_call.1} parent=1 // pred_fallthru
      _
    // Predicated region
    $region26: #{tpu_custom_call.1} parent=1 // pred_check
      _
    $region27: #{tpu_custom_call.1} parent=1 // pred_check_branch
      %39 = sbr.rel (0) target = $region29
    $region28: #{tpu_custom_call.1} parent=1 // pred_region
      _
    $region29: #{tpu_custom_call.1} parent=1 // pred_fallthru
      _
    // Predicated region
    $region30: #{tpu_custom_call.1} parent=1 // pred_check
      _
    $region31: #{tpu_custom_call.1} parent=1 // pred_check_branch
      %41 = sbr.rel (0) target = $region33
    $region32: #{tpu_custom_call.1} parent=1 // pred_region
      _
    $region33: #{tpu_custom_call.1} parent=1 // pred_fallthru
      _
    // Predicated region
    $region34: #{tpu_custom_call.1} parent=1 // pred_check
      _
    $region35: #{tpu_custom_call.1} parent=1 // pred_check_branch
      %43 = sbr.rel (0) target = $region37
    $region36: #{tpu_custom_call.1} parent=1 // pred_region
      %45 = vsyncadd [#allocation3], 0
      %s46 = sshll.u32 %s8, 4
      %s47 = int_to_ptr.hbm [resolvable:$true] %s46
      %s48 = sshll.u32 [#allocation2], 4
      %s49 = int_to_ptr.vmem [resolvable:$true] %s48
      %54 = dma.hbm_to_vmem [thread:$0]  %s47, 4096, %s49, [#allocation3], 128, 128, 8
    $region37: #{tpu_custom_call.1} parent=1 // pred_fallthru
      _
    // Predicated region
    $region38: #{tpu_custom_call.1} parent=1 // pred_check
      _
    $region39: #{tpu_custom_call.1} parent=1 // pred_check_branch
      %56 = sbr.rel (0) target = $region41
    $region40: #{tpu_custom_call.1} parent=1 // pred_region
      %58 = vsyncadd [#allocation6], 0
      %s59 = sshll.u32 %s9, 4
      %s60 = int_to_ptr.hbm [resolvable:$true] %s59
      %s61 = sshll.u32 [#allocation5], 4
      %s62 = int_to_ptr.vmem [resolvable:$true] %s61
      %67 = dma.hbm_to_vmem [thread:$0]  %s60, 4096, %s62, [#allocation6], 128, 128, 8
    $region41: #{tpu_custom_call.1} parent=1 // pred_fallthru
      _
    // Predicated region
    $region42: #{tpu_custom_call.1} parent=1 // pred_check
      _
    $region43: #{tpu_custom_call.1} parent=1 // pred_check_branch
      %69 = sbr.rel (0) target = $region45
    $region44: #{tpu_custom_call.1} parent=1 // pred_region
      _
    $region45: #{tpu_custom_call.1} parent=1 // pred_fallthru
      _
    // Predicated region
    $region46: #{tpu_custom_call.1} parent=1 // pred_check
      _
    $region47: #{tpu_custom_call.1} parent=1 // pred_check_branch
      %71 = sbr.rel (0) target = $region49
    $region48: #{tpu_custom_call.1} parent=1 // pred_region
      _
    $region49: #{tpu_custom_call.1} parent=1 // pred_fallthru
      _
    // Predicated region
    $region50: #{tpu_custom_call.1} parent=1 // pred_check
      _
    $region51: #{tpu_custom_call.1} parent=1 // pred_check_branch
      %73 = sbr.rel (0) target = $region53
    $region52: #{tpu_custom_call.1} parent=1 // pred_region
      _
    $region53: #{tpu_custom_call.1} parent=1 // pred_fallthru
      _
    // Predicated region
    $region54: #{tpu_custom_call.1} parent=1 // pred_check
      _
    $region55: #{tpu_custom_call.1} parent=1 // pred_check_branch
      %75 = sbr.rel (0) target = $region57
    $region56: #{tpu_custom_call.1} parent=1 // pred_region
      _
    $region57: #{tpu_custom_call.1} parent=1 // pred_fallthru
      _
    // Predicated region
    $region58: #{tpu_custom_call.1} parent=1 // pred_check
      _
    $region59: #{tpu_custom_call.1} parent=1 // pred_check_branch
      %77 = sbr.rel (0) target = $region61
    $region60: #{tpu_custom_call.1} parent=1 // pred_region
      _
    $region61: #{tpu_custom_call.1} parent=1 // pred_fallthru
      _
    // Predicated region
    $region62: #{tpu_custom_call.1} parent=1 // pred_check
      _
    $region63: #{tpu_custom_call.1} parent=1 // pred_check_branch
      %79 = sbr.rel (0) target = $region65
    $region64: #{tpu_custom_call.1} parent=1 // pred_region
      %81 = dma.done [#allocation3], 4096
    $region65: #{tpu_custom_call.1} parent=1 // pred_fallthru
      _
    // Predicated region
    $region66: #{tpu_custom_call.1} parent=1 // pred_check
      _
    $region67: #{tpu_custom_call.1} parent=1 // pred_check_branch
      %83 = sbr.rel (0) target = $region69
    $region68: #{tpu_custom_call.1} parent=1 // pred_region
      %85 = dma.done [#allocation6], 4096
    $region69: #{tpu_custom_call.1} parent=1 // pred_fallthru
      _
    %v86 = vld [vmem:[%s0] sm:$0xff]
    %v87 = vld [vmem:[%s0 + $0x8] sm:$0xff]
    %v88 = vld [vmem:[%s1] sm:$0xff]
    %v89 = vld [vmem:[%s1 + $0x8] sm:$0xff]
    %v90 = vld [vmem:[%s2] sm:$0xff]
    %v91 = vld [vmem:[%s2 + $0x8] sm:$0xff]
    %v92 = vld [vmem:[%s3] sm:$0x3]
    %v93 = vld [vmem:[%s4] sm:$0xff]
    %v94 = vld [vmem:[%s4 + $0x8] sm:$0xff]
    %v95 = vld [vmem:[%s4 + $0x10] sm:$0xff]
    %v96 = vld [vmem:[%s4 + $0x18] sm:$0xff]
    %v97 = vld [vmem:[%s10] sm:$0x1]
    %v99 = vperm.slane %v97, 0
    %vm101 = vcmask 261120
    %v103 = vsel %vm101, %v86, 0
    %v106 = vsel %vm101, %v87, 0
    %108 = vmatpush.msra.mxu0 0.0
    %109 = vmatpush.msra.mxu0 0.0
    %110 = vmatpush.msra.mxu0 0.0
    %111 = vmatpush.msra.mxu0 0.0
    %112 = vmatpush.msra.mxu0 0.0
    %113 = vmatpush.msra.mxu0 0.0
    %114 = vmatpush.msra.mxu0 0.0
    %115 = vmatpush.msra.mxu0 0.0
    %116 = vmatpush.msra.mxu0 0.0
    %117 = vmatpush.msra.mxu0 0.0
    %118 = vmatpush.msra.mxu0 0.0
    %119 = vmatpush.msra.mxu0 0.0
    %120 = vmatpush.msra.mxu0 %v96
    %121 = vmatpush.msra.mxu0 %v95
    %122 = vmatpush.msra.mxu0 %v94
    %123 = vmatpush.msra.mxu0 %v93
    %124 = vmatmul.f32.gmra.mxu0 %v103
    %v125 = vpop.f32.mrf.mxu0
    %v126 = vadd.f32 %v99, %v125
    %127 = vmatmul.f32.gmra.mxu0 %v106
    %v128 = vpop.f32.mrf.mxu0
    %v129 = vadd.f32 %v99, %v128
    %130 = vdwg.mxu0
    %131 = vst.msk [vmem:[#allocation8] sm:$0xff] %vm101, %v126
    %132 = vst.msk [vmem:[#allocation8 + $0x8] sm:$0xff] %vm101, %v129
    %v133 = vld [vmem:[%s6] sm:$0xff]
    %v134 = vld [vmem:[%s6 + $0x8] sm:$0xff]
    %v135 = vld [vmem:[%s6 + $0x10] sm:$0xff]
    %v136 = vld [vmem:[%s6 + $0x18] sm:$0xff]
    %v137 = vld [vmem:[%s11] sm:$0x1]
    %v138 = vperm.slane %v137, 0
    %v140 = vsel %vm101, %v88, 0
    %v143 = vsel %vm101, %v89, 0
    %145 = vmatpush.msra.mxu0 0.0
    %146 = vmatpush.msra.mxu0 0.0
    %147 = vmatpush.msra.mxu0 0.0
    %148 = vmatpush.msra.mxu0 0.0
    %149 = vmatpush.msra.mxu0 0.0
    %150 = vmatpush.msra.mxu0 0.0
    %151 = vmatpush.msra.mxu0 0.0
    %152 = vmatpush.msra.mxu0 0.0
    %153 = vmatpush.msra.mxu0 0.0
    %154 = vmatpush.msra.mxu0 0.0
    %155 = vmatpush.msra.mxu0 0.0
    %156 = vmatpush.msra.mxu0 0.0
    %157 = vmatpush.msra.mxu0 %v136
    %158 = vmatpush.msra.mxu0 %v135
    %159 = vmatpush.msra.mxu0 %v134
    %160 = vmatpush.msra.mxu0 %v133
    %161 = vmatmul.f32.gmra.mxu0 %v140
    %v162 = vpop.f32.mrf.mxu0
    %v163 = vadd.f32 %v138, %v162
    %164 = vmatmul.f32.gmra.mxu0 %v143
    %v165 = vpop.f32.mrf.mxu0
    %v166 = vadd.f32 %v138, %v165
    %167 = vdwg.mxu0
    %s168 = scalar_lea.vmem %s6, 32
    %v169 = vld [vmem:[%s168] sm:$0xff]
    %v170 = vld [vmem:[%s168 + $0x8] sm:$0xff]
    %v171 = vld [vmem:[%s168 + $0x10] sm:$0xff]
    %v172 = vld [vmem:[%s168 + $0x18] sm:$0xff]
    %v173 = vld [vmem:[%s11 + $0x1] sm:$0x1]
    %v174 = vperm.slane %v173, 0
    %175 = vmatpush.msra.mxu0 0.0
    %176 = vmatpush.msra.mxu0 0.0
    %177 = vmatpush.msra.mxu0 0.0
    %178 = vmatpush.msra.mxu0 0.0
    %179 = vmatpush.msra.mxu0 0.0
    %180 = vmatpush.msra.mxu0 0.0
    %181 = vmatpush.msra.mxu0 0.0
    %182 = vmatpush.msra.mxu0 0.0
    %183 = vmatpush.msra.mxu0 0.0
    %184 = vmatpush.msra.mxu0 0.0
    %185 = vmatpush.msra.mxu0 0.0
    %186 = vmatpush.msra.mxu0 0.0
    %187 = vmatpush.msra.mxu0 %v172
    %188 = vmatpush.msra.mxu0 %v171
    %189 = vmatpush.msra.mxu0 %v170
    %190 = vmatpush.msra.mxu0 %v169
    %191 = vmatmul.f32.gmra.mxu0 %v140
    %v192 = vpop.f32.mrf.mxu0
    %v193 = vadd.f32 %v174, %v192
    %194 = vmatmul.f32.gmra.mxu0 %v143
    %v195 = vpop.f32.mrf.mxu0
    %v196 = vadd.f32 %v174, %v195
    %197 = vdwg.mxu0
    %v198 = vlaneseq
    %v199 = vshrl.u32 %v198, 7
    %v200 = vlaneseq
    %v201 = vand.u32 %v200, 127
    %vm202 = vcmp.ne.s32.totalorder %v199, %v201
    %v203 = vperm.slane %v92, 0
    %vm204 = vcmask 31744
    %v206 = vsel %vm204, %v90, 0
    %208 = vmatpush.xpose.msra.mxu0 0.0
    %209 = vmatpush.xpose.msra.mxu0 0.0
    %210 = vmatpush.xpose.msra.mxu0 0.0
    %211 = vmatpush.xpose.msra.mxu0 0.0
    %212 = vmatpush.xpose.msra.mxu0 0.0
    %213 = vmatpush.xpose.msra.mxu0 0.0
    %214 = vmatpush.xpose.msra.mxu0 0.0
    %215 = vmatpush.xpose.msra.mxu0 0.0
    %216 = vmatpush.xpose.msra.mxu0 0.0
    %217 = vmatpush.xpose.msra.mxu0 0.0
    %218 = vmatpush.xpose.msra.mxu0 0.0
    %219 = vmatpush.xpose.msra.mxu0 0.0
    %220 = vmatpush.xpose.msra.mxu0 0.0
    %221 = vmatpush.xpose.msra.mxu0 0.0
    %222 = vmatpush.xpose.msra.mxu0 0.0
    %223 = vmatpush.xpose.msra.mxu0 %v206
    %224 = vmatmul.f32.gmra.mxu0 %v206
    %v225 = vpop.f32.mrf.mxu0
    %v226 = vadd.f32 0.0, %v225
    %227 = vdwg.mxu0
    %vm228 = vcmp.ne.f32.partialorder %v226, 0.0
    %vm229 = vmand %vm228, %vm202
    %v230 = vsel %vm229, 1.0, 0.0
    %v231 = vmul.f32 %v203, %v230
    %vm232 = vcmask 57344
    %v233 = vsel %vm232, %v92, 0.0
    %234 = vadd.xlane.f32.xlu0 %v233
    %v235 = vpop.xlane.xlu0 %234
    %v236 = vadd.f32 %v235, 0.01
    %v237 = vrcp.pop %v236
    %v238 = vmul.f32 %v236, %v237
    %v239 = vsub.f32 1.0, %v238
    %v240 = vmul.f32 %v237, %v239
    %v241 = vadd.f32 %v237, %v240
    %vm242 = vweird.f32 %v236
    %vm243 = vweird.f32 %v237
    %vm244 = vmor %vm242, %vm243
    %v245 = vsel %vm244, %v237, %v241
    %v246 = vand.u32 2147483647, %v236
    %vm247 = vcmp.eq.f32.partialorder %v246, 8.507059e+37
    %v248 = vand.u32 %v236, 2147483648
    %v249 = vor.u32 1.1754944e-38, %v248
    %v250 = vsel %vm247, %v249, %v245
    %v251 = vmul.f32 1.0, %v250
    %v252 = vperm.slane %v251, 0
    %v253 = vperm.slane %v92, 1
    %v255 = vsel %vm204, %v91, 0
    %257 = vmatpush.xpose.msra.mxu0 0.0
    %258 = vmatpush.xpose.msra.mxu0 0.0
    %259 = vmatpush.xpose.msra.mxu0 0.0
    %260 = vmatpush.xpose.msra.mxu0 0.0
    %261 = vmatpush.xpose.msra.mxu0 0.0
    %262 = vmatpush.xpose.msra.mxu0 0.0
    %263 = vmatpush.xpose.msra.mxu0 0.0
    %264 = vmatpush.xpose.msra.mxu0 0.0
    %265 = vmatpush.xpose.msra.mxu0 0.0
    %266 = vmatpush.xpose.msra.mxu0 0.0
    %267 = vmatpush.xpose.msra.mxu0 0.0
    %268 = vmatpush.xpose.msra.mxu0 0.0
    %269 = vmatpush.xpose.msra.mxu0 0.0
    %270 = vmatpush.xpose.msra.mxu0 0.0
    %271 = vmatpush.xpose.msra.mxu0 0.0
    %272 = vmatpush.xpose.msra.mxu0 %v255
    %273 = vmatmul.f32.gmra.mxu0 %v255
    %v274 = vpop.f32.mrf.mxu0
    %v275 = vadd.f32 0.0, %v274
    %276 = vdwg.mxu0
    %vm277 = vcmp.ne.f32.partialorder %v275, 0.0
    %vm278 = vmand %vm277, %vm202
    %v279 = vsel %vm278, 1.0, 0.0
    %v280 = vmul.f32 %v253, %v279
    %vm281 = vcmask 58369
    %v282 = vsel %vm281, %v92, 0.0
    %283 = vadd.xlane.f32.xlu0 %v282
    %v284 = vpop.xlane.xlu0 %283
    %v285 = vadd.f32 %v284, 0.01
    %v286 = vrcp.pop %v285
    %v287 = vmul.f32 %v285, %v286
    %v288 = vsub.f32 1.0, %v287
    %v289 = vmul.f32 %v286, %v288
    %v290 = vadd.f32 %v286, %v289
    %vm291 = vweird.f32 %v285
    %vm292 = vweird.f32 %v286
    %vm293 = vmor %vm291, %vm292
    %v294 = vsel %vm293, %v286, %v290
    %v295 = vand.u32 2147483647, %v285
    %vm296 = vcmp.eq.f32.partialorder %v295, 8.507059e+37
    %v297 = vand.u32 %v285, 2147483648
    %v298 = vor.u32 1.1754944e-38, %v297
    %v299 = vsel %vm296, %v298, %v294
    %v300 = vmul.f32 1.0, %v299
    %v301 = vperm.slane %v300, 1
    %vm302 = vcmp.gt.f32.partialorder %v203, 0.5
    %vm303 = vcmp.gt.f32.partialorder %v253, 0.5
    %vm304 = vcmp.gt.f32.partialorder %v231, 0.5
    %vm305 = vcmp.gt.f32.partialorder %v280, 0.5
    %vm306 = vmxor %vm302, 1
    %vm307 = vmxor %vm303, 1
    %v308 = vld [vmem:[%s5] sm:$0xff]
    %v309 = vld [vmem:[%s5 + $0x8] sm:$0xff]
    %v310 = vld [vmem:[%s5 + $0x10] sm:$0xff]
    %v311 = vld [vmem:[%s5 + $0x18] sm:$0xff]
    %v313 = vsel %vm101, %v126, 0
    %v316 = vsel %vm101, %v129, 0
    %318 = vmatpush.msra.mxu0 0.0
    %319 = vmatpush.msra.mxu0 0.0
    %320 = vmatpush.msra.mxu0 0.0
    %321 = vmatpush.msra.mxu0 0.0
    %322 = vmatpush.msra.mxu0 0.0
    %323 = vmatpush.msra.mxu0 0.0
    %324 = vmatpush.msra.mxu0 0.0
    %325 = vmatpush.msra.mxu0 0.0
    %326 = vmatpush.msra.mxu0 0.0
    %327 = vmatpush.msra.mxu0 0.0
    %328 = vmatpush.msra.mxu0 0.0
    %329 = vmatpush.msra.mxu0 0.0
    %330 = vmatpush.msra.mxu0 %v311
    %331 = vmatpush.msra.mxu0 %v310
    %332 = vmatpush.msra.mxu0 %v309
    %333 = vmatpush.msra.mxu0 %v308
    %334 = vmatmul.f32.gmra.mxu0 %v313
    %v335 = vpop.f32.mrf.mxu0
    %v336 = vadd.f32 %v163, %v335
    %337 = vmatmul.f32.gmra.mxu0 %v316
    %v338 = vpop.f32.mrf.mxu0
    %v339 = vadd.f32 %v166, %v338
    %340 = vdwg.mxu0
    %v341 = vld [vmem:[%s7] sm:$0xff]
    %v342 = vld [vmem:[%s7 + $0x8] sm:$0xff]
    %v343 = vld [vmem:[%s7 + $0x10] sm:$0xff]
    %v344 = vld [vmem:[%s7 + $0x18] sm:$0xff]
    %v345 = vld [vmem:[%s12] sm:$0x1]
    %v346 = vperm.slane %v345, 0
    %347 = vmatpush.msra.mxu0 0.0
    %348 = vmatpush.msra.mxu0 0.0
    %349 = vmatpush.msra.mxu0 0.0
    %350 = vmatpush.msra.mxu0 0.0
    %351 = vmatpush.msra.mxu0 0.0
    %352 = vmatpush.msra.mxu0 0.0
    %353 = vmatpush.msra.mxu0 0.0
    %354 = vmatpush.msra.mxu0 0.0
    %355 = vmatpush.msra.mxu0 0.0
    %356 = vmatpush.msra.mxu0 0.0
    %357 = vmatpush.msra.mxu0 0.0
    %358 = vmatpush.msra.mxu0 0.0
    %359 = vmatpush.msra.mxu0 %v344
    %360 = vmatpush.msra.mxu0 %v343
    %361 = vmatpush.msra.mxu0 %v342
    %362 = vmatpush.msra.mxu0 %v341
    %363 = vmatmul.f32.gmra.mxu0 %v313
    %v364 = vpop.f32.mrf.mxu0
    %v365 = vadd.f32 %v346, %v364
    %366 = vmatmul.f32.gmra.mxu0 %v316
    %v367 = vpop.f32.mrf.mxu0
    %v368 = vadd.f32 %v346, %v367
    %369 = vdwg.mxu0
    %vm370 = vcmask 130048
    %v372 = vsel %vm370, %v336, 0
    %v375 = vsel %vm370, %v365, 0
    %377 = vmatpush.xpose.msra.mxu0 0.0
    %378 = vmatpush.xpose.msra.mxu0 0.0
    %379 = vmatpush.xpose.msra.mxu0 0.0
    %380 = vmatpush.xpose.msra.mxu0 0.0
    %381 = vmatpush.xpose.msra.mxu0 0.0
    %382 = vmatpush.xpose.msra.mxu0 0.0
    %383 = vmatpush.xpose.msra.mxu0 0.0
    %384 = vmatpush.xpose.msra.mxu0 0.0
    %385 = vmatpush.xpose.msra.mxu0 0.0
    %386 = vmatpush.xpose.msra.mxu0 0.0
    %387 = vmatpush.xpose.msra.mxu0 0.0
    %388 = vmatpush.xpose.msra.mxu0 0.0
    %389 = vmatpush.xpose.msra.mxu0 0.0
    %390 = vmatpush.xpose.msra.mxu0 0.0
    %391 = vmatpush.xpose.msra.mxu0 0.0
    %392 = vmatpush.xpose.msra.mxu0 %v375
    %393 = vmatmul.f32.gmra.mxu0 %v372
    %v394 = vpop.f32.mrf.mxu0
    %v395 = vadd.f32 0.0, %v394
    %396 = vdwg.mxu0
    %v398 = vsel %vm370, %v339, 0
    %v401 = vsel %vm370, %v368, 0
    %403 = vmatpush.xpose.msra.mxu0 0.0
    %404 = vmatpush.xpose.msra.mxu0 0.0
    %405 = vmatpush.xpose.msra.mxu0 0.0
    %406 = vmatpush.xpose.msra.mxu0 0.0
    %407 = vmatpush.xpose.msra.mxu0 0.0
    %408 = vmatpush.xpose.msra.mxu0 0.0
    %409 = vmatpush.xpose.msra.mxu0 0.0
    %410 = vmatpush.xpose.msra.mxu0 0.0
    %411 = vmatpush.xpose.msra.mxu0 0.0
    %412 = vmatpush.xpose.msra.mxu0 0.0
    %413 = vmatpush.xpose.msra.mxu0 0.0
    %414 = vmatpush.xpose.msra.mxu0 0.0
    %415 = vmatpush.xpose.msra.mxu0 0.0
    %416 = vmatpush.xpose.msra.mxu0 0.0
    %417 = vmatpush.xpose.msra.mxu0 0.0
    %418 = vmatpush.xpose.msra.mxu0 %v401
    %419 = vmatmul.f32.gmra.mxu0 %v398
    %v420 = vpop.f32.mrf.mxu0
    %v421 = vadd.f32 0.0, %v420
    %422 = vdwg.mxu0
    %s423 = scalar_lea.vmem %s5, 32
    %v424 = vld [vmem:[%s423] sm:$0xff]
    %v425 = vld [vmem:[%s423 + $0x8] sm:$0xff]
    %v426 = vld [vmem:[%s423 + $0x10] sm:$0xff]
    %v427 = vld [vmem:[%s423 + $0x18] sm:$0xff]
    %428 = vmatpush.msra.mxu0 0.0
    %429 = vmatpush.msra.mxu0 0.0
    %430 = vmatpush.msra.mxu0 0.0
    %431 = vmatpush.msra.mxu0 0.0
    %432 = vmatpush.msra.mxu0 0.0
    %433 = vmatpush.msra.mxu0 0.0
    %434 = vmatpush.msra.mxu0 0.0
    %435 = vmatpush.msra.mxu0 0.0
    %436 = vmatpush.msra.mxu0 0.0
    %437 = vmatpush.msra.mxu0 0.0
    %438 = vmatpush.msra.mxu0 0.0
    %439 = vmatpush.msra.mxu0 0.0
    %440 = vmatpush.msra.mxu0 %v427
    %441 = vmatpush.msra.mxu0 %v426
    %442 = vmatpush.msra.mxu0 %v425
    %443 = vmatpush.msra.mxu0 %v424
    %444 = vmatmul.f32.gmra.mxu0 %v313
    %v445 = vpop.f32.mrf.mxu0
    %v446 = vadd.f32 %v193, %v445
    %447 = vmatmul.f32.gmra.mxu0 %v316
    %v448 = vpop.f32.mrf.mxu0
    %v449 = vadd.f32 %v196, %v448
    %450 = vdwg.mxu0
    %s451 = scalar_lea.vmem %s7, 32
    %v452 = vld [vmem:[%s451] sm:$0xff]
    %v453 = vld [vmem:[%s451 + $0x8] sm:$0xff]
    %v454 = vld [vmem:[%s451 + $0x10] sm:$0xff]
    %v455 = vld [vmem:[%s451 + $0x18] sm:$0xff]
    %v456 = vld [vmem:[%s12 + $0x1] sm:$0x1]
    %v457 = vperm.slane %v456, 0
    %458 = vmatpush.msra.mxu0 0.0
    %459 = vmatpush.msra.mxu0 0.0
    %460 = vmatpush.msra.mxu0 0.0
    %461 = vmatpush.msra.mxu0 0.0
    %462 = vmatpush.msra.mxu0 0.0
    %463 = vmatpush.msra.mxu0 0.0
    %464 = vmatpush.msra.mxu0 0.0
    %465 = vmatpush.msra.mxu0 0.0
    %466 = vmatpush.msra.mxu0 0.0
    %467 = vmatpush.msra.mxu0 0.0
    %468 = vmatpush.msra.mxu0 0.0
    %469 = vmatpush.msra.mxu0 0.0
    %470 = vmatpush.msra.mxu0 %v455
    %471 = vmatpush.msra.mxu0 %v454
    %472 = vmatpush.msra.mxu0 %v453
    %473 = vmatpush.msra.mxu0 %v452
    %474 = vmatmul.f32.gmra.mxu0 %v313
    %v475 = vpop.f32.mrf.mxu0
    %v476 = vadd.f32 %v457, %v475
    %477 = vmatmul.f32.gmra.mxu0 %v316
    %v478 = vpop.f32.mrf.mxu0
    %v479 = vadd.f32 %v457, %v478
    %480 = vdwg.mxu0
    %v482 = vsel %vm370, %v446, 0
    %v485 = vsel %vm370, %v476, 0
    %487 = vmatpush.xpose.msra.mxu0 0.0
    %488 = vmatpush.xpose.msra.mxu0 0.0
    %489 = vmatpush.xpose.msra.mxu0 0.0
    %490 = vmatpush.xpose.msra.mxu0 0.0
    %491 = vmatpush.xpose.msra.mxu0 0.0
    %492 = vmatpush.xpose.msra.mxu0 0.0
    %493 = vmatpush.xpose.msra.mxu0 0.0
    %494 = vmatpush.xpose.msra.mxu0 0.0
    %495 = vmatpush.xpose.msra.mxu0 0.0
    %496 = vmatpush.xpose.msra.mxu0 0.0
    %497 = vmatpush.xpose.msra.mxu0 0.0
    %498 = vmatpush.xpose.msra.mxu0 0.0
    %499 = vmatpush.xpose.msra.mxu0 0.0
    %500 = vmatpush.xpose.msra.mxu0 0.0
    %501 = vmatpush.xpose.msra.mxu0 0.0
    %502 = vmatpush.xpose.msra.mxu0 %v485
    %503 = vmatmul.f32.gmra.mxu0 %v482
    %v504 = vpop.f32.mrf.mxu0
    %v505 = vadd.f32 0.0, %v504
    %506 = vdwg.mxu0
    %v508 = vsel %vm370, %v449, 0
    %v511 = vsel %vm370, %v479, 0
    %513 = vmatpush.xpose.msra.mxu0 0.0
    %514 = vmatpush.xpose.msra.mxu0 0.0
    %515 = vmatpush.xpose.msra.mxu0 0.0
    %516 = vmatpush.xpose.msra.mxu0 0.0
    %517 = vmatpush.xpose.msra.mxu0 0.0
    %518 = vmatpush.xpose.msra.mxu0 0.0
    %519 = vmatpush.xpose.msra.mxu0 0.0
    %520 = vmatpush.xpose.msra.mxu0 0.0
    %521 = vmatpush.xpose.msra.mxu0 0.0
    %522 = vmatpush.xpose.msra.mxu0 0.0
    %523 = vmatpush.xpose.msra.mxu0 0.0
    %524 = vmatpush.xpose.msra.mxu0 0.0
    %525 = vmatpush.xpose.msra.mxu0 0.0
    %526 = vmatpush.xpose.msra.mxu0 0.0
    %527 = vmatpush.xpose.msra.mxu0 0.0
    %528 = vmatpush.xpose.msra.mxu0 %v511
    %529 = vmatmul.f32.gmra.mxu0 %v508
    %v530 = vpop.f32.mrf.mxu0
    %v531 = vadd.f32 0.0, %v530
    %532 = vdwg.mxu0
    %v533 = vsel %vm302, %v395, 0.0
    %v534 = vsel %vm303, %v421, 0.0
    %v535 = vsel %vm302, %v505, 0.0
    %v536 = vsel %vm303, %v531, 0.0
    %vm537 = vcmask 64512
    %v538 = vsel %vm537, %v533, 0.0
    %539 = vadd.xlane.f32.xlu0 %v538
    %v540 = vpop.xlane.xlu0 %539
    %v541 = vsel %vm537, %v534, 0.0
    %542 = vadd.xlane.f32.xlu0 %v541
    %v543 = vpop.xlane.xlu0 %542
    %v544 = vsel %vm537, %v535, 0.0
    %545 = vadd.xlane.f32.xlu0 %v544
    %v546 = vpop.xlane.xlu0 %545
    %v547 = vsel %vm537, %v536, 0.0
    %548 = vadd.xlane.f32.xlu0 %v547
    %v549 = vpop.xlane.xlu0 %548
    %v550 = vmul.f32 %v540, %v252
    %v551 = vmul.f32 %v543, %v301
    %v552 = vmul.f32 %v546, %v252
    %v553 = vmul.f32 %v549, %v301
    %555 = vset.pattern.permute.xlu0 0
    %556 = vperm.xlu0 %555, %v550
    %v557 = vpop.permute.xlu0 %556
    %560 = vset.pattern.permute.xlu0 0
    %561 = vperm.xlu0 %560, %v551
    %v562 = vpop.permute.xlu0 %561
    %565 = vset.pattern.permute.xlu0 0
    %566 = vperm.xlu0 %565, %v552
    %v567 = vpop.permute.xlu0 %566
    %570 = vset.pattern.permute.xlu0 0
    %571 = vperm.xlu0 %570, %v553
    %v572 = vpop.permute.xlu0 %571
    %v574 = vsub.f32 %v395, %v557
    %v575 = vsub.f32 %v421, %v562
    %v576 = vsub.f32 %v505, %v567
    %v577 = vsub.f32 %v531, %v572
    %v578 = vmul.f32 %v574, %v574
    %v579 = vmul.f32 %v575, %v575
    %v580 = vmul.f32 %v576, %v576
    %v581 = vmul.f32 %v577, %v577
    %v582 = vsel %vm302, %v578, 0.0
    %v583 = vsel %vm303, %v579, 0.0
    %v584 = vsel %vm302, %v580, 0.0
    %v585 = vsel %vm303, %v581, 0.0
    %v586 = vsel %vm537, %v582, 0.0
    %587 = vadd.xlane.f32.xlu0 %v586
    %v588 = vpop.xlane.xlu0 %587
    %v589 = vsel %vm537, %v583, 0.0
    %590 = vadd.xlane.f32.xlu0 %v589
    %v591 = vpop.xlane.xlu0 %590
    %v592 = vsel %vm537, %v584, 0.0
    %593 = vadd.xlane.f32.xlu0 %v592
    %v594 = vpop.xlane.xlu0 %593
    %v595 = vsel %vm537, %v585, 0.0
    %596 = vadd.xlane.f32.xlu0 %v595
    %v597 = vpop.xlane.xlu0 %596
    %v598 = vmul.f32 %v588, %v252
    %v599 = vmul.f32 %v591, %v301
    %v600 = vmul.f32 %v594, %v252
    %v601 = vmul.f32 %v597, %v301
    %v602 = vrsqrt.pop %v598
    %v603 = vmul.f32 %v602, %v598
    %v604 = vmul.f32 %v603, %v602
    %v605 = vmul.f32 0.5, %v604
    %v606 = vsub.f32 1.5, %v605
    %v607 = vmul.f32 %v602, %v606
    %vm608 = vweird.f32 %v598
    %vm609 = vweird.f32 %v602
    %vm610 = vmor %vm608, %vm609
    %v611 = vsel %vm610, %v602, %v607
    %v612 = vrsqrt.pop %v599
    %v613 = vmul.f32 %v612, %v599
    %v614 = vmul.f32 %v613, %v612
    %v615 = vmul.f32 0.5, %v614
    %v616 = vsub.f32 1.5, %v615
    %v617 = vmul.f32 %v612, %v616
    %vm618 = vweird.f32 %v599
    %vm619 = vweird.f32 %v612
    %vm620 = vmor %vm618, %vm619
    %v621 = vsel %vm620, %v612, %v617
    %v622 = vrsqrt.pop %v600
    %v623 = vmul.f32 %v622, %v600
    %v624 = vmul.f32 %v623, %v622
    %v625 = vmul.f32 0.5, %v624
    %v626 = vsub.f32 1.5, %v625
    %v627 = vmul.f32 %v622, %v626
    %vm628 = vweird.f32 %v600
    %vm629 = vweird.f32 %v622
    %vm630 = vmor %vm628, %vm629
    %v631 = vsel %vm630, %v622, %v627
    %v632 = vrsqrt.pop %v601
    %v633 = vmul.f32 %v632, %v601
    %v634 = vmul.f32 %v633, %v632
    %v635 = vmul.f32 0.5, %v634
    %v636 = vsub.f32 1.5, %v635
    %v637 = vmul.f32 %v632, %v636
    %vm638 = vweird.f32 %v601
    %vm639 = vweird.f32 %v632
    %vm640 = vmor %vm638, %vm639
    %v641 = vsel %vm640, %v632, %v637
    %643 = vset.pattern.permute.xlu0 0
    %644 = vperm.xlu0 %643, %v611
    %v645 = vpop.permute.xlu0 %644
    %648 = vset.pattern.permute.xlu0 0
    %649 = vperm.xlu0 %648, %v621
    %v650 = vpop.permute.xlu0 %649
    %653 = vset.pattern.permute.xlu0 0
    %654 = vperm.xlu0 %653, %v631
    %v655 = vpop.permute.xlu0 %654
    %658 = vset.pattern.permute.xlu0 0
    %659 = vperm.xlu0 %658, %v641
    %v660 = vpop.permute.xlu0 %659
    %v662 = vmul.f32 %v574, %v645
    %v663 = vmul.f32 %v575, %v650
    %v664 = vmul.f32 %v576, %v655
    %v665 = vmul.f32 %v577, %v660
    %vm666 = vcmp.ne.f32.partialorder %v662, %v662
    %vm667 = vcmp.ne.f32.partialorder %v663, %v663
    %vm668 = vcmp.ne.f32.partialorder %v664, %v664
    %vm669 = vcmp.ne.f32.partialorder %v665, %v665
    %v670 = vsel %vm666, 1.0, 0.0
    %v671 = vsel %vm667, 1.0, 0.0
    %v672 = vsel %vm668, 1.0, 0.0
    %v673 = vsel %vm669, 1.0, 0.0
    %v674 = vsel %vm537, %v670, -inf
    %v675 = vsel %vm537, %v671, -inf
    %v676 = vsel %vm537, %v672, -inf
    %v677 = vsel %vm537, %v673, -inf
    %v678 = vmax.f32 %v674, %v675
    %v679 = vmax.f32 %v676, %v677
    %v680 = vmax.f32 %v678, %v679
    %681 = vmax.xlane.f32.xlu0 %v680
    %v682 = vpop.xlane.xlu0 %681
    %v683 = vrot.slane %v682, 4
    %v684 = vmax.f32 %v682, %v683
    %v685 = vrot.slane %v684, 2
    %v686 = vmax.f32 %v684, %v685
    %v687 = vrot.slane %v686, 1
    %v688 = vmax.f32 %v686, %v687
    %s689 = vtos %v688
    %p690 = scmp.gt.f32.partialorder %s689, 0.0
    %s691 = scalar_select %p690, 1, 0
    %v692 = vstv %s691
    %vm693 = vcmp.eq.s32.totalorder %v692, 1
    %v694 = vsel %vm693, %v395, %v662
    %v695 = vsel %vm693, %v421, %v663
    %v696 = vsel %vm693, %v505, %v664
    %v697 = vsel %vm693, %v531, %v665
    %vm698 = vcmp.lt.f32.partialorder %v694, 0.0
    %vm699 = vcmp.lt.f32.partialorder %v695, 0.0
    %vm700 = vcmp.lt.f32.partialorder %v696, 0.0
    %vm701 = vcmp.lt.f32.partialorder %v697, 0.0
    %vm702 = vmor %vm698, %vm306
    %vm703 = vmor %vm699, %vm307
    %vm704 = vmor %vm700, %vm306
    %vm705 = vmor %vm701, %vm307
    %v706 = vsel %vm702, -1e+09, %v694
    %v707 = vsel %vm703, -1e+09, %v695
    %v708 = vsel %vm704, -1e+09, %v696
    %v709 = vsel %vm705, -1e+09, %v697
    %v710 = vsel %vm537, %v706, -inf
    %711 = vmax.xlane.f32.xlu0 %v710
    %v712 = vpop.xlane.xlu0 %711
    %v713 = vsel %vm537, %v707, -inf
    %714 = vmax.xlane.f32.xlu0 %v713
    %v715 = vpop.xlane.xlu0 %714
    %v716 = vsel %vm537, %v708, -inf
    %717 = vmax.xlane.f32.xlu0 %v716
    %v718 = vpop.xlane.xlu0 %717
    %v719 = vsel %vm537, %v709, -inf
    %720 = vmax.xlane.f32.xlu0 %v719
    %v721 = vpop.xlane.xlu0 %720
    %v722 = vsub.f32 %v706, %v712
    %v723 = vsub.f32 %v707, %v715
    %v724 = vsub.f32 %v708, %v718
    %v725 = vsub.f32 %v709, %v721
    %v726 = vmul.f32 %v722, 1.442695
    %v727 = vpow.pop %v726
    %v728 = vmul.f32 %v723, 1.442695
    %v729 = vpow.pop %v728
    %v730 = vmul.f32 %v724, 1.442695
    %v731 = vpow.pop %v730
    %v732 = vmul.f32 %v725, 1.442695
    %v733 = vpow.pop %v732
    %v734 = vsel %vm304, %v727, 0.0
    %v735 = vsel %vm305, %v729, 0.0
    %v736 = vsel %vm304, %v731, 0.0
    %v737 = vsel %vm305, %v733, 0.0
    %v738 = vadd.f32 %v734, 1e-10
    %v739 = vadd.f32 %v735, 1e-10
    %v740 = vadd.f32 %v736, 1e-10
    %v741 = vadd.f32 %v737, 1e-10
    %v742 = vsel %vm537, %v738, 0.0
    %743 = vadd.xlane.f32.xlu0 %v742
    %v744 = vpop.xlane.xlu0 %743
    %v745 = vsel %vm537, %v739, 0.0
    %746 = vadd.xlane.f32.xlu0 %v745
    %v747 = vpop.xlane.xlu0 %746
    %v748 = vsel %vm537, %v740, 0.0
    %749 = vadd.xlane.f32.xlu0 %v748
    %v750 = vpop.xlane.xlu0 %749
    %v751 = vsel %vm537, %v741, 0.0
    %752 = vadd.xlane.f32.xlu0 %v751
    %v753 = vpop.xlane.xlu0 %752
    %v754 = vrcp.pop %v744
    %v755 = vrcp.pop %v747
    %v756 = vrcp.pop %v750
    %v757 = vrcp.pop %v753
    %v758 = vmul.f32 %v738, %v754
    %v759 = vmul.f32 %v739, %v755
    %v760 = vmul.f32 %v740, %v756
    %v761 = vmul.f32 %v741, %v757
    %vm762 = vmxor %vm698, 1
    %vm763 = vmxor %vm699, 1
    %vm764 = vmxor %vm700, 1
    %vm765 = vmxor %vm701, 1
    %vm766 = vmand %vm304, %vm762
    %vm767 = vmand %vm305, %vm763
    %vm768 = vmand %vm304, %vm764
    %vm769 = vmand %vm305, %vm765
    %v770 = vsel %vm766, %v758, 0.0
    %v771 = vsel %vm767, %v759, 0.0
    %v772 = vsel %vm768, %v760, 0.0
    %v773 = vsel %vm769, %v761, 0.0
    %v774 = vsel %vm537, %v770, 0.0
    %775 = vadd.xlane.f32.xlu0 %v774
    %v776 = vpop.xlane.xlu0 %775
    %v777 = vsel %vm537, %v771, 0.0
    %778 = vadd.xlane.f32.xlu0 %v777
    %v779 = vpop.xlane.xlu0 %778
    %v780 = vsel %vm537, %v772, 0.0
    %781 = vadd.xlane.f32.xlu0 %v780
    %v782 = vpop.xlane.xlu0 %781
    %v783 = vsel %vm537, %v773, 0.0
    %784 = vadd.xlane.f32.xlu0 %v783
    %v785 = vpop.xlane.xlu0 %784
    %v786 = vadd.f32 %v776, 1.0
    %v787 = vadd.f32 %v779, 1.0
    %v788 = vadd.f32 %v782, 1.0
    %v789 = vadd.f32 %v785, 1.0
    %v790 = vrcp.pop %v786
    %v791 = vrcp.pop %v787
    %v792 = vrcp.pop %v788
    %v793 = vrcp.pop %v789
    %v795 = vsel %vm537, %v770, 0
    %797 = vmatpush.msra.mxu0 0.0
    %798 = vmatpush.msra.mxu0 0.0
    %799 = vmatpush.msra.mxu0 0.0
    %800 = vmatpush.msra.mxu0 0.0
    %801 = vmatpush.msra.mxu0 0.0
    %802 = vmatpush.msra.mxu0 0.0
    %803 = vmatpush.msra.mxu0 0.0
    %804 = vmatpush.msra.mxu0 0.0
    %805 = vmatpush.msra.mxu0 0.0
    %806 = vmatpush.msra.mxu0 0.0
    %807 = vmatpush.msra.mxu0 0.0
    %808 = vmatpush.msra.mxu0 0.0
    %809 = vmatpush.msra.mxu0 0.0
    %810 = vmatpush.msra.mxu0 0.0
    %811 = vmatpush.msra.mxu0 0.0
    %812 = vmatpush.msra.mxu0 %v126
    %813 = vmatmul.f32.gmra.mxu0 %v795
    %v814 = vpop.f32.mrf.mxu0
    %v815 = vadd.f32 0.0, %v814
    %816 = vdwg.mxu0
    %v818 = vsel %vm537, %v771, 0
    %820 = vmatpush.msra.mxu0 0.0
    %821 = vmatpush.msra.mxu0 0.0
    %822 = vmatpush.msra.mxu0 0.0
    %823 = vmatpush.msra.mxu0 0.0
    %824 = vmatpush.msra.mxu0 0.0
    %825 = vmatpush.msra.mxu0 0.0
    %826 = vmatpush.msra.mxu0 0.0
    %827 = vmatpush.msra.mxu0 0.0
    %828 = vmatpush.msra.mxu0 0.0
    %829 = vmatpush.msra.mxu0 0.0
    %830 = vmatpush.msra.mxu0 0.0
    %831 = vmatpush.msra.mxu0 0.0
    %832 = vmatpush.msra.mxu0 0.0
    %833 = vmatpush.msra.mxu0 0.0
    %834 = vmatpush.msra.mxu0 0.0
    %835 = vmatpush.msra.mxu0 %v129
    %836 = vmatmul.f32.gmra.mxu0 %v818
    %v837 = vpop.f32.mrf.mxu0
    %v838 = vadd.f32 0.0, %v837
    %839 = vdwg.mxu0
    %v840 = vadd.f32 %v815, %v126
    %v841 = vadd.f32 %v838, %v129
    %v842 = vld [vmem:[#allocation2] sm:$0xff]
    %v843 = vld [vmem:[#allocation2 + $0x8] sm:$0xff]
    %v844 = vld [vmem:[#allocation2 + $0x10] sm:$0xff]
    %v845 = vld [vmem:[#allocation2 + $0x18] sm:$0xff]
    %v846 = vld [vmem:[%s13] sm:$0x1]
    %v847 = vmul.f32 %v846, 2.0
    %v848 = vperm.slane %v847, 0
    %v850 = vsel %vm101, %v840, 0
    %v853 = vsel %vm101, %v841, 0
    %855 = vmatpush.msra.mxu0 0.0
    %856 = vmatpush.msra.mxu0 0.0
    %857 = vmatpush.msra.mxu0 0.0
    %858 = vmatpush.msra.mxu0 0.0
    %859 = vmatpush.msra.mxu0 0.0
    %860 = vmatpush.msra.mxu0 0.0
    %861 = vmatpush.msra.mxu0 0.0
    %862 = vmatpush.msra.mxu0 0.0
    %863 = vmatpush.msra.mxu0 0.0
    %864 = vmatpush.msra.mxu0 0.0
    %865 = vmatpush.msra.mxu0 0.0
    %866 = vmatpush.msra.mxu0 0.0
    %867 = vmatpush.msra.mxu0 %v845
    %868 = vmatpush.msra.mxu0 %v844
    %869 = vmatpush.msra.mxu0 %v843
    %870 = vmatpush.msra.mxu0 %v842
    %871 = vmatmul.f32.gmra.mxu0 %v850
    %v872 = vpop.f32.mrf.mxu0
    %v873 = vadd.f32 %v848, %v872
    %874 = vmatmul.f32.gmra.mxu0 %v853
    %v875 = vpop.f32.mrf.mxu0
    %v876 = vadd.f32 %v848, %v875
    %877 = vdwg.mxu0
    %v878 = vmul.f32 %v873, %v790
    %v879 = vmul.f32 %v876, %v791
    %v880 = vmax.f32 %v878, 0.0
    %v881 = vmax.f32 %v879, 0.0
    %v882 = vld [vmem:[#allocation5] sm:$0xff]
    %v883 = vld [vmem:[#allocation5 + $0x8] sm:$0xff]
    %v884 = vld [vmem:[#allocation5 + $0x10] sm:$0xff]
    %v885 = vld [vmem:[#allocation5 + $0x18] sm:$0xff]
    %886 = vmatpush.msra.mxu0 0.0
    %887 = vmatpush.msra.mxu0 0.0
    %888 = vmatpush.msra.mxu0 0.0
    %889 = vmatpush.msra.mxu0 0.0
    %890 = vmatpush.msra.mxu0 0.0
    %891 = vmatpush.msra.mxu0 0.0
    %892 = vmatpush.msra.mxu0 0.0
    %893 = vmatpush.msra.mxu0 0.0
    %894 = vmatpush.msra.mxu0 0.0
    %895 = vmatpush.msra.mxu0 0.0
    %896 = vmatpush.msra.mxu0 0.0
    %897 = vmatpush.msra.mxu0 0.0
    %898 = vmatpush.msra.mxu0 0.0
    %899 = vmatpush.msra.mxu0 0.0
    %900 = vmatpush.msra.mxu0 0.0
    %901 = vmatpush.msra.mxu0 %v880
    %902 = vmatmul.f32.gmra.mxu0 %v795
    %v903 = vpop.f32.mrf.mxu0
    %v904 = vadd.f32 0.0, %v903
    %905 = vdwg.mxu0
    %906 = vmatpush.msra.mxu0 0.0
    %907 = vmatpush.msra.mxu0 0.0
    %908 = vmatpush.msra.mxu0 0.0
    %909 = vmatpush.msra.mxu0 0.0
    %910 = vmatpush.msra.mxu0 0.0
    %911 = vmatpush.msra.mxu0 0.0
    %912 = vmatpush.msra.mxu0 0.0
    %913 = vmatpush.msra.mxu0 0.0
    %914 = vmatpush.msra.mxu0 0.0
    %915 = vmatpush.msra.mxu0 0.0
    %916 = vmatpush.msra.mxu0 0.0
    %917 = vmatpush.msra.mxu0 0.0
    %918 = vmatpush.msra.mxu0 0.0
    %919 = vmatpush.msra.mxu0 0.0
    %920 = vmatpush.msra.mxu0 0.0
    %921 = vmatpush.msra.mxu0 %v881
    %922 = vmatmul.f32.gmra.mxu0 %v818
    %v923 = vpop.f32.mrf.mxu0
    %v924 = vadd.f32 0.0, %v923
    %925 = vdwg.mxu0
    %v926 = vadd.f32 %v904, %v880
    %v927 = vadd.f32 %v924, %v881
    %s928 = scalar_lea.vmem [#allocation2], 32
    %v929 = vld [vmem:[%s928] sm:$0xff]
    %v930 = vld [vmem:[%s928 + $0x8] sm:$0xff]
    %v931 = vld [vmem:[%s928 + $0x10] sm:$0xff]
    %v932 = vld [vmem:[%s928 + $0x18] sm:$0xff]
    %v933 = vld [vmem:[%s13 + $0x1] sm:$0x1]
    %v934 = vmul.f32 %v933, 2.0
    %v935 = vperm.slane %v934, 0
    %v937 = vsel %vm101, %v926, 0
    %v940 = vsel %vm101, %v927, 0
    %942 = vmatpush.msra.mxu0 0.0
    %943 = vmatpush.msra.mxu0 0.0
    %944 = vmatpush.msra.mxu0 0.0
    %945 = vmatpush.msra.mxu0 0.0
    %946 = vmatpush.msra.mxu0 0.0
    %947 = vmatpush.msra.mxu0 0.0
    %948 = vmatpush.msra.mxu0 0.0
    %949 = vmatpush.msra.mxu0 0.0
    %950 = vmatpush.msra.mxu0 0.0
    %951 = vmatpush.msra.mxu0 0.0
    %952 = vmatpush.msra.mxu0 0.0
    %953 = vmatpush.msra.mxu0 0.0
    %954 = vmatpush.msra.mxu0 %v932
    %955 = vmatpush.msra.mxu0 %v931
    %956 = vmatpush.msra.mxu0 %v930
    %957 = vmatpush.msra.mxu0 %v929
    %958 = vmatmul.f32.gmra.mxu0 %v937
    %v959 = vpop.f32.mrf.mxu0
    %v960 = vadd.f32 %v935, %v959
    %961 = vmatmul.f32.gmra.mxu0 %v940
    %v962 = vpop.f32.mrf.mxu0
    %v963 = vadd.f32 %v935, %v962
    %964 = vdwg.mxu0
    %v965 = vmul.f32 %v960, %v790
    %v966 = vmul.f32 %v963, %v791
    %v967 = vmax.f32 %v965, 0.0
    %v968 = vmax.f32 %v966, 0.0
    %s969 = scalar_lea.vmem [#allocation5], 32
    %v970 = vld [vmem:[%s969] sm:$0xff]
    %v971 = vld [vmem:[%s969 + $0x8] sm:$0xff]
    %v972 = vld [vmem:[%s969 + $0x10] sm:$0xff]
    %v973 = vld [vmem:[%s969 + $0x18] sm:$0xff]
    %v975 = vsel %vm101, %v967, 0
    %v978 = vsel %vm101, %v968, 0
    %980 = vmatpush.msra.mxu0 0.0
    %981 = vmatpush.msra.mxu0 0.0
    %982 = vmatpush.msra.mxu0 0.0
    %983 = vmatpush.msra.mxu0 0.0
    %984 = vmatpush.msra.mxu0 0.0
    %985 = vmatpush.msra.mxu0 0.0
    %986 = vmatpush.msra.mxu0 0.0
    %987 = vmatpush.msra.mxu0 0.0
    %988 = vmatpush.msra.mxu0 0.0
    %989 = vmatpush.msra.mxu0 0.0
    %990 = vmatpush.msra.mxu0 0.0
    %991 = vmatpush.msra.mxu0 0.0
    %992 = vmatpush.msra.mxu0 %v973
    %993 = vmatpush.msra.mxu0 %v972
    %994 = vmatpush.msra.mxu0 %v971
    %995 = vmatpush.msra.mxu0 %v970
    %996 = vmatmul.f32.gmra.mxu0 %v975
    %v997 = vpop.f32.mrf.mxu0
    %v998 = vadd.f32 0.0, %v997
    %999 = vmatmul.f32.gmra.mxu0 %v978
    %v1000 = vpop.f32.mrf.mxu0
    %v1001 = vadd.f32 0.0, %v1000
    %1002 = vdwg.mxu0
    %v1004 = vsel %vm101, %v880, 0
    %v1007 = vsel %vm101, %v881, 0
    %1009 = vmatpush.msra.mxu0 0.0
    %1010 = vmatpush.msra.mxu0 0.0
    %1011 = vmatpush.msra.mxu0 0.0
    %1012 = vmatpush.msra.mxu0 0.0
    %1013 = vmatpush.msra.mxu0 0.0
    %1014 = vmatpush.msra.mxu0 0.0
    %1015 = vmatpush.msra.mxu0 0.0
    %1016 = vmatpush.msra.mxu0 0.0
    %1017 = vmatpush.msra.mxu0 0.0
    %1018 = vmatpush.msra.mxu0 0.0
    %1019 = vmatpush.msra.mxu0 0.0
    %1020 = vmatpush.msra.mxu0 0.0
    %1021 = vmatpush.msra.mxu0 %v885
    %1022 = vmatpush.msra.mxu0 %v884
    %1023 = vmatpush.msra.mxu0 %v883
    %1024 = vmatpush.msra.mxu0 %v882
    %1025 = vmatmul.f32.gmra.mxu0 %v1004
    %v1026 = vpop.f32.mrf.mxu0
    %v1027 = vadd.f32 %v998, %v1026
    %1028 = vmatmul.f32.gmra.mxu0 %v1007
    %v1029 = vpop.f32.mrf.mxu0
    %v1030 = vadd.f32 %v1001, %v1029
    %1031 = vdwg.mxu0
    %v1033 = vsel %vm537, %v772, 0
    %1035 = vmatpush.msra.mxu0 0.0
    %1036 = vmatpush.msra.mxu0 0.0
    %1037 = vmatpush.msra.mxu0 0.0
    %1038 = vmatpush.msra.mxu0 0.0
    %1039 = vmatpush.msra.mxu0 0.0
    %1040 = vmatpush.msra.mxu0 0.0
    %1041 = vmatpush.msra.mxu0 0.0
    %1042 = vmatpush.msra.mxu0 0.0
    %1043 = vmatpush.msra.mxu0 0.0
    %1044 = vmatpush.msra.mxu0 0.0
    %1045 = vmatpush.msra.mxu0 0.0
    %1046 = vmatpush.msra.mxu0 0.0
    %1047 = vmatpush.msra.mxu0 0.0
    %1048 = vmatpush.msra.mxu0 0.0
    %1049 = vmatpush.msra.mxu0 0.0
    %1050 = vmatpush.msra.mxu0 %v126
    %1051 = vmatmul.f32.gmra.mxu0 %v1033
    %v1052 = vpop.f32.mrf.mxu0
    %v1053 = vadd.f32 0.0, %v1052
    %1054 = vdwg.mxu0
    %v1056 = vsel %vm537, %v773, 0
    %1058 = vmatpush.msra.mxu0 0.0
    %1059 = vmatpush.msra.mxu0 0.0
    %1060 = vmatpush.msra.mxu0 0.0
    %1061 = vmatpush.msra.mxu0 0.0
    %1062 = vmatpush.msra.mxu0 0.0
    %1063 = vmatpush.msra.mxu0 0.0
    %1064 = vmatpush.msra.mxu0 0.0
    %1065 = vmatpush.msra.mxu0 0.0
    %1066 = vmatpush.msra.mxu0 0.0
    %1067 = vmatpush.msra.mxu0 0.0
    %1068 = vmatpush.msra.mxu0 0.0
    %1069 = vmatpush.msra.mxu0 0.0
    %1070 = vmatpush.msra.mxu0 0.0
    %1071 = vmatpush.msra.mxu0 0.0
    %1072 = vmatpush.msra.mxu0 0.0
    %1073 = vmatpush.msra.mxu0 %v129
    %1074 = vmatmul.f32.gmra.mxu0 %v1056
    %v1075 = vpop.f32.mrf.mxu0
    %v1076 = vadd.f32 0.0, %v1075
    %1077 = vdwg.mxu0
    %v1078 = vadd.f32 %v1053, %v126
    %v1079 = vadd.f32 %v1076, %v129
    %s1080 = scalar_lea.vmem [#allocation2], 64
    %v1081 = vld [vmem:[%s1080] sm:$0xff]
    %v1082 = vld [vmem:[%s1080 + $0x8] sm:$0xff]
    %v1083 = vld [vmem:[%s1080 + $0x10] sm:$0xff]
    %v1084 = vld [vmem:[%s1080 + $0x18] sm:$0xff]
    %v1085 = vld [vmem:[%s13 + $0x2] sm:$0x1]
    %v1086 = vmul.f32 %v1085, 2.0
    %v1087 = vperm.slane %v1086, 0
    %v1089 = vsel %vm101, %v1078, 0
    %v1092 = vsel %vm101, %v1079, 0
    %1094 = vmatpush.msra.mxu0 0.0
    %1095 = vmatpush.msra.mxu0 0.0
    %1096 = vmatpush.msra.mxu0 0.0
    %1097 = vmatpush.msra.mxu0 0.0
    %1098 = vmatpush.msra.mxu0 0.0
    %1099 = vmatpush.msra.mxu0 0.0
    %1100 = vmatpush.msra.mxu0 0.0
    %1101 = vmatpush.msra.mxu0 0.0
    %1102 = vmatpush.msra.mxu0 0.0
    %1103 = vmatpush.msra.mxu0 0.0
    %1104 = vmatpush.msra.mxu0 0.0
    %1105 = vmatpush.msra.mxu0 0.0
    %1106 = vmatpush.msra.mxu0 %v1084
    %1107 = vmatpush.msra.mxu0 %v1083
    %1108 = vmatpush.msra.mxu0 %v1082
    %1109 = vmatpush.msra.mxu0 %v1081
    %1110 = vmatmul.f32.gmra.mxu0 %v1089
    %v1111 = vpop.f32.mrf.mxu0
    %v1112 = vadd.f32 %v1087, %v1111
    %1113 = vmatmul.f32.gmra.mxu0 %v1092
    %v1114 = vpop.f32.mrf.mxu0
    %v1115 = vadd.f32 %v1087, %v1114
    %1116 = vdwg.mxu0
    %v1117 = vmul.f32 %v1112, %v792
    %v1118 = vmul.f32 %v1115, %v793
    %v1119 = vmax.f32 %v1117, 0.0
    %v1120 = vmax.f32 %v1118, 0.0
    %s1121 = scalar_lea.vmem [#allocation5], 64
    %v1122 = vld [vmem:[%s1121] sm:$0xff]
    %v1123 = vld [vmem:[%s1121 + $0x8] sm:$0xff]
    %v1124 = vld [vmem:[%s1121 + $0x10] sm:$0xff]
    %v1125 = vld [vmem:[%s1121 + $0x18] sm:$0xff]
    %v1127 = vsel %vm101, %v1119, 0
    %v1130 = vsel %vm101, %v1120, 0
    %1132 = vmatpush.msra.mxu0 0.0
    %1133 = vmatpush.msra.mxu0 0.0
    %1134 = vmatpush.msra.mxu0 0.0
    %1135 = vmatpush.msra.mxu0 0.0
    %1136 = vmatpush.msra.mxu0 0.0
    %1137 = vmatpush.msra.mxu0 0.0
    %1138 = vmatpush.msra.mxu0 0.0
    %1139 = vmatpush.msra.mxu0 0.0
    %1140 = vmatpush.msra.mxu0 0.0
    %1141 = vmatpush.msra.mxu0 0.0
    %1142 = vmatpush.msra.mxu0 0.0
    %1143 = vmatpush.msra.mxu0 0.0
    %1144 = vmatpush.msra.mxu0 %v1125
    %1145 = vmatpush.msra.mxu0 %v1124
    %1146 = vmatpush.msra.mxu0 %v1123
    %1147 = vmatpush.msra.mxu0 %v1122
    %1148 = vmatmul.f32.gmra.mxu0 %v1127
    %v1149 = vpop.f32.mrf.mxu0
    %v1150 = vadd.f32 0.0, %v1149
    %1151 = vmatmul.f32.gmra.mxu0 %v1130
    %v1152 = vpop.f32.mrf.mxu0
    %v1153 = vadd.f32 0.0, %v1152
    %1154 = vdwg.mxu0
    %v1155 = vadd.f32 %v1027, %v1150
    %v1156 = vadd.f32 %v1030, %v1153
    %1157 = vmatpush.msra.mxu0 0.0
    %1158 = vmatpush.msra.mxu0 0.0
    %1159 = vmatpush.msra.mxu0 0.0
    %1160 = vmatpush.msra.mxu0 0.0
    %1161 = vmatpush.msra.mxu0 0.0
    %1162 = vmatpush.msra.mxu0 0.0
    %1163 = vmatpush.msra.mxu0 0.0
    %1164 = vmatpush.msra.mxu0 0.0
    %1165 = vmatpush.msra.mxu0 0.0
    %1166 = vmatpush.msra.mxu0 0.0
    %1167 = vmatpush.msra.mxu0 0.0
    %1168 = vmatpush.msra.mxu0 0.0
    %1169 = vmatpush.msra.mxu0 0.0
    %1170 = vmatpush.msra.mxu0 0.0
    %1171 = vmatpush.msra.mxu0 0.0
    %1172 = vmatpush.msra.mxu0 %v1119
    %1173 = vmatmul.f32.gmra.mxu0 %v1033
    %v1174 = vpop.f32.mrf.mxu0
    %v1175 = vadd.f32 0.0, %v1174
    %1176 = vdwg.mxu0
    %1177 = vmatpush.msra.mxu0 0.0
    %1178 = vmatpush.msra.mxu0 0.0
    %1179 = vmatpush.msra.mxu0 0.0
    %1180 = vmatpush.msra.mxu0 0.0
    %1181 = vmatpush.msra.mxu0 0.0
    %1182 = vmatpush.msra.mxu0 0.0
    %1183 = vmatpush.msra.mxu0 0.0
    %1184 = vmatpush.msra.mxu0 0.0
    %1185 = vmatpush.msra.mxu0 0.0
    %1186 = vmatpush.msra.mxu0 0.0
    %1187 = vmatpush.msra.mxu0 0.0
    %1188 = vmatpush.msra.mxu0 0.0
    %1189 = vmatpush.msra.mxu0 0.0
    %1190 = vmatpush.msra.mxu0 0.0
    %1191 = vmatpush.msra.mxu0 0.0
    %1192 = vmatpush.msra.mxu0 %v1120
    %1193 = vmatmul.f32.gmra.mxu0 %v1056
    %v1194 = vpop.f32.mrf.mxu0
    %v1195 = vadd.f32 0.0, %v1194
    %1196 = vdwg.mxu0
    %v1197 = vadd.f32 %v1175, %v1119
    %v1198 = vadd.f32 %v1195, %v1120
    %s1199 = scalar_lea.vmem [#allocation2], 96
    %v1200 = vld [vmem:[%s1199] sm:$0xff]
    %v1201 = vld [vmem:[%s1199 + $0x8] sm:$0xff]
    %v1202 = vld [vmem:[%s1199 + $0x10] sm:$0xff]
    %v1203 = vld [vmem:[%s1199 + $0x18] sm:$0xff]
    %v1204 = vld [vmem:[%s13 + $0x3] sm:$0x1]
    %v1205 = vmul.f32 %v1204, 2.0
    %v1206 = vperm.slane %v1205, 0
    %v1208 = vsel %vm101, %v1197, 0
    %v1211 = vsel %vm101, %v1198, 0
    %1213 = vmatpush.msra.mxu0 0.0
    %1214 = vmatpush.msra.mxu0 0.0
    %1215 = vmatpush.msra.mxu0 0.0
    %1216 = vmatpush.msra.mxu0 0.0
    %1217 = vmatpush.msra.mxu0 0.0
    %1218 = vmatpush.msra.mxu0 0.0
    %1219 = vmatpush.msra.mxu0 0.0
    %1220 = vmatpush.msra.mxu0 0.0
    %1221 = vmatpush.msra.mxu0 0.0
    %1222 = vmatpush.msra.mxu0 0.0
    %1223 = vmatpush.msra.mxu0 0.0
    %1224 = vmatpush.msra.mxu0 0.0
    %1225 = vmatpush.msra.mxu0 %v1203
    %1226 = vmatpush.msra.mxu0 %v1202
    %1227 = vmatpush.msra.mxu0 %v1201
    %1228 = vmatpush.msra.mxu0 %v1200
    %1229 = vmatmul.f32.gmra.mxu0 %v1208
    %v1230 = vpop.f32.mrf.mxu0
    %v1231 = vadd.f32 %v1206, %v1230
    %1232 = vmatmul.f32.gmra.mxu0 %v1211
    %v1233 = vpop.f32.mrf.mxu0
    %v1234 = vadd.f32 %v1206, %v1233
    %1235 = vdwg.mxu0
    %v1236 = vmul.f32 %v1231, %v792
    %v1237 = vmul.f32 %v1234, %v793
    %v1238 = vmax.f32 %v1236, 0.0
    %v1239 = vmax.f32 %v1237, 0.0
    %s1240 = scalar_lea.vmem [#allocation5], 96
    %v1241 = vld [vmem:[%s1240] sm:$0xff]
    %v1242 = vld [vmem:[%s1240 + $0x8] sm:$0xff]
    %v1243 = vld [vmem:[%s1240 + $0x10] sm:$0xff]
    %v1244 = vld [vmem:[%s1240 + $0x18] sm:$0xff]
    %v1246 = vsel %vm101, %v1238, 0
    %v1249 = vsel %vm101, %v1239, 0
    %1251 = vmatpush.msra.mxu0 0.0
    %1252 = vmatpush.msra.mxu0 0.0
    %1253 = vmatpush.msra.mxu0 0.0
    %1254 = vmatpush.msra.mxu0 0.0
    %1255 = vmatpush.msra.mxu0 0.0
    %1256 = vmatpush.msra.mxu0 0.0
    %1257 = vmatpush.msra.mxu0 0.0
    %1258 = vmatpush.msra.mxu0 0.0
    %1259 = vmatpush.msra.mxu0 0.0
    %1260 = vmatpush.msra.mxu0 0.0
    %1261 = vmatpush.msra.mxu0 0.0
    %1262 = vmatpush.msra.mxu0 0.0
    %1263 = vmatpush.msra.mxu0 %v1244
    %1264 = vmatpush.msra.mxu0 %v1243
    %1265 = vmatpush.msra.mxu0 %v1242
    %1266 = vmatpush.msra.mxu0 %v1241
    %1267 = vmatmul.f32.gmra.mxu0 %v1246
    %v1268 = vpop.f32.mrf.mxu0
    %v1269 = vadd.f32 0.0, %v1268
    %1270 = vmatmul.f32.gmra.mxu0 %v1249
    %v1271 = vpop.f32.mrf.mxu0
    %v1272 = vadd.f32 0.0, %v1271
    %1273 = vdwg.mxu0
    %v1274 = vadd.f32 %v1155, %v1269
    %v1275 = vadd.f32 %v1156, %v1272
    %v1276 = vadd.f32 %v126, %v1274
    %v1277 = vadd.f32 %v129, %v1275
    %v1278 = vld [vmem:[%s14] sm:$0x1]
    %v1279 = vperm.slane %v1278, 0
    %v1280 = vadd.f32 %v1276, %v1279
    %v1281 = vadd.f32 %v1277, %v1279
    %v1283 = vsel %vm101, %v1280, 0
    %v1286 = vsel %vm101, %v1281, 0
    %1288 = vmatpush.msra.mxu0 0.0
    %1289 = vmatpush.msra.mxu0 0.0
    %1290 = vmatpush.msra.mxu0 0.0
    %1291 = vmatpush.msra.mxu0 0.0
    %1292 = vmatpush.msra.mxu0 0.0
    %1293 = vmatpush.msra.mxu0 0.0
    %1294 = vmatpush.msra.mxu0 0.0
    %1295 = vmatpush.msra.mxu0 0.0
    %1296 = vmatpush.msra.mxu0 0.0
    %1297 = vmatpush.msra.mxu0 0.0
    %1298 = vmatpush.msra.mxu0 0.0
    %1299 = vmatpush.msra.mxu0 0.0
    %1300 = vmatpush.msra.mxu0 %v311
    %1301 = vmatpush.msra.mxu0 %v310
    %1302 = vmatpush.msra.mxu0 %v309
    %1303 = vmatpush.msra.mxu0 %v308
    %1304 = vmatmul.f32.gmra.mxu0 %v1283
    %v1305 = vpop.f32.mrf.mxu0
    %v1306 = vadd.f32 %v163, %v1305
    %1307 = vmatmul.f32.gmra.mxu0 %v1286
    %v1308 = vpop.f32.mrf.mxu0
    %v1309 = vadd.f32 %v166, %v1308
    %1310 = vdwg.mxu0
    %1311 = vmatpush.msra.mxu0 0.0
    %1312 = vmatpush.msra.mxu0 0.0
    %1313 = vmatpush.msra.mxu0 0.0
    %1314 = vmatpush.msra.mxu0 0.0
    %1315 = vmatpush.msra.mxu0 0.0
    %1316 = vmatpush.msra.mxu0 0.0
    %1317 = vmatpush.msra.mxu0 0.0
    %1318 = vmatpush.msra.mxu0 0.0
    %1319 = vmatpush.msra.mxu0 0.0
    %1320 = vmatpush.msra.mxu0 0.0
    %1321 = vmatpush.msra.mxu0 0.0
    %1322 = vmatpush.msra.mxu0 0.0
    %1323 = vmatpush.msra.mxu0 %v344
    %1324 = vmatpush.msra.mxu0 %v343
    %1325 = vmatpush.msra.mxu0 %v342
    %1326 = vmatpush.msra.mxu0 %v341
    %1327 = vmatmul.f32.gmra.mxu0 %v1283
    %v1328 = vpop.f32.mrf.mxu0
    %v1329 = vadd.f32 %v346, %v1328
    %1330 = vmatmul.f32.gmra.mxu0 %v1286
    %v1331 = vpop.f32.mrf.mxu0
    %v1332 = vadd.f32 %v346, %v1331
    %1333 = vdwg.mxu0
    %v1335 = vsel %vm370, %v1306, 0
    %v1338 = vsel %vm370, %v1329, 0
    %1340 = vmatpush.xpose.msra.mxu0 0.0
    %1341 = vmatpush.xpose.msra.mxu0 0.0
    %1342 = vmatpush.xpose.msra.mxu0 0.0
    %1343 = vmatpush.xpose.msra.mxu0 0.0
    %1344 = vmatpush.xpose.msra.mxu0 0.0
    %1345 = vmatpush.xpose.msra.mxu0 0.0
    %1346 = vmatpush.xpose.msra.mxu0 0.0
    %1347 = vmatpush.xpose.msra.mxu0 0.0
    %1348 = vmatpush.xpose.msra.mxu0 0.0
    %1349 = vmatpush.xpose.msra.mxu0 0.0
    %1350 = vmatpush.xpose.msra.mxu0 0.0
    %1351 = vmatpush.xpose.msra.mxu0 0.0
    %1352 = vmatpush.xpose.msra.mxu0 0.0
    %1353 = vmatpush.xpose.msra.mxu0 0.0
    %1354 = vmatpush.xpose.msra.mxu0 0.0
    %1355 = vmatpush.xpose.msra.mxu0 %v1338
    %1356 = vmatmul.f32.gmra.mxu0 %v1335
    %v1357 = vpop.f32.mrf.mxu0
    %v1358 = vadd.f32 0.0, %v1357
    %1359 = vdwg.mxu0
    %v1361 = vsel %vm370, %v1309, 0
    %v1364 = vsel %vm370, %v1332, 0
    %1366 = vmatpush.xpose.msra.mxu0 0.0
    %1367 = vmatpush.xpose.msra.mxu0 0.0
    %1368 = vmatpush.xpose.msra.mxu0 0.0
    %1369 = vmatpush.xpose.msra.mxu0 0.0
    %1370 = vmatpush.xpose.msra.mxu0 0.0
    %1371 = vmatpush.xpose.msra.mxu0 0.0
    %1372 = vmatpush.xpose.msra.mxu0 0.0
    %1373 = vmatpush.xpose.msra.mxu0 0.0
    %1374 = vmatpush.xpose.msra.mxu0 0.0
    %1375 = vmatpush.xpose.msra.mxu0 0.0
    %1376 = vmatpush.xpose.msra.mxu0 0.0
    %1377 = vmatpush.xpose.msra.mxu0 0.0
    %1378 = vmatpush.xpose.msra.mxu0 0.0
    %1379 = vmatpush.xpose.msra.mxu0 0.0
    %1380 = vmatpush.xpose.msra.mxu0 0.0
    %1381 = vmatpush.xpose.msra.mxu0 %v1364
    %1382 = vmatmul.f32.gmra.mxu0 %v1361
    %v1383 = vpop.f32.mrf.mxu0
    %v1384 = vadd.f32 0.0, %v1383
    %1385 = vdwg.mxu0
    %1386 = vmatpush.msra.mxu0 0.0
    %1387 = vmatpush.msra.mxu0 0.0
    %1388 = vmatpush.msra.mxu0 0.0
    %1389 = vmatpush.msra.mxu0 0.0
    %1390 = vmatpush.msra.mxu0 0.0
    %1391 = vmatpush.msra.mxu0 0.0
    %1392 = vmatpush.msra.mxu0 0.0
    %1393 = vmatpush.msra.mxu0 0.0
    %1394 = vmatpush.msra.mxu0 0.0
    %1395 = vmatpush.msra.mxu0 0.0
    %1396 = vmatpush.msra.mxu0 0.0
    %1397 = vmatpush.msra.mxu0 0.0
    %1398 = vmatpush.msra.mxu0 %v427
    %1399 = vmatpush.msra.mxu0 %v426
    %1400 = vmatpush.msra.mxu0 %v425
    %1401 = vmatpush.msra.mxu0 %v424
    %1402 = vmatmul.f32.gmra.mxu0 %v1283
    %v1403 = vpop.f32.mrf.mxu0
    %v1404 = vadd.f32 %v193, %v1403
    %1405 = vmatmul.f32.gmra.mxu0 %v1286
    %v1406 = vpop.f32.mrf.mxu0
    %v1407 = vadd.f32 %v196, %v1406
    %1408 = vdwg.mxu0
    %1409 = vmatpush.msra.mxu0 0.0
    %1410 = vmatpush.msra.mxu0 0.0
    %1411 = vmatpush.msra.mxu0 0.0
    %1412 = vmatpush.msra.mxu0 0.0
    %1413 = vmatpush.msra.mxu0 0.0
    %1414 = vmatpush.msra.mxu0 0.0
    %1415 = vmatpush.msra.mxu0 0.0
    %1416 = vmatpush.msra.mxu0 0.0
    %1417 = vmatpush.msra.mxu0 0.0
    %1418 = vmatpush.msra.mxu0 0.0
    %1419 = vmatpush.msra.mxu0 0.0
    %1420 = vmatpush.msra.mxu0 0.0
    %1421 = vmatpush.msra.mxu0 %v455
    %1422 = vmatpush.msra.mxu0 %v454
    %1423 = vmatpush.msra.mxu0 %v453
    %1424 = vmatpush.msra.mxu0 %v452
    %1425 = vmatmul.f32.gmra.mxu0 %v1283
    %v1426 = vpop.f32.mrf.mxu0
    %v1427 = vadd.f32 %v457, %v1426
    %1428 = vmatmul.f32.gmra.mxu0 %v1286
    %v1429 = vpop.f32.mrf.mxu0
    %v1430 = vadd.f32 %v457, %v1429
    %1431 = vdwg.mxu0
    %v1433 = vsel %vm370, %v1404, 0
    %v1436 = vsel %vm370, %v1427, 0
    %1438 = vmatpush.xpose.msra.mxu0 0.0
    %1439 = vmatpush.xpose.msra.mxu0 0.0
    %1440 = vmatpush.xpose.msra.mxu0 0.0
    %1441 = vmatpush.xpose.msra.mxu0 0.0
    %1442 = vmatpush.xpose.msra.mxu0 0.0
    %1443 = vmatpush.xpose.msra.mxu0 0.0
    %1444 = vmatpush.xpose.msra.mxu0 0.0
    %1445 = vmatpush.xpose.msra.mxu0 0.0
    %1446 = vmatpush.xpose.msra.mxu0 0.0
    %1447 = vmatpush.xpose.msra.mxu0 0.0
    %1448 = vmatpush.xpose.msra.mxu0 0.0
    %1449 = vmatpush.xpose.msra.mxu0 0.0
    %1450 = vmatpush.xpose.msra.mxu0 0.0
    %1451 = vmatpush.xpose.msra.mxu0 0.0
    %1452 = vmatpush.xpose.msra.mxu0 0.0
    %1453 = vmatpush.xpose.msra.mxu0 %v1436
    %1454 = vmatmul.f32.gmra.mxu0 %v1433
    %v1455 = vpop.f32.mrf.mxu0
    %v1456 = vadd.f32 0.0, %v1455
    %1457 = vdwg.mxu0
    %v1459 = vsel %vm370, %v1407, 0
    %v1462 = vsel %vm370, %v1430, 0
    %1464 = vmatpush.xpose.msra.mxu0 0.0
    %1465 = vmatpush.xpose.msra.mxu0 0.0
    %1466 = vmatpush.xpose.msra.mxu0 0.0
    %1467 = vmatpush.xpose.msra.mxu0 0.0
    %1468 = vmatpush.xpose.msra.mxu0 0.0
    %1469 = vmatpush.xpose.msra.mxu0 0.0
    %1470 = vmatpush.xpose.msra.mxu0 0.0
    %1471 = vmatpush.xpose.msra.mxu0 0.0
    %1472 = vmatpush.xpose.msra.mxu0 0.0
    %1473 = vmatpush.xpose.msra.mxu0 0.0
    %1474 = vmatpush.xpose.msra.mxu0 0.0
    %1475 = vmatpush.xpose.msra.mxu0 0.0
    %1476 = vmatpush.xpose.msra.mxu0 0.0
    %1477 = vmatpush.xpose.msra.mxu0 0.0
    %1478 = vmatpush.xpose.msra.mxu0 0.0
    %1479 = vmatpush.xpose.msra.mxu0 %v1462
    %1480 = vmatmul.f32.gmra.mxu0 %v1459
    %v1481 = vpop.f32.mrf.mxu0
    %v1482 = vadd.f32 0.0, %v1481
    %1483 = vdwg.mxu0
    %v1484 = vsel %vm302, %v1358, 0.0
    %v1485 = vsel %vm303, %v1384, 0.0
    %v1486 = vsel %vm302, %v1456, 0.0
    %v1487 = vsel %vm303, %v1482, 0.0
    %v1488 = vsel %vm537, %v1484, 0.0
    %1489 = vadd.xlane.f32.xlu0 %v1488
    %v1490 = vpop.xlane.xlu0 %1489
    %v1491 = vsel %vm537, %v1485, 0.0
    %1492 = vadd.xlane.f32.xlu0 %v1491
    %v1493 = vpop.xlane.xlu0 %1492
    %v1494 = vsel %vm537, %v1486, 0.0
    %1495 = vadd.xlane.f32.xlu0 %v1494
    %v1496 = vpop.xlane.xlu0 %1495
    %v1497 = vsel %vm537, %v1487, 0.0
    %1498 = vadd.xlane.f32.xlu0 %v1497
    %v1499 = vpop.xlane.xlu0 %1498
    %v1500 = vmul.f32 %v1490, %v252
    %v1501 = vmul.f32 %v1493, %v301
    %v1502 = vmul.f32 %v1496, %v252
    %v1503 = vmul.f32 %v1499, %v301
    %1505 = vset.pattern.permute.xlu0 0
    %1506 = vperm.xlu0 %1505, %v1500
    %v1507 = vpop.permute.xlu0 %1506
    %1510 = vset.pattern.permute.xlu0 0
    %1511 = vperm.xlu0 %1510, %v1501
    %v1512 = vpop.permute.xlu0 %1511
    %1515 = vset.pattern.permute.xlu0 0
    %1516 = vperm.xlu0 %1515, %v1502
    %v1517 = vpop.permute.xlu0 %1516
    %1520 = vset.pattern.permute.xlu0 0
    %1521 = vperm.xlu0 %1520, %v1503
    %v1522 = vpop.permute.xlu0 %1521
    %v1524 = vsub.f32 %v1358, %v1507
    %v1525 = vsub.f32 %v1384, %v1512
    %v1526 = vsub.f32 %v1456, %v1517
    %v1527 = vsub.f32 %v1482, %v1522
    %v1528 = vmul.f32 %v1524, %v1524
    %v1529 = vmul.f32 %v1525, %v1525
    %v1530 = vmul.f32 %v1526, %v1526
    %v1531 = vmul.f32 %v1527, %v1527
    %v1532 = vsel %vm302, %v1528, 0.0
    %v1533 = vsel %vm303, %v1529, 0.0
    %v1534 = vsel %vm302, %v1530, 0.0
    %v1535 = vsel %vm303, %v1531, 0.0
    %v1536 = vsel %vm537, %v1532, 0.0
    %1537 = vadd.xlane.f32.xlu0 %v1536
    %v1538 = vpop.xlane.xlu0 %1537
    %v1539 = vsel %vm537, %v1533, 0.0
    %1540 = vadd.xlane.f32.xlu0 %v1539
    %v1541 = vpop.xlane.xlu0 %1540
    %v1542 = vsel %vm537, %v1534, 0.0
    %1543 = vadd.xlane.f32.xlu0 %v1542
    %v1544 = vpop.xlane.xlu0 %1543
    %v1545 = vsel %vm537, %v1535, 0.0
    %1546 = vadd.xlane.f32.xlu0 %v1545
    %v1547 = vpop.xlane.xlu0 %1546
    %v1548 = vmul.f32 %v1538, %v252
    %v1549 = vmul.f32 %v1541, %v301
    %v1550 = vmul.f32 %v1544, %v252
    %v1551 = vmul.f32 %v1547, %v301
    %v1552 = vrsqrt.pop %v1548
    %v1553 = vmul.f32 %v1552, %v1548
    %v1554 = vmul.f32 %v1553, %v1552
    %v1555 = vmul.f32 0.5, %v1554
    %v1556 = vsub.f32 1.5, %v1555
    %v1557 = vmul.f32 %v1552, %v1556
    %vm1558 = vweird.f32 %v1548
    %vm1559 = vweird.f32 %v1552
    %vm1560 = vmor %vm1558, %vm1559
    %v1561 = vsel %vm1560, %v1552, %v1557
    %v1562 = vrsqrt.pop %v1549
    %v1563 = vmul.f32 %v1562, %v1549
    %v1564 = vmul.f32 %v1563, %v1562
    %v1565 = vmul.f32 0.5, %v1564
    %v1566 = vsub.f32 1.5, %v1565
    %v1567 = vmul.f32 %v1562, %v1566
    %vm1568 = vweird.f32 %v1549
    %vm1569 = vweird.f32 %v1562
    %vm1570 = vmor %vm1568, %vm1569
    %v1571 = vsel %vm1570, %v1562, %v1567
    %v1572 = vrsqrt.pop %v1550
    %v1573 = vmul.f32 %v1572, %v1550
    %v1574 = vmul.f32 %v1573, %v1572
    %v1575 = vmul.f32 0.5, %v1574
    %v1576 = vsub.f32 1.5, %v1575
    %v1577 = vmul.f32 %v1572, %v1576
    %vm1578 = vweird.f32 %v1550
    %vm1579 = vweird.f32 %v1572
    %vm1580 = vmor %vm1578, %vm1579
    %v1581 = vsel %vm1580, %v1572, %v1577
    %v1582 = vrsqrt.pop %v1551
    %v1583 = vmul.f32 %v1582, %v1551
    %v1584 = vmul.f32 %v1583, %v1582
    %v1585 = vmul.f32 0.5, %v1584
    %v1586 = vsub.f32 1.5, %v1585
    %v1587 = vmul.f32 %v1582, %v1586
    %vm1588 = vweird.f32 %v1551
    %vm1589 = vweird.f32 %v1582
    %vm1590 = vmor %vm1588, %vm1589
    %v1591 = vsel %vm1590, %v1582, %v1587
    %1593 = vset.pattern.permute.xlu0 0
    %1594 = vperm.xlu0 %1593, %v1561
    %v1595 = vpop.permute.xlu0 %1594
    %1598 = vset.pattern.permute.xlu0 0
    %1599 = vperm.xlu0 %1598, %v1571
    %v1600 = vpop.permute.xlu0 %1599
    %1603 = vset.pattern.permute.xlu0 0
    %1604 = vperm.xlu0 %1603, %v1581
    %v1605 = vpop.permute.xlu0 %1604
    %1608 = vset.pattern.permute.xlu0 0
    %1609 = vperm.xlu0 %1608, %v1591
    %v1610 = vpop.permute.xlu0 %1609
    %v1612 = vmul.f32 %v1524, %v1595
    %v1613 = vmul.f32 %v1525, %v1600
    %v1614 = vmul.f32 %v1526, %v1605
    %v1615 = vmul.f32 %v1527, %v1610
    %vm1616 = vcmp.ne.f32.partialorder %v1612, %v1612
    %vm1617 = vcmp.ne.f32.partialorder %v1613, %v1613
    %vm1618 = vcmp.ne.f32.partialorder %v1614, %v1614
    %vm1619 = vcmp.ne.f32.partialorder %v1615, %v1615
    %v1620 = vsel %vm1616, 1.0, 0.0
    %v1621 = vsel %vm1617, 1.0, 0.0
    %v1622 = vsel %vm1618, 1.0, 0.0
    %v1623 = vsel %vm1619, 1.0, 0.0
    %v1624 = vsel %vm537, %v1620, -inf
    %v1625 = vsel %vm537, %v1621, -inf
    %v1626 = vsel %vm537, %v1622, -inf
    %v1627 = vsel %vm537, %v1623, -inf
    %v1628 = vmax.f32 %v1624, %v1625
    %v1629 = vmax.f32 %v1626, %v1627
    %v1630 = vmax.f32 %v1628, %v1629
    %1631 = vmax.xlane.f32.xlu0 %v1630
    %v1632 = vpop.xlane.xlu0 %1631
    %v1633 = vrot.slane %v1632, 4
    %v1634 = vmax.f32 %v1632, %v1633
    %v1635 = vrot.slane %v1634, 2
    %v1636 = vmax.f32 %v1634, %v1635
    %v1637 = vrot.slane %v1636, 1
    %v1638 = vmax.f32 %v1636, %v1637
    %s1639 = vtos %v1638
    %p1640 = scmp.gt.f32.partialorder %s1639, 0.0
    %s1641 = scalar_select %p1640, 1, 0
    %v1642 = vstv %s1641
    %vm1643 = vcmp.eq.s32.totalorder %v1642, 1
    %v1644 = vsel %vm1643, %v1358, %v1612
    %v1645 = vsel %vm1643, %v1384, %v1613
    %v1646 = vsel %vm1643, %v1456, %v1614
    %v1647 = vsel %vm1643, %v1482, %v1615
    %vm1648 = vcmp.lt.f32.partialorder %v1644, 0.0
    %vm1649 = vcmp.lt.f32.partialorder %v1645, 0.0
    %vm1650 = vcmp.lt.f32.partialorder %v1646, 0.0
    %vm1651 = vcmp.lt.f32.partialorder %v1647, 0.0
    %vm1652 = vmor %vm1648, %vm306
    %vm1653 = vmor %vm1649, %vm307
    %vm1654 = vmor %vm1650, %vm306
    %vm1655 = vmor %vm1651, %vm307
    %v1656 = vsel %vm1652, -1e+09, %v1644
    %v1657 = vsel %vm1653, -1e+09, %v1645
    %v1658 = vsel %vm1654, -1e+09, %v1646
    %v1659 = vsel %vm1655, -1e+09, %v1647
    %v1660 = vsel %vm537, %v1656, -inf
    %1661 = vmax.xlane.f32.xlu0 %v1660
    %v1662 = vpop.xlane.xlu0 %1661
    %v1663 = vsel %vm537, %v1657, -inf
    %1664 = vmax.xlane.f32.xlu0 %v1663
    %v1665 = vpop.xlane.xlu0 %1664
    %v1666 = vsel %vm537, %v1658, -inf
    %1667 = vmax.xlane.f32.xlu0 %v1666
    %v1668 = vpop.xlane.xlu0 %1667
    %v1669 = vsel %vm537, %v1659, -inf
    %1670 = vmax.xlane.f32.xlu0 %v1669
    %v1671 = vpop.xlane.xlu0 %1670
    %v1672 = vsub.f32 %v1656, %v1662
    %v1673 = vsub.f32 %v1657, %v1665
    %v1674 = vsub.f32 %v1658, %v1668
    %v1675 = vsub.f32 %v1659, %v1671
    %v1676 = vmul.f32 %v1672, 1.442695
    %v1677 = vpow.pop %v1676
    %v1678 = vmul.f32 %v1673, 1.442695
    %v1679 = vpow.pop %v1678
    %v1680 = vmul.f32 %v1674, 1.442695
    %v1681 = vpow.pop %v1680
    %v1682 = vmul.f32 %v1675, 1.442695
    %v1683 = vpow.pop %v1682
    %v1684 = vsel %vm304, %v1677, 0.0
    %v1685 = vsel %vm305, %v1679, 0.0
    %v1686 = vsel %vm304, %v1681, 0.0
    %v1687 = vsel %vm305, %v1683, 0.0
    %v1688 = vadd.f32 %v1684, 1e-10
    %v1689 = vadd.f32 %v1685, 1e-10
    %v1690 = vadd.f32 %v1686, 1e-10
    %v1691 = vadd.f32 %v1687, 1e-10
    %v1692 = vsel %vm537, %v1688, 0.0
    %1693 = vadd.xlane.f32.xlu0 %v1692
    %v1694 = vpop.xlane.xlu0 %1693
    %v1695 = vsel %vm537, %v1689, 0.0
    %1696 = vadd.xlane.f32.xlu0 %v1695
    %v1697 = vpop.xlane.xlu0 %1696
    %v1698 = vsel %vm537, %v1690, 0.0
    %1699 = vadd.xlane.f32.xlu0 %v1698
    %v1700 = vpop.xlane.xlu0 %1699
    %v1701 = vsel %vm537, %v1691, 0.0
    %1702 = vadd.xlane.f32.xlu0 %v1701
    %v1703 = vpop.xlane.xlu0 %1702
    %v1704 = vrcp.pop %v1694
    %v1705 = vrcp.pop %v1697
    %v1706 = vrcp.pop %v1700
    %v1707 = vrcp.pop %v1703
    %v1708 = vmul.f32 %v1688, %v1704
    %v1709 = vmul.f32 %v1689, %v1705
    %v1710 = vmul.f32 %v1690, %v1706
    %v1711 = vmul.f32 %v1691, %v1707
    %vm1712 = vmxor %vm1648, 1
    %vm1713 = vmxor %vm1649, 1
    %vm1714 = vmxor %vm1650, 1
    %vm1715 = vmxor %vm1651, 1
    %vm1716 = vmand %vm304, %vm1712
    %vm1717 = vmand %vm305, %vm1713
    %vm1718 = vmand %vm304, %vm1714
    %vm1719 = vmand %vm305, %vm1715
    %v1720 = vsel %vm1716, %v1708, 0.0
    %v1721 = vsel %vm1717, %v1709, 0.0
    %v1722 = vsel %vm1718, %v1710, 0.0
    %v1723 = vsel %vm1719, %v1711, 0.0
    %v1724 = vsel %vm537, %v1720, 0.0
    %1725 = vadd.xlane.f32.xlu0 %v1724
    %v1726 = vpop.xlane.xlu0 %1725
    %v1727 = vsel %vm537, %v1721, 0.0
    %1728 = vadd.xlane.f32.xlu0 %v1727
    %v1729 = vpop.xlane.xlu0 %1728
    %v1730 = vsel %vm537, %v1722, 0.0
    %1731 = vadd.xlane.f32.xlu0 %v1730
    %v1732 = vpop.xlane.xlu0 %1731
    %v1733 = vsel %vm537, %v1723, 0.0
    %1734 = vadd.xlane.f32.xlu0 %v1733
    %v1735 = vpop.xlane.xlu0 %1734
    %v1736 = vadd.f32 %v1726, 1.0
    %v1737 = vadd.f32 %v1729, 1.0
    %v1738 = vadd.f32 %v1732, 1.0
    %v1739 = vadd.f32 %v1735, 1.0
    %v1740 = vrcp.pop %v1736
    %v1741 = vrcp.pop %v1737
    %v1742 = vrcp.pop %v1738
    %v1743 = vrcp.pop %v1739
    %v1745 = vsel %vm537, %v1720, 0
    %1747 = vmatpush.msra.mxu0 0.0
    %1748 = vmatpush.msra.mxu0 0.0
    %1749 = vmatpush.msra.mxu0 0.0
    %1750 = vmatpush.msra.mxu0 0.0
    %1751 = vmatpush.msra.mxu0 0.0
    %1752 = vmatpush.msra.mxu0 0.0
    %1753 = vmatpush.msra.mxu0 0.0
    %1754 = vmatpush.msra.mxu0 0.0
    %1755 = vmatpush.msra.mxu0 0.0
    %1756 = vmatpush.msra.mxu0 0.0
    %1757 = vmatpush.msra.mxu0 0.0
    %1758 = vmatpush.msra.mxu0 0.0
    %1759 = vmatpush.msra.mxu0 0.0
    %1760 = vmatpush.msra.mxu0 0.0
    %1761 = vmatpush.msra.mxu0 0.0
    %1762 = vmatpush.msra.mxu0 %v1280
    %1763 = vmatmul.f32.gmra.mxu0 %v1745
    %v1764 = vpop.f32.mrf.mxu0
    %v1765 = vadd.f32 0.0, %v1764
    %1766 = vdwg.mxu0
    %v1768 = vsel %vm537, %v1721, 0
    %1770 = vmatpush.msra.mxu0 0.0
    %1771 = vmatpush.msra.mxu0 0.0
    %1772 = vmatpush.msra.mxu0 0.0
    %1773 = vmatpush.msra.mxu0 0.0
    %1774 = vmatpush.msra.mxu0 0.0
    %1775 = vmatpush.msra.mxu0 0.0
    %1776 = vmatpush.msra.mxu0 0.0
    %1777 = vmatpush.msra.mxu0 0.0
    %1778 = vmatpush.msra.mxu0 0.0
    %1779 = vmatpush.msra.mxu0 0.0
    %1780 = vmatpush.msra.mxu0 0.0
    %1781 = vmatpush.msra.mxu0 0.0
    %1782 = vmatpush.msra.mxu0 0.0
    %1783 = vmatpush.msra.mxu0 0.0
    %1784 = vmatpush.msra.mxu0 0.0
    %1785 = vmatpush.msra.mxu0 %v1281
    %1786 = vmatmul.f32.gmra.mxu0 %v1768
    %v1787 = vpop.f32.mrf.mxu0
    %v1788 = vadd.f32 0.0, %v1787
    %1789 = vdwg.mxu0
    %v1790 = vadd.f32 %v1765, %v1280
    %v1791 = vadd.f32 %v1788, %v1281
    %s1792 = scalar_lea.vmem [#allocation2], 128
    %v1793 = vld [vmem:[%s1792] sm:$0xff]
    %v1794 = vld [vmem:[%s1792 + $0x8] sm:$0xff]
    %v1795 = vld [vmem:[%s1792 + $0x10] sm:$0xff]
    %v1796 = vld [vmem:[%s1792 + $0x18] sm:$0xff]
    %v1797 = vld [vmem:[%s13 + $0x4] sm:$0x1]
    %v1798 = vmul.f32 %v1797, 2.0
    %v1799 = vperm.slane %v1798, 0
    %v1801 = vsel %vm101, %v1790, 0
    %v1804 = vsel %vm101, %v1791, 0
    %1806 = vmatpush.msra.mxu0 0.0
    %1807 = vmatpush.msra.mxu0 0.0
    %1808 = vmatpush.msra.mxu0 0.0
    %1809 = vmatpush.msra.mxu0 0.0
    %1810 = vmatpush.msra.mxu0 0.0
    %1811 = vmatpush.msra.mxu0 0.0
    %1812 = vmatpush.msra.mxu0 0.0
    %1813 = vmatpush.msra.mxu0 0.0
    %1814 = vmatpush.msra.mxu0 0.0
    %1815 = vmatpush.msra.mxu0 0.0
    %1816 = vmatpush.msra.mxu0 0.0
    %1817 = vmatpush.msra.mxu0 0.0
    %1818 = vmatpush.msra.mxu0 %v1796
    %1819 = vmatpush.msra.mxu0 %v1795
    %1820 = vmatpush.msra.mxu0 %v1794
    %1821 = vmatpush.msra.mxu0 %v1793
    %1822 = vmatmul.f32.gmra.mxu0 %v1801
    %v1823 = vpop.f32.mrf.mxu0
    %v1824 = vadd.f32 %v1799, %v1823
    %1825 = vmatmul.f32.gmra.mxu0 %v1804
    %v1826 = vpop.f32.mrf.mxu0
    %v1827 = vadd.f32 %v1799, %v1826
    %1828 = vdwg.mxu0
    %v1829 = vmul.f32 %v1824, %v1740
    %v1830 = vmul.f32 %v1827, %v1741
    %v1831 = vmax.f32 %v1829, 0.0
    %v1832 = vmax.f32 %v1830, 0.0
    %s1833 = scalar_lea.vmem [#allocation5], 128
    %v1834 = vld [vmem:[%s1833] sm:$0xff]
    %v1835 = vld [vmem:[%s1833 + $0x8] sm:$0xff]
    %v1836 = vld [vmem:[%s1833 + $0x10] sm:$0xff]
    %v1837 = vld [vmem:[%s1833 + $0x18] sm:$0xff]
    %1838 = vmatpush.msra.mxu0 0.0
    %1839 = vmatpush.msra.mxu0 0.0
    %1840 = vmatpush.msra.mxu0 0.0
    %1841 = vmatpush.msra.mxu0 0.0
    %1842 = vmatpush.msra.mxu0 0.0
    %1843 = vmatpush.msra.mxu0 0.0
    %1844 = vmatpush.msra.mxu0 0.0
    %1845 = vmatpush.msra.mxu0 0.0
    %1846 = vmatpush.msra.mxu0 0.0
    %1847 = vmatpush.msra.mxu0 0.0
    %1848 = vmatpush.msra.mxu0 0.0
    %1849 = vmatpush.msra.mxu0 0.0
    %1850 = vmatpush.msra.mxu0 0.0
    %1851 = vmatpush.msra.mxu0 0.0
    %1852 = vmatpush.msra.mxu0 0.0
    %1853 = vmatpush.msra.mxu0 %v1831
    %1854 = vmatmul.f32.gmra.mxu0 %v1745
    %v1855 = vpop.f32.mrf.mxu0
    %v1856 = vadd.f32 0.0, %v1855
    %1857 = vdwg.mxu0
    %1858 = vmatpush.msra.mxu0 0.0
    %1859 = vmatpush.msra.mxu0 0.0
    %1860 = vmatpush.msra.mxu0 0.0
    %1861 = vmatpush.msra.mxu0 0.0
    %1862 = vmatpush.msra.mxu0 0.0
    %1863 = vmatpush.msra.mxu0 0.0
    %1864 = vmatpush.msra.mxu0 0.0
    %1865 = vmatpush.msra.mxu0 0.0
    %1866 = vmatpush.msra.mxu0 0.0
    %1867 = vmatpush.msra.mxu0 0.0
    %1868 = vmatpush.msra.mxu0 0.0
    %1869 = vmatpush.msra.mxu0 0.0
    %1870 = vmatpush.msra.mxu0 0.0
    %1871 = vmatpush.msra.mxu0 0.0
    %1872 = vmatpush.msra.mxu0 0.0
    %1873 = vmatpush.msra.mxu0 %v1832
    %1874 = vmatmul.f32.gmra.mxu0 %v1768
    %v1875 = vpop.f32.mrf.mxu0
    %v1876 = vadd.f32 0.0, %v1875
    %1877 = vdwg.mxu0
    %v1878 = vadd.f32 %v1856, %v1831
    %v1879 = vadd.f32 %v1876, %v1832
    %s1880 = scalar_lea.vmem [#allocation2], 160
    %v1881 = vld [vmem:[%s1880] sm:$0xff]
    %v1882 = vld [vmem:[%s1880 + $0x8] sm:$0xff]
    %v1883 = vld [vmem:[%s1880 + $0x10] sm:$0xff]
    %v1884 = vld [vmem:[%s1880 + $0x18] sm:$0xff]
    %v1885 = vld [vmem:[%s13 + $0x5] sm:$0x1]
    %v1886 = vmul.f32 %v1885, 2.0
    %v1887 = vperm.slane %v1886, 0
    %v1889 = vsel %vm101, %v1878, 0
    %v1892 = vsel %vm101, %v1879, 0
    %1894 = vmatpush.msra.mxu0 0.0
    %1895 = vmatpush.msra.mxu0 0.0
    %1896 = vmatpush.msra.mxu0 0.0
    %1897 = vmatpush.msra.mxu0 0.0
    %1898 = vmatpush.msra.mxu0 0.0
    %1899 = vmatpush.msra.mxu0 0.0
    %1900 = vmatpush.msra.mxu0 0.0
    %1901 = vmatpush.msra.mxu0 0.0
    %1902 = vmatpush.msra.mxu0 0.0
    %1903 = vmatpush.msra.mxu0 0.0
    %1904 = vmatpush.msra.mxu0 0.0
    %1905 = vmatpush.msra.mxu0 0.0
    %1906 = vmatpush.msra.mxu0 %v1884
    %1907 = vmatpush.msra.mxu0 %v1883
    %1908 = vmatpush.msra.mxu0 %v1882
    %1909 = vmatpush.msra.mxu0 %v1881
    %1910 = vmatmul.f32.gmra.mxu0 %v1889
    %v1911 = vpop.f32.mrf.mxu0
    %v1912 = vadd.f32 %v1887, %v1911
    %1913 = vmatmul.f32.gmra.mxu0 %v1892
    %v1914 = vpop.f32.mrf.mxu0
    %v1915 = vadd.f32 %v1887, %v1914
    %1916 = vdwg.mxu0
    %v1917 = vmul.f32 %v1912, %v1740
    %v1918 = vmul.f32 %v1915, %v1741
    %v1919 = vmax.f32 %v1917, 0.0
    %v1920 = vmax.f32 %v1918, 0.0
    %s1921 = scalar_lea.vmem [#allocation5], 160
    %v1922 = vld [vmem:[%s1921] sm:$0xff]
    %v1923 = vld [vmem:[%s1921 + $0x8] sm:$0xff]
    %v1924 = vld [vmem:[%s1921 + $0x10] sm:$0xff]
    %v1925 = vld [vmem:[%s1921 + $0x18] sm:$0xff]
    %v1927 = vsel %vm101, %v1919, 0
    %v1930 = vsel %vm101, %v1920, 0
    %1932 = vmatpush.msra.mxu0 0.0
    %1933 = vmatpush.msra.mxu0 0.0
    %1934 = vmatpush.msra.mxu0 0.0
    %1935 = vmatpush.msra.mxu0 0.0
    %1936 = vmatpush.msra.mxu0 0.0
    %1937 = vmatpush.msra.mxu0 0.0
    %1938 = vmatpush.msra.mxu0 0.0
    %1939 = vmatpush.msra.mxu0 0.0
    %1940 = vmatpush.msra.mxu0 0.0
    %1941 = vmatpush.msra.mxu0 0.0
    %1942 = vmatpush.msra.mxu0 0.0
    %1943 = vmatpush.msra.mxu0 0.0
    %1944 = vmatpush.msra.mxu0 %v1925
    %1945 = vmatpush.msra.mxu0 %v1924
    %1946 = vmatpush.msra.mxu0 %v1923
    %1947 = vmatpush.msra.mxu0 %v1922
    %1948 = vmatmul.f32.gmra.mxu0 %v1927
    %v1949 = vpop.f32.mrf.mxu0
    %v1950 = vadd.f32 0.0, %v1949
    %1951 = vmatmul.f32.gmra.mxu0 %v1930
    %v1952 = vpop.f32.mrf.mxu0
    %v1953 = vadd.f32 0.0, %v1952
    %1954 = vdwg.mxu0
    %v1956 = vsel %vm101, %v1831, 0
    %v1959 = vsel %vm101, %v1832, 0
    %1961 = vmatpush.msra.mxu0 0.0
    %1962 = vmatpush.msra.mxu0 0.0
    %1963 = vmatpush.msra.mxu0 0.0
    %1964 = vmatpush.msra.mxu0 0.0
    %1965 = vmatpush.msra.mxu0 0.0
    %1966 = vmatpush.msra.mxu0 0.0
    %1967 = vmatpush.msra.mxu0 0.0
    %1968 = vmatpush.msra.mxu0 0.0
    %1969 = vmatpush.msra.mxu0 0.0
    %1970 = vmatpush.msra.mxu0 0.0
    %1971 = vmatpush.msra.mxu0 0.0
    %1972 = vmatpush.msra.mxu0 0.0
    %1973 = vmatpush.msra.mxu0 %v1837
    %1974 = vmatpush.msra.mxu0 %v1836
    %1975 = vmatpush.msra.mxu0 %v1835
    %1976 = vmatpush.msra.mxu0 %v1834
    %1977 = vmatmul.f32.gmra.mxu0 %v1956
    %v1978 = vpop.f32.mrf.mxu0
    %v1979 = vadd.f32 %v1950, %v1978
    %1980 = vmatmul.f32.gmra.mxu0 %v1959
    %v1981 = vpop.f32.mrf.mxu0
    %v1982 = vadd.f32 %v1953, %v1981
    %1983 = vdwg.mxu0
    %v1985 = vsel %vm537, %v1722, 0
    %1987 = vmatpush.msra.mxu0 0.0
    %1988 = vmatpush.msra.mxu0 0.0
    %1989 = vmatpush.msra.mxu0 0.0
    %1990 = vmatpush.msra.mxu0 0.0
    %1991 = vmatpush.msra.mxu0 0.0
    %1992 = vmatpush.msra.mxu0 0.0
    %1993 = vmatpush.msra.mxu0 0.0
    %1994 = vmatpush.msra.mxu0 0.0
    %1995 = vmatpush.msra.mxu0 0.0
    %1996 = vmatpush.msra.mxu0 0.0
    %1997 = vmatpush.msra.mxu0 0.0
    %1998 = vmatpush.msra.mxu0 0.0
    %1999 = vmatpush.msra.mxu0 0.0
    %2000 = vmatpush.msra.mxu0 0.0
    %2001 = vmatpush.msra.mxu0 0.0
    %2002 = vmatpush.msra.mxu0 %v1280
    %2003 = vmatmul.f32.gmra.mxu0 %v1985
    %v2004 = vpop.f32.mrf.mxu0
    %v2005 = vadd.f32 0.0, %v2004
    %2006 = vdwg.mxu0
    %v2008 = vsel %vm537, %v1723, 0
    %2010 = vmatpush.msra.mxu0 0.0
    %2011 = vmatpush.msra.mxu0 0.0
    %2012 = vmatpush.msra.mxu0 0.0
    %2013 = vmatpush.msra.mxu0 0.0
    %2014 = vmatpush.msra.mxu0 0.0
    %2015 = vmatpush.msra.mxu0 0.0
    %2016 = vmatpush.msra.mxu0 0.0
    %2017 = vmatpush.msra.mxu0 0.0
    %2018 = vmatpush.msra.mxu0 0.0
    %2019 = vmatpush.msra.mxu0 0.0
    %2020 = vmatpush.msra.mxu0 0.0
    %2021 = vmatpush.msra.mxu0 0.0
    %2022 = vmatpush.msra.mxu0 0.0
    %2023 = vmatpush.msra.mxu0 0.0
    %2024 = vmatpush.msra.mxu0 0.0
    %2025 = vmatpush.msra.mxu0 %v1281
    %2026 = vmatmul.f32.gmra.mxu0 %v2008
    %v2027 = vpop.f32.mrf.mxu0
    %v2028 = vadd.f32 0.0, %v2027
    %2029 = vdwg.mxu0
    %v2030 = vadd.f32 %v2005, %v1280
    %v2031 = vadd.f32 %v2028, %v1281
    %s2032 = scalar_lea.vmem [#allocation2], 192
    %v2033 = vld [vmem:[%s2032] sm:$0xff]
    %v2034 = vld [vmem:[%s2032 + $0x8] sm:$0xff]
    %v2035 = vld [vmem:[%s2032 + $0x10] sm:$0xff]
    %v2036 = vld [vmem:[%s2032 + $0x18] sm:$0xff]
    %v2037 = vld [vmem:[%s13 + $0x6] sm:$0x1]
    %v2038 = vmul.f32 %v2037, 2.0
    %v2039 = vperm.slane %v2038, 0
    %v2041 = vsel %vm101, %v2030, 0
    %v2044 = vsel %vm101, %v2031, 0
    %2046 = vmatpush.msra.mxu0 0.0
    %2047 = vmatpush.msra.mxu0 0.0
    %2048 = vmatpush.msra.mxu0 0.0
    %2049 = vmatpush.msra.mxu0 0.0
    %2050 = vmatpush.msra.mxu0 0.0
    %2051 = vmatpush.msra.mxu0 0.0
    %2052 = vmatpush.msra.mxu0 0.0
    %2053 = vmatpush.msra.mxu0 0.0
    %2054 = vmatpush.msra.mxu0 0.0
    %2055 = vmatpush.msra.mxu0 0.0
    %2056 = vmatpush.msra.mxu0 0.0
    %2057 = vmatpush.msra.mxu0 0.0
    %2058 = vmatpush.msra.mxu0 %v2036
    %2059 = vmatpush.msra.mxu0 %v2035
    %2060 = vmatpush.msra.mxu0 %v2034
    %2061 = vmatpush.msra.mxu0 %v2033
    %2062 = vmatmul.f32.gmra.mxu0 %v2041
    %v2063 = vpop.f32.mrf.mxu0
    %v2064 = vadd.f32 %v2039, %v2063
    %2065 = vmatmul.f32.gmra.mxu0 %v2044
    %v2066 = vpop.f32.mrf.mxu0
    %v2067 = vadd.f32 %v2039, %v2066
    %2068 = vdwg.mxu0
    %v2069 = vmul.f32 %v2064, %v1742
    %v2070 = vmul.f32 %v2067, %v1743
    %v2071 = vmax.f32 %v2069, 0.0
    %v2072 = vmax.f32 %v2070, 0.0
    %s2073 = scalar_lea.vmem [#allocation5], 192
    %v2074 = vld [vmem:[%s2073] sm:$0xff]
    %v2075 = vld [vmem:[%s2073 + $0x8] sm:$0xff]
    %v2076 = vld [vmem:[%s2073 + $0x10] sm:$0xff]
    %v2077 = vld [vmem:[%s2073 + $0x18] sm:$0xff]
    %v2079 = vsel %vm101, %v2071, 0
    %v2082 = vsel %vm101, %v2072, 0
    %2084 = vmatpush.msra.mxu0 0.0
    %2085 = vmatpush.msra.mxu0 0.0
    %2086 = vmatpush.msra.mxu0 0.0
    %2087 = vmatpush.msra.mxu0 0.0
    %2088 = vmatpush.msra.mxu0 0.0
    %2089 = vmatpush.msra.mxu0 0.0
    %2090 = vmatpush.msra.mxu0 0.0
    %2091 = vmatpush.msra.mxu0 0.0
    %2092 = vmatpush.msra.mxu0 0.0
    %2093 = vmatpush.msra.mxu0 0.0
    %2094 = vmatpush.msra.mxu0 0.0
    %2095 = vmatpush.msra.mxu0 0.0
    %2096 = vmatpush.msra.mxu0 %v2077
    %2097 = vmatpush.msra.mxu0 %v2076
    %2098 = vmatpush.msra.mxu0 %v2075
    %2099 = vmatpush.msra.mxu0 %v2074
    %2100 = vmatmul.f32.gmra.mxu0 %v2079
    %v2101 = vpop.f32.mrf.mxu0
    %v2102 = vadd.f32 0.0, %v2101
    %2103 = vmatmul.f32.gmra.mxu0 %v2082
    %v2104 = vpop.f32.mrf.mxu0
    %v2105 = vadd.f32 0.0, %v2104
    %2106 = vdwg.mxu0
    %v2107 = vadd.f32 %v1979, %v2102
    %v2108 = vadd.f32 %v1982, %v2105
    %2109 = vmatpush.msra.mxu0 0.0
    %2110 = vmatpush.msra.mxu0 0.0
    %2111 = vmatpush.msra.mxu0 0.0
    %2112 = vmatpush.msra.mxu0 0.0
    %2113 = vmatpush.msra.mxu0 0.0
    %2114 = vmatpush.msra.mxu0 0.0
    %2115 = vmatpush.msra.mxu0 0.0
    %2116 = vmatpush.msra.mxu0 0.0
    %2117 = vmatpush.msra.mxu0 0.0
    %2118 = vmatpush.msra.mxu0 0.0
    %2119 = vmatpush.msra.mxu0 0.0
    %2120 = vmatpush.msra.mxu0 0.0
    %2121 = vmatpush.msra.mxu0 0.0
    %2122 = vmatpush.msra.mxu0 0.0
    %2123 = vmatpush.msra.mxu0 0.0
    %2124 = vmatpush.msra.mxu0 %v2071
    %2125 = vmatmul.f32.gmra.mxu0 %v1985
    %v2126 = vpop.f32.mrf.mxu0
    %v2127 = vadd.f32 0.0, %v2126
    %2128 = vdwg.mxu0
    %2129 = vmatpush.msra.mxu0 0.0
    %2130 = vmatpush.msra.mxu0 0.0
    %2131 = vmatpush.msra.mxu0 0.0
    %2132 = vmatpush.msra.mxu0 0.0
    %2133 = vmatpush.msra.mxu0 0.0
    %2134 = vmatpush.msra.mxu0 0.0
    %2135 = vmatpush.msra.mxu0 0.0
    %2136 = vmatpush.msra.mxu0 0.0
    %2137 = vmatpush.msra.mxu0 0.0
    %2138 = vmatpush.msra.mxu0 0.0
    %2139 = vmatpush.msra.mxu0 0.0
    %2140 = vmatpush.msra.mxu0 0.0
    %2141 = vmatpush.msra.mxu0 0.0
    %2142 = vmatpush.msra.mxu0 0.0
    %2143 = vmatpush.msra.mxu0 0.0
    %2144 = vmatpush.msra.mxu0 %v2072
    %2145 = vmatmul.f32.gmra.mxu0 %v2008
    %v2146 = vpop.f32.mrf.mxu0
    %v2147 = vadd.f32 0.0, %v2146
    %2148 = vdwg.mxu0
    %v2149 = vadd.f32 %v2127, %v2071
    %v2150 = vadd.f32 %v2147, %v2072
    %s2151 = scalar_lea.vmem [#allocation2], 224
    %v2152 = vld [vmem:[%s2151] sm:$0xff]
    %v2153 = vld [vmem:[%s2151 + $0x8] sm:$0xff]
    %v2154 = vld [vmem:[%s2151 + $0x10] sm:$0xff]
    %v2155 = vld [vmem:[%s2151 + $0x18] sm:$0xff]
    %v2156 = vld [vmem:[%s13 + $0x7] sm:$0x1]
    %v2157 = vmul.f32 %v2156, 2.0
    %v2158 = vperm.slane %v2157, 0
    %v2160 = vsel %vm101, %v2149, 0
    %v2163 = vsel %vm101, %v2150, 0
    %2165 = vmatpush.msra.mxu0 0.0
    %2166 = vmatpush.msra.mxu0 0.0
    %2167 = vmatpush.msra.mxu0 0.0
    %2168 = vmatpush.msra.mxu0 0.0
    %2169 = vmatpush.msra.mxu0 0.0
    %2170 = vmatpush.msra.mxu0 0.0
    %2171 = vmatpush.msra.mxu0 0.0
    %2172 = vmatpush.msra.mxu0 0.0
    %2173 = vmatpush.msra.mxu0 0.0
    %2174 = vmatpush.msra.mxu0 0.0
    %2175 = vmatpush.msra.mxu0 0.0
    %2176 = vmatpush.msra.mxu0 0.0
    %2177 = vmatpush.msra.mxu0 %v2155
    %2178 = vmatpush.msra.mxu0 %v2154
    %2179 = vmatpush.msra.mxu0 %v2153
    %2180 = vmatpush.msra.mxu0 %v2152
    %2181 = vmatmul.f32.gmra.mxu0 %v2160
    %v2182 = vpop.f32.mrf.mxu0
    %v2183 = vadd.f32 %v2158, %v2182
    %2184 = vmatmul.f32.gmra.mxu0 %v2163
    %v2185 = vpop.f32.mrf.mxu0
    %v2186 = vadd.f32 %v2158, %v2185
    %2187 = vdwg.mxu0
    %v2188 = vmul.f32 %v2183, %v1742
    %v2189 = vmul.f32 %v2186, %v1743
    %v2190 = vmax.f32 %v2188, 0.0
    %v2191 = vmax.f32 %v2189, 0.0
    %s2192 = scalar_lea.vmem [#allocation5], 224
    %v2193 = vld [vmem:[%s2192] sm:$0xff]
    %v2194 = vld [vmem:[%s2192 + $0x8] sm:$0xff]
    %v2195 = vld [vmem:[%s2192 + $0x10] sm:$0xff]
    %v2196 = vld [vmem:[%s2192 + $0x18] sm:$0xff]
    %v2198 = vsel %vm101, %v2190, 0
    %v2201 = vsel %vm101, %v2191, 0
    %2203 = vmatpush.msra.mxu0 0.0
    %2204 = vmatpush.msra.mxu0 0.0
    %2205 = vmatpush.msra.mxu0 0.0
    %2206 = vmatpush.msra.mxu0 0.0
    %2207 = vmatpush.msra.mxu0 0.0
    %2208 = vmatpush.msra.mxu0 0.0
    %2209 = vmatpush.msra.mxu0 0.0
    %2210 = vmatpush.msra.mxu0 0.0
    %2211 = vmatpush.msra.mxu0 0.0
    %2212 = vmatpush.msra.mxu0 0.0
    %2213 = vmatpush.msra.mxu0 0.0
    %2214 = vmatpush.msra.mxu0 0.0
    %2215 = vmatpush.msra.mxu0 %v2196
    %2216 = vmatpush.msra.mxu0 %v2195
    %2217 = vmatpush.msra.mxu0 %v2194
    %2218 = vmatpush.msra.mxu0 %v2193
    %2219 = vmatmul.f32.gmra.mxu0 %v2198
    %v2220 = vpop.f32.mrf.mxu0
    %v2221 = vadd.f32 0.0, %v2220
    %2222 = vmatmul.f32.gmra.mxu0 %v2201
    %v2223 = vpop.f32.mrf.mxu0
    %v2224 = vadd.f32 0.0, %v2223
    %2225 = vdwg.mxu0
    %v2226 = vadd.f32 %v2107, %v2221
    %v2227 = vadd.f32 %v2108, %v2224
    %v2228 = vadd.f32 %v1280, %v2226
    %v2229 = vadd.f32 %v1281, %v2227
    %v2230 = vld [vmem:[%s14 + $0x1] sm:$0x1]
    %v2231 = vperm.slane %v2230, 0
    %v2232 = vadd.f32 %v2228, %v2231
    %v2233 = vadd.f32 %v2229, %v2231
    %2234 = vst.msk [vmem:[#allocation7] sm:$0xff] %vm101, %v2232
    %2235 = vst.msk [vmem:[#allocation7 + $0x8] sm:$0xff] %vm101, %v2233
    // Predicated region
    $region70: #{tpu_custom_call.1} parent=1 // pred_check
      _
    $region71: #{tpu_custom_call.1} parent=1 // pred_check_branch
      %2237 = sbr.rel (0) target = $region73
    $region72: #{tpu_custom_call.1} parent=1 // pred_region
      %2239 = vsyncadd [#allocation4], 0
      %s2240 = sshll.u32 [#allocation7], 4
      %s2241 = int_to_ptr.vmem [resolvable:$true] %s2240
      %s2242 = sshll.u32 %s15, 4
      %s2243 = int_to_ptr.hbm [resolvable:$true] %s2242
      %2248 = dma.vmem_to_hbm [thread:$0]  %s2241, 256, %s2243, [#allocation4], 128, 128, 8
    $region73: #{tpu_custom_call.1} parent=1 // pred_fallthru
      _
    // Predicated region
    $region74: #{tpu_custom_call.1} parent=1 // pred_check
      _
    $region75: #{tpu_custom_call.1} parent=1 // pred_check_branch
      %2250 = sbr.rel (0) target = $region77
    $region76: #{tpu_custom_call.1} parent=1 // pred_region
      %2252 = vsyncadd [#allocation9], 0
      %s2253 = sshll.u32 [#allocation8], 4
      %s2254 = int_to_ptr.vmem [resolvable:$true] %s2253
      %s2255 = sshll.u32 %s16, 4
      %s2256 = int_to_ptr.hbm [resolvable:$true] %s2255
      %2261 = dma.vmem_to_hbm [thread:$0]  %s2254, 256, %s2256, [#allocation9], 128, 128, 8
    $region77: #{tpu_custom_call.1} parent=1 // pred_fallthru
      _
    // Predicated region
    $region78: #{tpu_custom_call.1} parent=1 // pred_check
      _
    $region79: #{tpu_custom_call.1} parent=1 // pred_check_branch
      %2263 = sbr.rel (0) target = $region81
    $region80: #{tpu_custom_call.1} parent=1 // pred_region
      %2265 = dma.done [#allocation4], 256
    $region81: #{tpu_custom_call.1} parent=1 // pred_fallthru
      _
    // Predicated region
    $region82: #{tpu_custom_call.1} parent=1 // pred_check
      _
    $region83: #{tpu_custom_call.1} parent=1 // pred_check_branch
      %2267 = sbr.rel (0) target = $region85
    $region84: #{tpu_custom_call.1} parent=1 // pred_region
      %2269 = dma.done [#allocation9], 256
    $region85: #{tpu_custom_call.1} parent=1 // pred_fallthru
      _
    %2270 = vsyncpa [#allocation3], 1
    %2271 = vsyncpa [#allocation6], 1
    %2272 = vsyncpa [#allocation4], 1
    %2273 = vsyncpa [#allocation9], 1

</llo_original>
